<compile_context>
chip_gen: v5e
topology: v5e:2x2
jax: 0.10.0
libtpu: 0.0.40
codegen_flags: <defaults>
</compile_context>

<pallas_src>
import jax
import jax.numpy as jnp
from jax import lax
from jax.experimental import pallas as pl
from jax.experimental.pallas import tpu as pltpu

SEQ_LEN = 20
INPUT_SIZE = 5
HIDDEN = 20
NUM_GATES = 4  # PyTorch gate order: i, f, g, o


def _gate_act(g, c_prev, hidden):
    """g: (batch_pad, 4*hidden) fused pre-activations in PyTorch gate order.

    Activations are applied to the FULL fused vector (2 EUP passes) and the
    gates are sliced out afterwards.
    """
    sig = 0.5 * jnp.tanh(0.5 * g) + 0.5   # sigmoid of everything (1 EUP pass)
    tnh = jnp.tanh(g)                     # tanh of everything    (1 EUP pass)
    i = sig[:, 0 * hidden:1 * hidden]
    f = sig[:, 1 * hidden:2 * hidden]
    gg = tnh[:, 2 * hidden:3 * hidden]
    o = sig[:, 3 * hidden:4 * hidden]
    c_new = f * c_prev + i * gg
    h_new = o * jnp.tanh(c_new)
    return h_new, c_new


def _lstm2_head_kernel(x_ref, wih0_ref, whh0_ref, b0_ref,
                       w1_ref, b1_ref, whead_ref, bout_ref,
                       o_ref, xp_ref, y_ref):
    """Two stacked LSTM layers + fused Linear(seq*hidden, 1) head.

    x_ref     : (seq*bp, input)         f32, batch zero-padded to bp (=8)
    wih0_ref  : (input, 4*hidden)       gate-fused (i|f|g|o)
    whh0_ref  : (hidden, 4*hidden)
    b0_ref    : (1, 4*hidden)           b_ih + b_hh, layer 0
    w1_ref    : (2*hidden, 4*hidden)    [wih1 ; whh1] fused layer-1 weight
    b1_ref    : (1, 4*hidden)
    whead_ref : (seq*bp, hidden)        head weight in (t, b, h) layout, rows
                                        for padded batch entries are zero
    bout_ref  : (1, 1)
    o_ref     : (rows, 1)               rows == batch
    xp_ref    : (seq*bp, 4*hidden)      scratch: precomputed layer-0 input proj
    y_ref     : (seq*bp, hidden)        scratch: per-step layer-1 hidden states
    """
    n_rows_pad, hidden = whead_ref.shape
    seq = SEQ_LEN
    bp = n_rows_pad // seq          # padded batch (multiple of 8)
    rows = o_ref.shape[0]           # == batch
    spr = seq // rows               # timesteps contributing to each output row

    # Hoist all loop-invariant loads / broadcasts out of the recurrence.
    whh0 = whh0_ref[...]
    w1 = w1_ref[...]
    b1b = jnp.broadcast_to(b1_ref[...], (bp, NUM_GATES * hidden))

    # Layer-0 input projection for the WHOLE sequence in one MXU matmul,
    # off the recurrent critical path; layer-0 bias folded in here.
    xp_ref[...] = (
        jnp.dot(x_ref[...], wih0_ref[...], preferred_element_type=jnp.float32)
        + b0_ref[...])

    def step(t, carry):
        h0, c0, h1, c1 = carry
        base = t * bp   # multiple of 8 -> whole-tile, unmasked access

        # Layer 0: only the recurrent matmul remains on the critical path.
        g0 = xp_ref[pl.ds(base, bp), :] + jnp.dot(
            h0, whh0, preferred_element_type=jnp.float32)
        h0n, c0n = _gate_act(g0, c0, hidden)

        # Layer 1: single fused input+recurrent matmul.
        g1 = jnp.dot(jnp.concatenate([h0n, h1], axis=1), w1,
                     preferred_element_type=jnp.float32) + b1b
        h1n, c1n = _gate_act(g1, c1, hidden)

        # Stash this step's hidden state; the head is applied once after the
        # loop, so nothing but a single aligned store sits on the chain here.
        y_ref[pl.ds(base, bp), :] = h1n
        return h0n, c0n, h1n, c1n

    z = jnp.zeros((bp, hidden), jnp.float32)
    lax.fori_loop(0, seq, step, (z, z, z, z), unroll=True)

    # Fused linear head, single pass, entirely off the recurrent chain:
    #   out[r] = sum_{t in row r, b, h} y[t,b,h] * w_head[t,b,h] + b_out
    prod = y_ref[...] * whead_ref[...]                    # (seq*bp, H)
    rowsum = jnp.sum(prod, axis=1, keepdims=True)         # (seq*bp, 1)
    col = lax.broadcasted_iota(jnp.int32, (rows, seq * bp), 1)
    lo = lax.broadcasted_iota(jnp.int32, (rows, seq * bp), 0) * (spr * bp)
    sel = ((col >= lo) & (col < lo + spr * bp)).astype(jnp.float32)
    o_ref[...] = (jnp.dot(sel, rowsum, preferred_element_type=jnp.float32)
                  + bout_ref[...])


def init_params(key):
    ks = jax.random.split(key, 10)
    bound = 1.0 / jnp.sqrt(jnp.float32(HIDDEN))

    def u(k, shape):
        return jax.random.uniform(k, shape, jnp.float32, -bound, bound)

    return dict(
        wih0=u(ks[0], (NUM_GATES, INPUT_SIZE, HIDDEN)),
        whh0=u(ks[1], (NUM_GATES, HIDDEN, HIDDEN)),
        b0=u(ks[2], (NUM_GATES, 1, HIDDEN)) + u(ks[3], (NUM_GATES, 1, HIDDEN)),
        wih1=u(ks[4], (NUM_GATES, HIDDEN, HIDDEN)),
        whh1=u(ks[5], (NUM_GATES, HIDDEN, HIDDEN)),
        b1=u(ks[6], (NUM_GATES, 1, HIDDEN)) + u(ks[7], (NUM_GATES, 1, HIDDEN)),
        w_out=u(ks[8], (SEQ_LEN * HIDDEN, 1)),
        b_out=u(ks[9], (1, 1)),
    )


def rnn_forward(x, p):
    seq, batch, _ = x.shape
    assert seq == SEQ_LEN
    # Each view(-1, 400) row must cover an integer number of timesteps for the
    # deferred head accumulation (holds whenever batch divides SEQ_LEN).
    # TODO(synk): general batch sizes that do not divide SEQ_LEN would need a
    # split-timestep head accumulation; not needed for this module's usage.
    assert SEQ_LEN % batch == 0
    rows = batch                    # (seq*batch*HIDDEN) // (SEQ_LEN*HIDDEN)
    spr = SEQ_LEN // batch          # timesteps per output row
    bp = ((batch + 7) // 8) * 8     # batch padded to a sublane multiple

    # Gate-fused weight layouts (in_dim, 4*HIDDEN), gate order i|f|g|o.
    def fuse_w(w):   # (4, in, H) -> (in, 4H)
        return jnp.transpose(w, (1, 0, 2)).reshape(w.shape[1], NUM_GATES * HIDDEN)

    def fuse_b(b):   # (4, 1, H) -> (1, 4H)
        return jnp.transpose(b, (1, 0, 2)).reshape(1, NUM_GATES * HIDDEN)

    wih0_f, whh0_f = fuse_w(p["wih0"]), fuse_w(p["whh0"])
    b0_f, b1_f = fuse_b(p["b0"]), fuse_b(p["b1"])
    # Layer-1 input and recurrent weights fused: [h0_new | h1_prev] @ w1.
    w1_f = jnp.concatenate([fuse_w(p["wih1"]), fuse_w(p["whh1"])], axis=0)

    # Head weight rearranged so w_head[t, b, h] multiplies y[t, b, h] and the
    # product accumulates into output row t // spr -- exactly view(-1,400)@w_out.
    w_head = jnp.tile(p["w_out"].reshape(spr, batch, HIDDEN), (rows, 1, 1))
    w_head = jnp.pad(w_head, ((0, 0), (0, bp - batch), (0, 0)))
    w_head2d = w_head.reshape(seq * bp, HIDDEN)

    # Zero-pad batch to bp sublanes; padded rows never contaminate real rows
    # (all batch mixing is row-wise) and have zero head weight.
    x_pad = jnp.pad(x, ((0, 0), (0, bp - batch), (0, 0)))
    x2d = x_pad.reshape(seq * bp, INPUT_SIZE)

    vmem = pl.BlockSpec(memory_space=pltpu.MemorySpace.VMEM)
    out = pl.pallas_call(
        _lstm2_head_kernel,
        out_shape=jax.ShapeDtypeStruct((rows, 1), jnp.float32),
        in_specs=[vmem] * 8,
        out_specs=vmem,
        scratch_shapes=[
            pltpu.VMEM((seq * bp, NUM_GATES * HIDDEN), jnp.float32),  # xp
            pltpu.VMEM((seq * bp, HIDDEN), jnp.float32),              # y (h1 per step)
        ],
    )(x2d, wih0_f, whh0_f, b0_f, w1_f, b1_f, w_head2d, p["b_out"])

    return out.reshape(-1)  # out.view(-1)


def reference_forward(x, p):
    """Pure-JAX reference with canonical (unfused) PyTorch LSTM semantics."""
    seq, batch, _ = x.shape

    def cell(x_in, h, c, wih, whh, b):
        g = [x_in @ wih[k] + h @ whh[k] + b[k] for k in range(NUM_GATES)]
        i = jax.nn.sigmoid(g[0])
        f = jax.nn.sigmoid(g[1])
        gg = jnp.tanh(g[2])
        o = jax.nn.sigmoid(g[3])
        c = f * c + i * gg
        h = o * jnp.tanh(c)
        return h, c

    h0 = c0 = h1 = c1 = jnp.zeros((batch, HIDDEN), jnp.float32)
    ys = []
    for t in range(seq):
        h0, c0 = cell(x[t], h0, c0, p["wih0"], p["whh0"], p["b0"])
        h1, c1 = cell(h0, h1, c1, p["wih1"], p["whh1"], p["b1"])
        ys.append(h1)
    y = jnp.stack(ys, axis=0)
    feat = y.reshape(-1, SEQ_LEN * HIDDEN)
    return (feat @ p["w_out"] + p["b_out"]).reshape(-1)


if __name__ == "__main__":
    key = jax.random.PRNGKey(0)
    kx, kp = jax.random.split(key)
    batch = 2
    x = jax.random.normal(kx, (SEQ_LEN, batch, INPUT_SIZE), dtype=jnp.float32)
    params = init_params(kp)

    out = jax.block_until_ready(rnn_forward(x, params))
    ref = reference_forward(x, params)

    assert out.shape == (batch,), out.shape
    assert jnp.allclose(out, ref, atol=1e-4, rtol=1e-4), (out, ref)
    print("KERNEL_OK")
</pallas_src>

<mosaic_0001>
module attributes {stable_mosaic.version = 11 : i64} {
  func.func @_lstm2_head_kernel(%arg0: memref<160x5xf32, #tpu.memory_space<vmem>>, %arg1: memref<5x80xf32, #tpu.memory_space<vmem>>, %arg2: memref<20x80xf32, #tpu.memory_space<vmem>>, %arg3: memref<1x80xf32, #tpu.memory_space<vmem>>, %arg4: memref<40x80xf32, #tpu.memory_space<vmem>>, %arg5: memref<1x80xf32, #tpu.memory_space<vmem>>, %arg6: memref<160x20xf32, #tpu.memory_space<vmem>>, %arg7: memref<1x1xf32, #tpu.memory_space<vmem>>, %arg8: memref<2x1xf32, #tpu.memory_space<vmem>>, %arg9: memref<160x80xf32, #tpu.memory_space<vmem>>, %arg10: memref<160x20xf32, #tpu.memory_space<vmem>>) attributes {dimension_semantics = [], scalar_prefetch = 0 : i64, scratch_operands = 2 : i64, tpu.core_type = #tpu.core_type<tc>} {
    %c0 = arith.constant 0 : index
    %c0_0 = arith.constant 0 : index
    %0 = vector.load %arg2[%c0, %c0_0] : memref<20x80xf32, #tpu.memory_space<vmem>>, vector<20x80xf32>
    %c0_1 = arith.constant 0 : index
    %c0_2 = arith.constant 0 : index
    %1 = vector.load %arg4[%c0_1, %c0_2] : memref<40x80xf32, #tpu.memory_space<vmem>>, vector<40x80xf32>
    %c0_3 = arith.constant 0 : index
    %c0_4 = arith.constant 0 : index
    %2 = vector.load %arg5[%c0_3, %c0_4] : memref<1x80xf32, #tpu.memory_space<vmem>>, vector<1x80xf32>
    %3 = vector.shape_cast %2 : vector<1x80xf32> to vector<1x80xf32>
    %4 = vector.broadcast %3 : vector<1x80xf32> to vector<8x80xf32>
    %c0_5 = arith.constant 0 : index
    %c0_6 = arith.constant 0 : index
    %5 = vector.load %arg0[%c0_5, %c0_6] : memref<160x5xf32, #tpu.memory_space<vmem>>, vector<160x5xf32>
    %c0_7 = arith.constant 0 : index
    %c0_8 = arith.constant 0 : index
    %6 = vector.load %arg1[%c0_7, %c0_8] : memref<5x80xf32, #tpu.memory_space<vmem>>, vector<5x80xf32>
    %cst = arith.constant dense<0.000000e+00> : vector<160x80xf32>
    %7 = tpu.matmul %5, %6, %cst {dimension_numbers = #tpu.dot_dimension_numbers<[1], [0], [0], [1], [0, 0, 1, 1], [], []>} : vector<160x5xf32>, vector<5x80xf32>, vector<160x80xf32> -> vector<160x80xf32>
    %c0_9 = arith.constant 0 : index
    %c0_10 = arith.constant 0 : index
    %8 = vector.load %arg3[%c0_9, %c0_10] : memref<1x80xf32, #tpu.memory_space<vmem>>, vector<1x80xf32>
    %9 = vector.broadcast %8 : vector<1x80xf32> to vector<160x80xf32>
    %10 = arith.addf %7, %9 : vector<160x80xf32>
    %c0_11 = arith.constant 0 : index
    %c0_12 = arith.constant 0 : index
    %11 = vector.load %arg9[%c0_11, %c0_12] : memref<160x80xf32, #tpu.memory_space<vmem>>, vector<160x80xf32>
    tpu.vector_store %arg9[%c0_11, %c0_12], %10 {strides = array<i32>} : memref<160x80xf32, #tpu.memory_space<vmem>>, vector<160x80xf32>,
    %cst_13 = arith.constant 0.000000e+00 : f32
    %12 = vector.broadcast %cst_13 : f32 to vector<8x20xf32>
    %c0_i32 = arith.constant 0 : i32
    %c8_i32 = arith.constant 8 : i32
    %13 = arith.muli %c0_i32, %c8_i32 : i32
    %14 = arith.index_cast %13 : i32 to index
    %c0_14 = arith.constant 0 : index
    %15 = vector.load %arg9[%14, %c0_14] : memref<160x80xf32, #tpu.memory_space<vmem>>, vector<8x80xf32>
    %cst_15 = arith.constant dense<0.000000e+00> : vector<8x80xf32>
    %16 = tpu.matmul %12, %0, %cst_15 {dimension_numbers = #tpu.dot_dimension_numbers<[1], [0], [0], [1], [0, 0, 1, 1], [], []>} : vector<8x20xf32>, vector<20x80xf32>, vector<8x80xf32> -> vector<8x80xf32>
    %17 = arith.addf %15, %16 : vector<8x80xf32>
    %cst_16 = arith.constant 5.000000e-01 : f32
    %18 = vector.broadcast %cst_16 : f32 to vector<8x80xf32>
    %19 = arith.mulf %18, %17 : vector<8x80xf32>
    %20 = math.tanh %19 : vector<8x80xf32>
    %cst_17 = arith.constant 5.000000e-01 : f32
    %21 = vector.broadcast %cst_17 : f32 to vector<8x80xf32>
    %22 = arith.mulf %21, %20 : vector<8x80xf32>
    %cst_18 = arith.constant 5.000000e-01 : f32
    %23 = vector.broadcast %cst_18 : f32 to vector<8x80xf32>
    %24 = arith.addf %22, %23 : vector<8x80xf32>
    %25 = math.tanh %17 : vector<8x80xf32>
    %26 = vector.extract_strided_slice %24 {offsets = [0, 0], sizes = [8, 20], strides = [1, 1]} : vector<8x80xf32> to vector<8x20xf32>
    %27 = vector.extract_strided_slice %24 {offsets = [0, 20], sizes = [8, 20], strides = [1, 1]} : vector<8x80xf32> to vector<8x20xf32>
    %28 = vector.extract_strided_slice %25 {offsets = [0, 40], sizes = [8, 20], strides = [1, 1]} : vector<8x80xf32> to vector<8x20xf32>
    %29 = vector.extract_strided_slice %24 {offsets = [0, 60], sizes = [8, 20], strides = [1, 1]} : vector<8x80xf32> to vector<8x20xf32>
    %30 = arith.mulf %27, %12 : vector<8x20xf32>
    %31 = arith.mulf %26, %28 : vector<8x20xf32>
    %32 = arith.addf %30, %31 : vector<8x20xf32>
    %33 = math.tanh %32 : vector<8x20xf32>
    %34 = arith.mulf %29, %33 : vector<8x20xf32>
    %35 = tpu.concatenate %34, %12 in 1 : vector<8x20xf32>, vector<8x20xf32> -> vector<8x40xf32>
    %cst_19 = arith.constant dense<0.000000e+00> : vector<8x80xf32>
    %36 = tpu.matmul %35, %1, %cst_19 {dimension_numbers = #tpu.dot_dimension_numbers<[1], [0], [0], [1], [0, 0, 1, 1], [], []>} : vector<8x40xf32>, vector<40x80xf32>, vector<8x80xf32> -> vector<8x80xf32>
    %37 = arith.addf %36, %4 : vector<8x80xf32>
    %cst_20 = arith.constant 5.000000e-01 : f32
    %38 = vector.broadcast %cst_20 : f32 to vector<8x80xf32>
    %39 = arith.mulf %38, %37 : vector<8x80xf32>
    %40 = math.tanh %39 : vector<8x80xf32>
    %cst_21 = arith.constant 5.000000e-01 : f32
    %41 = vector.broadcast %cst_21 : f32 to vector<8x80xf32>
    %42 = arith.mulf %41, %40 : vector<8x80xf32>
    %cst_22 = arith.constant 5.000000e-01 : f32
    %43 = vector.broadcast %cst_22 : f32 to vector<8x80xf32>
    %44 = arith.addf %42, %43 : vector<8x80xf32>
    %45 = math.tanh %37 : vector<8x80xf32>
    %46 = vector.extract_strided_slice %44 {offsets = [0, 0], sizes = [8, 20], strides = [1, 1]} : vector<8x80xf32> to vector<8x20xf32>
    %47 = vector.extract_strided_slice %44 {offsets = [0, 20], sizes = [8, 20], strides = [1, 1]} : vector<8x80xf32> to vector<8x20xf32>
    %48 = vector.extract_strided_slice %45 {offsets = [0, 40], sizes = [8, 20], strides = [1, 1]} : vector<8x80xf32> to vector<8x20xf32>
    %49 = vector.extract_strided_slice %44 {offsets = [0, 60], sizes = [8, 20], strides = [1, 1]} : vector<8x80xf32> to vector<8x20xf32>
    %50 = arith.mulf %47, %12 : vector<8x20xf32>
    %51 = arith.mulf %46, %48 : vector<8x20xf32>
    %52 = arith.addf %50, %51 : vector<8x20xf32>
    %53 = math.tanh %52 : vector<8x20xf32>
    %54 = arith.mulf %49, %53 : vector<8x20xf32>
    %55 = arith.index_cast %13 : i32 to index
    %c0_23 = arith.constant 0 : index
    %56 = vector.load %arg10[%55, %c0_23] : memref<160x20xf32, #tpu.memory_space<vmem>>, vector<8x20xf32>
    tpu.vector_store %arg10[%55, %c0_23], %54 {strides = array<i32>} : memref<160x20xf32, #tpu.memory_space<vmem>>, vector<8x20xf32>,
    %c1_i32 = arith.constant 1 : i32
    %c8_i32_24 = arith.constant 8 : i32
    %57 = arith.muli %c1_i32, %c8_i32_24 : i32
    %58 = arith.index_cast %57 : i32 to index
    %c0_25 = arith.constant 0 : index
    %59 = vector.load %arg9[%58, %c0_25] : memref<160x80xf32, #tpu.memory_space<vmem>>, vector<8x80xf32>
    %cst_26 = arith.constant dense<0.000000e+00> : vector<8x80xf32>
    %60 = tpu.matmul %34, %0, %cst_26 {dimension_numbers = #tpu.dot_dimension_numbers<[1], [0], [0], [1], [0, 0, 1, 1], [], []>} : vector<8x20xf32>, vector<20x80xf32>, vector<8x80xf32> -> vector<8x80xf32>
    %61 = arith.addf %59, %60 : vector<8x80xf32>
    %cst_27 = arith.constant 5.000000e-01 : f32
    %62 = vector.broadcast %cst_27 : f32 to vector<8x80xf32>
    %63 = arith.mulf %62, %61 : vector<8x80xf32>
    %64 = math.tanh %63 : vector<8x80xf32>
    %cst_28 = arith.constant 5.000000e-01 : f32
    %65 = vector.broadcast %cst_28 : f32 to vector<8x80xf32>
    %66 = arith.mulf %65, %64 : vector<8x80xf32>
    %cst_29 = arith.constant 5.000000e-01 : f32
    %67 = vector.broadcast %cst_29 : f32 to vector<8x80xf32>
    %68 = arith.addf %66, %67 : vector<8x80xf32>
    %69 = math.tanh %61 : vector<8x80xf32>
    %70 = vector.extract_strided_slice %68 {offsets = [0, 0], sizes = [8, 20], strides = [1, 1]} : vector<8x80xf32> to vector<8x20xf32>
    %71 = vector.extract_strided_slice %68 {offsets = [0, 20], sizes = [8, 20], strides = [1, 1]} : vector<8x80xf32> to vector<8x20xf32>
    %72 = vector.extract_strided_slice %69 {offsets = [0, 40], sizes = [8, 20], strides = [1, 1]} : vector<8x80xf32> to vector<8x20xf32>
    %73 = vector.extract_strided_slice %68 {offsets = [0, 60], sizes = [8, 20], strides = [1, 1]} : vector<8x80xf32> to vector<8x20xf32>
    %74 = arith.mulf %71, %32 : vector<8x20xf32>
    %75 = arith.mulf %70, %72 : vector<8x20xf32>
    %76 = arith.addf %74, %75 : vector<8x20xf32>
    %77 = math.tanh %76 : vector<8x20xf32>
    %78 = arith.mulf %73, %77 : vector<8x20xf32>
    %79 = tpu.concatenate %78, %54 in 1 : vector<8x20xf32>, vector<8x20xf32> -> vector<8x40xf32>
    %cst_30 = arith.constant dense<0.000000e+00> : vector<8x80xf32>
    %80 = tpu.matmul %79, %1, %cst_30 {dimension_numbers = #tpu.dot_dimension_numbers<[1], [0], [0], [1], [0, 0, 1, 1], [], []>} : vector<8x40xf32>, vector<40x80xf32>, vector<8x80xf32> -> vector<8x80xf32>
    %81 = arith.addf %80, %4 : vector<8x80xf32>
    %cst_31 = arith.constant 5.000000e-01 : f32
    %82 = vector.broadcast %cst_31 : f32 to vector<8x80xf32>
    %83 = arith.mulf %82, %81 : vector<8x80xf32>
    %84 = math.tanh %83 : vector<8x80xf32>
    %cst_32 = arith.constant 5.000000e-01 : f32
    %85 = vector.broadcast %cst_32 : f32 to vector<8x80xf32>
    %86 = arith.mulf %85, %84 : vector<8x80xf32>
    %cst_33 = arith.constant 5.000000e-01 : f32
    %87 = vector.broadcast %cst_33 : f32 to vector<8x80xf32>
    %88 = arith.addf %86, %87 : vector<8x80xf32>
    %89 = math.tanh %81 : vector<8x80xf32>
    %90 = vector.extract_strided_slice %88 {offsets = [0, 0], sizes = [8, 20], strides = [1, 1]} : vector<8x80xf32> to vector<8x20xf32>
    %91 = vector.extract_strided_slice %88 {offsets = [0, 20], sizes = [8, 20], strides = [1, 1]} : vector<8x80xf32> to vector<8x20xf32>
    %92 = vector.extract_strided_slice %89 {offsets = [0, 40], sizes = [8, 20], strides = [1, 1]} : vector<8x80xf32> to vector<8x20xf32>
    %93 = vector.extract_strided_slice %88 {offsets = [0, 60], sizes = [8, 20], strides = [1, 1]} : vector<8x80xf32> to vector<8x20xf32>
    %94 = arith.mulf %91, %52 : vector<8x20xf32>
    %95 = arith.mulf %90, %92 : vector<8x20xf32>
    %96 = arith.addf %94, %95 : vector<8x20xf32>
    %97 = math.tanh %96 : vector<8x20xf32>
    %98 = arith.mulf %93, %97 : vector<8x20xf32>
    %99 = arith.index_cast %57 : i32 to index
    %c0_34 = arith.constant 0 : index
    %100 = vector.load %arg10[%99, %c0_34] : memref<160x20xf32, #tpu.memory_space<vmem>>, vector<8x20xf32>
    tpu.vector_store %arg10[%99, %c0_34], %98 {strides = array<i32>} : memref<160x20xf32, #tpu.memory_space<vmem>>, vector<8x20xf32>,
    %c2_i32 = arith.constant 2 : i32
    %c8_i32_35 = arith.constant 8 : i32
    %101 = arith.muli %c2_i32, %c8_i32_35 : i32
    %102 = arith.index_cast %101 : i32 to index
    %c0_36 = arith.constant 0 : index
    %103 = vector.load %arg9[%102, %c0_36] : memref<160x80xf32, #tpu.memory_space<vmem>>, vector<8x80xf32>
    %cst_37 = arith.constant dense<0.000000e+00> : vector<8x80xf32>
    %104 = tpu.matmul %78, %0, %cst_37 {dimension_numbers = #tpu.dot_dimension_numbers<[1], [0], [0], [1], [0, 0, 1, 1], [], []>} : vector<8x20xf32>, vector<20x80xf32>, vector<8x80xf32> -> vector<8x80xf32>
    %105 = arith.addf %103, %104 : vector<8x80xf32>
    %cst_38 = arith.constant 5.000000e-01 : f32
    %106 = vector.broadcast %cst_38 : f32 to vector<8x80xf32>
    %107 = arith.mulf %106, %105 : vector<8x80xf32>
    %108 = math.tanh %107 : vector<8x80xf32>
    %cst_39 = arith.constant 5.000000e-01 : f32
    %109 = vector.broadcast %cst_39 : f32 to vector<8x80xf32>
    %110 = arith.mulf %109, %108 : vector<8x80xf32>
    %cst_40 = arith.constant 5.000000e-01 : f32
    %111 = vector.broadcast %cst_40 : f32 to vector<8x80xf32>
    %112 = arith.addf %110, %111 : vector<8x80xf32>
    %113 = math.tanh %105 : vector<8x80xf32>
    %114 = vector.extract_strided_slice %112 {offsets = [0, 0], sizes = [8, 20], strides = [1, 1]} : vector<8x80xf32> to vector<8x20xf32>
    %115 = vector.extract_strided_slice %112 {offsets = [0, 20], sizes = [8, 20], strides = [1, 1]} : vector<8x80xf32> to vector<8x20xf32>
    %116 = vector.extract_strided_slice %113 {offsets = [0, 40], sizes = [8, 20], strides = [1, 1]} : vector<8x80xf32> to vector<8x20xf32>
    %117 = vector.extract_strided_slice %112 {offsets = [0, 60], sizes = [8, 20], strides = [1, 1]} : vector<8x80xf32> to vector<8x20xf32>
    %118 = arith.mulf %115, %76 : vector<8x20xf32>
    %119 = arith.mulf %114, %116 : vector<8x20xf32>
    %120 = arith.addf %118, %119 : vector<8x20xf32>
    %121 = math.tanh %120 : vector<8x20xf32>
    %122 = arith.mulf %117, %121 : vector<8x20xf32>
    %123 = tpu.concatenate %122, %98 in 1 : vector<8x20xf32>, vector<8x20xf32> -> vector<8x40xf32>
    %cst_41 = arith.constant dense<0.000000e+00> : vector<8x80xf32>
    %124 = tpu.matmul %123, %1, %cst_41 {dimension_numbers = #tpu.dot_dimension_numbers<[1], [0], [0], [1], [0, 0, 1, 1], [], []>} : vector<8x40xf32>, vector<40x80xf32>, vector<8x80xf32> -> vector<8x80xf32>
    %125 = arith.addf %124, %4 : vector<8x80xf32>
    %cst_42 = arith.constant 5.000000e-01 : f32
    %126 = vector.broadcast %cst_42 : f32 to vector<8x80xf32>
    %127 = arith.mulf %126, %125 : vector<8x80xf32>
    %128 = math.tanh %127 : vector<8x80xf32>
    %cst_43 = arith.constant 5.000000e-01 : f32
    %129 = vector.broadcast %cst_43 : f32 to vector<8x80xf32>
    %130 = arith.mulf %129, %128 : vector<8x80xf32>
    %cst_44 = arith.constant 5.000000e-01 : f32
    %131 = vector.broadcast %cst_44 : f32 to vector<8x80xf32>
    %132 = arith.addf %130, %131 : vector<8x80xf32>
    %133 = math.tanh %125 : vector<8x80xf32>
    %134 = vector.extract_strided_slice %132 {offsets = [0, 0], sizes = [8, 20], strides = [1, 1]} : vector<8x80xf32> to vector<8x20xf32>
    %135 = vector.extract_strided_slice %132 {offsets = [0, 20], sizes = [8, 20], strides = [1, 1]} : vector<8x80xf32> to vector<8x20xf32>
    %136 = vector.extract_strided_slice %133 {offsets = [0, 40], sizes = [8, 20], strides = [1, 1]} : vector<8x80xf32> to vector<8x20xf32>
    %137 = vector.extract_strided_slice %132 {offsets = [0, 60], sizes = [8, 20], strides = [1, 1]} : vector<8x80xf32> to vector<8x20xf32>
    %138 = arith.mulf %135, %96 : vector<8x20xf32>
    %139 = arith.mulf %134, %136 : vector<8x20xf32>
    %140 = arith.addf %138, %139 : vector<8x20xf32>
    %141 = math.tanh %140 : vector<8x20xf32>
    %142 = arith.mulf %137, %141 : vector<8x20xf32>
    %143 = arith.index_cast %101 : i32 to index
    %c0_45 = arith.constant 0 : index
    %144 = vector.load %arg10[%143, %c0_45] : memref<160x20xf32, #tpu.memory_space<vmem>>, vector<8x20xf32>
    tpu.vector_store %arg10[%143, %c0_45], %142 {strides = array<i32>} : memref<160x20xf32, #tpu.memory_space<vmem>>, vector<8x20xf32>,
    %c3_i32 = arith.constant 3 : i32
    %c8_i32_46 = arith.constant 8 : i32
    %145 = arith.muli %c3_i32, %c8_i32_46 : i32
    %146 = arith.index_cast %145 : i32 to index
    %c0_47 = arith.constant 0 : index
    %147 = vector.load %arg9[%146, %c0_47] : memref<160x80xf32, #tpu.memory_space<vmem>>, vector<8x80xf32>
    %cst_48 = arith.constant dense<0.000000e+00> : vector<8x80xf32>
    %148 = tpu.matmul %122, %0, %cst_48 {dimension_numbers = #tpu.dot_dimension_numbers<[1], [0], [0], [1], [0, 0, 1, 1], [], []>} : vector<8x20xf32>, vector<20x80xf32>, vector<8x80xf32> -> vector<8x80xf32>
    %149 = arith.addf %147, %148 : vector<8x80xf32>
    %cst_49 = arith.constant 5.000000e-01 : f32
    %150 = vector.broadcast %cst_49 : f32 to vector<8x80xf32>
    %151 = arith.mulf %150, %149 : vector<8x80xf32>
    %152 = math.tanh %151 : vector<8x80xf32>
    %cst_50 = arith.constant 5.000000e-01 : f32
    %153 = vector.broadcast %cst_50 : f32 to vector<8x80xf32>
    %154 = arith.mulf %153, %152 : vector<8x80xf32>
    %cst_51 = arith.constant 5.000000e-01 : f32
    %155 = vector.broadcast %cst_51 : f32 to vector<8x80xf32>
    %156 = arith.addf %154, %155 : vector<8x80xf32>
    %157 = math.tanh %149 : vector<8x80xf32>
    %158 = vector.extract_strided_slice %156 {offsets = [0, 0], sizes = [8, 20], strides = [1, 1]} : vector<8x80xf32> to vector<8x20xf32>
    %159 = vector.extract_strided_slice %156 {offsets = [0, 20], sizes = [8, 20], strides = [1, 1]} : vector<8x80xf32> to vector<8x20xf32>
    %160 = vector.extract_strided_slice %157 {offsets = [0, 40], sizes = [8, 20], strides = [1, 1]} : vector<8x80xf32> to vector<8x20xf32>
    %161 = vector.extract_strided_slice %156 {offsets = [0, 60], sizes = [8, 20], strides = [1, 1]} : vector<8x80xf32> to vector<8x20xf32>
    %162 = arith.mulf %159, %120 : vector<8x20xf32>
    %163 = arith.mulf %158, %160 : vector<8x20xf32>
    %164 = arith.addf %162, %163 : vector<8x20xf32>
    %165 = math.tanh %164 : vector<8x20xf32>
    %166 = arith.mulf %161, %165 : vector<8x20xf32>
    %167 = tpu.concatenate %166, %142 in 1 : vector<8x20xf32>, vector<8x20xf32> -> vector<8x40xf32>
    %cst_52 = arith.constant dense<0.000000e+00> : vector<8x80xf32>
    %168 = tpu.matmul %167, %1, %cst_52 {dimension_numbers = #tpu.dot_dimension_numbers<[1], [0], [0], [1], [0, 0, 1, 1], [], []>} : vector<8x40xf32>, vector<40x80xf32>, vector<8x80xf32> -> vector<8x80xf32>
    %169 = arith.addf %168, %4 : vector<8x80xf32>
    %cst_53 = arith.constant 5.000000e-01 : f32
    %170 = vector.broadcast %cst_53 : f32 to vector<8x80xf32>
    %171 = arith.mulf %170, %169 : vector<8x80xf32>
    %172 = math.tanh %171 : vector<8x80xf32>
    %cst_54 = arith.constant 5.000000e-01 : f32
    %173 = vector.broadcast %cst_54 : f32 to vector<8x80xf32>
    %174 = arith.mulf %173, %172 : vector<8x80xf32>
    %cst_55 = arith.constant 5.000000e-01 : f32
    %175 = vector.broadcast %cst_55 : f32 to vector<8x80xf32>
    %176 = arith.addf %174, %175 : vector<8x80xf32>
    %177 = math.tanh %169 : vector<8x80xf32>
    %178 = vector.extract_strided_slice %176 {offsets = [0, 0], sizes = [8, 20], strides = [1, 1]} : vector<8x80xf32> to vector<8x20xf32>
    %179 = vector.extract_strided_slice %176 {offsets = [0, 20], sizes = [8, 20], strides = [1, 1]} : vector<8x80xf32> to vector<8x20xf32>
    %180 = vector.extract_strided_slice %177 {offsets = [0, 40], sizes = [8, 20], strides = [1, 1]} : vector<8x80xf32> to vector<8x20xf32>
    %181 = vector.extract_strided_slice %176 {offsets = [0, 60], sizes = [8, 20], strides = [1, 1]} : vector<8x80xf32> to vector<8x20xf32>
    %182 = arith.mulf %179, %140 : vector<8x20xf32>
    %183 = arith.mulf %178, %180 : vector<8x20xf32>
    %184 = arith.addf %182, %183 : vector<8x20xf32>
    %185 = math.tanh %184 : vector<8x20xf32>
    %186 = arith.mulf %181, %185 : vector<8x20xf32>
    %187 = arith.index_cast %145 : i32 to index
    %c0_56 = arith.constant 0 : index
    %188 = vector.load %arg10[%187, %c0_56] : memref<160x20xf32, #tpu.memory_space<vmem>>, vector<8x20xf32>
    tpu.vector_store %arg10[%187, %c0_56], %186 {strides = array<i32>} : memref<160x20xf32, #tpu.memory_space<vmem>>, vector<8x20xf32>,
    %c4_i32 = arith.constant 4 : i32
    %c8_i32_57 = arith.constant 8 : i32
    %189 = arith.muli %c4_i32, %c8_i32_57 : i32
    %190 = arith.index_cast %189 : i32 to index
    %c0_58 = arith.constant 0 : index
    %191 = vector.load %arg9[%190, %c0_58] : memref<160x80xf32, #tpu.memory_space<vmem>>, vector<8x80xf32>
    %cst_59 = arith.constant dense<0.000000e+00> : vector<8x80xf32>
    %192 = tpu.matmul %166, %0, %cst_59 {dimension_numbers = #tpu.dot_dimension_numbers<[1], [0], [0], [1], [0, 0, 1, 1], [], []>} : vector<8x20xf32>, vector<20x80xf32>, vector<8x80xf32> -> vector<8x80xf32>
    %193 = arith.addf %191, %192 : vector<8x80xf32>
    %cst_60 = arith.constant 5.000000e-01 : f32
    %194 = vector.broadcast %cst_60 : f32 to vector<8x80xf32>
    %195 = arith.mulf %194, %193 : vector<8x80xf32>
    %196 = math.tanh %195 : vector<8x80xf32>
    %cst_61 = arith.constant 5.000000e-01 : f32
    %197 = vector.broadcast %cst_61 : f32 to vector<8x80xf32>
    %198 = arith.mulf %197, %196 : vector<8x80xf32>
    %cst_62 = arith.constant 5.000000e-01 : f32
    %199 = vector.broadcast %cst_62 : f32 to vector<8x80xf32>
    %200 = arith.addf %198, %199 : vector<8x80xf32>
    %201 = math.tanh %193 : vector<8x80xf32>
    %202 = vector.extract_strided_slice %200 {offsets = [0, 0], sizes = [8, 20], strides = [1, 1]} : vector<8x80xf32> to vector<8x20xf32>
    %203 = vector.extract_strided_slice %200 {offsets = [0, 20], sizes = [8, 20], strides = [1, 1]} : vector<8x80xf32> to vector<8x20xf32>
    %204 = vector.extract_strided_slice %201 {offsets = [0, 40], sizes = [8, 20], strides = [1, 1]} : vector<8x80xf32> to vector<8x20xf32>
    %205 = vector.extract_strided_slice %200 {offsets = [0, 60], sizes = [8, 20], strides = [1, 1]} : vector<8x80xf32> to vector<8x20xf32>
    %206 = arith.mulf %203, %164 : vector<8x20xf32>
    %207 = arith.mulf %202, %204 : vector<8x20xf32>
    %208 = arith.addf %206, %207 : vector<8x20xf32>
    %209 = math.tanh %208 : vector<8x20xf32>
    %210 = arith.mulf %205, %209 : vector<8x20xf32>
    %211 = tpu.concatenate %210, %186 in 1 : vector<8x20xf32>, vector<8x20xf32> -> vector<8x40xf32>
    %cst_63 = arith.constant dense<0.000000e+00> : vector<8x80xf32>
    %212 = tpu.matmul %211, %1, %cst_63 {dimension_numbers = #tpu.dot_dimension_numbers<[1], [0], [0], [1], [0, 0, 1, 1], [], []>} : vector<8x40xf32>, vector<40x80xf32>, vector<8x80xf32> -> vector<8x80xf32>
    %213 = arith.addf %212, %4 : vector<8x80xf32>
    %cst_64 = arith.constant 5.000000e-01 : f32
    %214 = vector.broadcast %cst_64 : f32 to vector<8x80xf32>
    %215 = arith.mulf %214, %213 : vector<8x80xf32>
    %216 = math.tanh %215 : vector<8x80xf32>
    %cst_65 = arith.constant 5.000000e-01 : f32
    %217 = vector.broadcast %cst_65 : f32 to vector<8x80xf32>
    %218 = arith.mulf %217, %216 : vector<8x80xf32>
    %cst_66 = arith.constant 5.000000e-01 : f32
    %219 = vector.broadcast %cst_66 : f32 to vector<8x80xf32>
    %220 = arith.addf %218, %219 : vector<8x80xf32>
    %221 = math.tanh %213 : vector<8x80xf32>
    %222 = vector.extract_strided_slice %220 {offsets = [0, 0], sizes = [8, 20], strides = [1, 1]} : vector<8x80xf32> to vector<8x20xf32>
    %223 = vector.extract_strided_slice %220 {offsets = [0, 20], sizes = [8, 20], strides = [1, 1]} : vector<8x80xf32> to vector<8x20xf32>
    %224 = vector.extract_strided_slice %221 {offsets = [0, 40], sizes = [8, 20], strides = [1, 1]} : vector<8x80xf32> to vector<8x20xf32>
    %225 = vector.extract_strided_slice %220 {offsets = [0, 60], sizes = [8, 20], strides = [1, 1]} : vector<8x80xf32> to vector<8x20xf32>
    %226 = arith.mulf %223, %184 : vector<8x20xf32>
    %227 = arith.mulf %222, %224 : vector<8x20xf32>
    %228 = arith.addf %226, %227 : vector<8x20xf32>
    %229 = math.tanh %228 : vector<8x20xf32>
    %230 = arith.mulf %225, %229 : vector<8x20xf32>
    %231 = arith.index_cast %189 : i32 to index
    %c0_67 = arith.constant 0 : index
    %232 = vector.load %arg10[%231, %c0_67] : memref<160x20xf32, #tpu.memory_space<vmem>>, vector<8x20xf32>
    tpu.vector_store %arg10[%231, %c0_67], %230 {strides = array<i32>} : memref<160x20xf32, #tpu.memory_space<vmem>>, vector<8x20xf32>,
    %c5_i32 = arith.constant 5 : i32
    %c8_i32_68 = arith.constant 8 : i32
    %233 = arith.muli %c5_i32, %c8_i32_68 : i32
    %234 = arith.index_cast %233 : i32 to index
    %c0_69 = arith.constant 0 : index
    %235 = vector.load %arg9[%234, %c0_69] : memref<160x80xf32, #tpu.memory_space<vmem>>, vector<8x80xf32>
    %cst_70 = arith.constant dense<0.000000e+00> : vector<8x80xf32>
    %236 = tpu.matmul %210, %0, %cst_70 {dimension_numbers = #tpu.dot_dimension_numbers<[1], [0], [0], [1], [0, 0, 1, 1], [], []>} : vector<8x20xf32>, vector<20x80xf32>, vector<8x80xf32> -> vector<8x80xf32>
    %237 = arith.addf %235, %236 : vector<8x80xf32>
    %cst_71 = arith.constant 5.000000e-01 : f32
    %238 = vector.broadcast %cst_71 : f32 to vector<8x80xf32>
    %239 = arith.mulf %238, %237 : vector<8x80xf32>
    %240 = math.tanh %239 : vector<8x80xf32>
    %cst_72 = arith.constant 5.000000e-01 : f32
    %241 = vector.broadcast %cst_72 : f32 to vector<8x80xf32>
    %242 = arith.mulf %241, %240 : vector<8x80xf32>
    %cst_73 = arith.constant 5.000000e-01 : f32
    %243 = vector.broadcast %cst_73 : f32 to vector<8x80xf32>
    %244 = arith.addf %242, %243 : vector<8x80xf32>
    %245 = math.tanh %237 : vector<8x80xf32>
    %246 = vector.extract_strided_slice %244 {offsets = [0, 0], sizes = [8, 20], strides = [1, 1]} : vector<8x80xf32> to vector<8x20xf32>
    %247 = vector.extract_strided_slice %244 {offsets = [0, 20], sizes = [8, 20], strides = [1, 1]} : vector<8x80xf32> to vector<8x20xf32>
    %248 = vector.extract_strided_slice %245 {offsets = [0, 40], sizes = [8, 20], strides = [1, 1]} : vector<8x80xf32> to vector<8x20xf32>
    %249 = vector.extract_strided_slice %244 {offsets = [0, 60], sizes = [8, 20], strides = [1, 1]} : vector<8x80xf32> to vector<8x20xf32>
    %250 = arith.mulf %247, %208 : vector<8x20xf32>
    %251 = arith.mulf %246, %248 : vector<8x20xf32>
    %252 = arith.addf %250, %251 : vector<8x20xf32>
    %253 = math.tanh %252 : vector<8x20xf32>
    %254 = arith.mulf %249, %253 : vector<8x20xf32>
    %255 = tpu.concatenate %254, %230 in 1 : vector<8x20xf32>, vector<8x20xf32> -> vector<8x40xf32>
    %cst_74 = arith.constant dense<0.000000e+00> : vector<8x80xf32>
    %256 = tpu.matmul %255, %1, %cst_74 {dimension_numbers = #tpu.dot_dimension_numbers<[1], [0], [0], [1], [0, 0, 1, 1], [], []>} : vector<8x40xf32>, vector<40x80xf32>, vector<8x80xf32> -> vector<8x80xf32>
    %257 = arith.addf %256, %4 : vector<8x80xf32>
    %cst_75 = arith.constant 5.000000e-01 : f32
    %258 = vector.broadcast %cst_75 : f32 to vector<8x80xf32>
    %259 = arith.mulf %258, %257 : vector<8x80xf32>
    %260 = math.tanh %259 : vector<8x80xf32>
    %cst_76 = arith.constant 5.000000e-01 : f32
    %261 = vector.broadcast %cst_76 : f32 to vector<8x80xf32>
    %262 = arith.mulf %261, %260 : vector<8x80xf32>
    %cst_77 = arith.constant 5.000000e-01 : f32
    %263 = vector.broadcast %cst_77 : f32 to vector<8x80xf32>
    %264 = arith.addf %262, %263 : vector<8x80xf32>
    %265 = math.tanh %257 : vector<8x80xf32>
    %266 = vector.extract_strided_slice %264 {offsets = [0, 0], sizes = [8, 20], strides = [1, 1]} : vector<8x80xf32> to vector<8x20xf32>
    %267 = vector.extract_strided_slice %264 {offsets = [0, 20], sizes = [8, 20], strides = [1, 1]} : vector<8x80xf32> to vector<8x20xf32>
    %268 = vector.extract_strided_slice %265 {offsets = [0, 40], sizes = [8, 20], strides = [1, 1]} : vector<8x80xf32> to vector<8x20xf32>
    %269 = vector.extract_strided_slice %264 {offsets = [0, 60], sizes = [8, 20], strides = [1, 1]} : vector<8x80xf32> to vector<8x20xf32>
    %270 = arith.mulf %267, %228 : vector<8x20xf32>
    %271 = arith.mulf %266, %268 : vector<8x20xf32>
    %272 = arith.addf %270, %271 : vector<8x20xf32>
    %273 = math.tanh %272 : vector<8x20xf32>
    %274 = arith.mulf %269, %273 : vector<8x20xf32>
    %275 = arith.index_cast %233 : i32 to index
    %c0_78 = arith.constant 0 : index
    %276 = vector.load %arg10[%275, %c0_78] : memref<160x20xf32, #tpu.memory_space<vmem>>, vector<8x20xf32>
    tpu.vector_store %arg10[%275, %c0_78], %274 {strides = array<i32>} : memref<160x20xf32, #tpu.memory_space<vmem>>, vector<8x20xf32>,
    %c6_i32 = arith.constant 6 : i32
    %c8_i32_79 = arith.constant 8 : i32
    %277 = arith.muli %c6_i32, %c8_i32_79 : i32
    %278 = arith.index_cast %277 : i32 to index
    %c0_80 = arith.constant 0 : index
    %279 = vector.load %arg9[%278, %c0_80] : memref<160x80xf32, #tpu.memory_space<vmem>>, vector<8x80xf32>
    %cst_81 = arith.constant dense<0.000000e+00> : vector<8x80xf32>
    %280 = tpu.matmul %254, %0, %cst_81 {dimension_numbers = #tpu.dot_dimension_numbers<[1], [0], [0], [1], [0, 0, 1, 1], [], []>} : vector<8x20xf32>, vector<20x80xf32>, vector<8x80xf32> -> vector<8x80xf32>
    %281 = arith.addf %279, %280 : vector<8x80xf32>
    %cst_82 = arith.constant 5.000000e-01 : f32
    %282 = vector.broadcast %cst_82 : f32 to vector<8x80xf32>
    %283 = arith.mulf %282, %281 : vector<8x80xf32>
    %284 = math.tanh %283 : vector<8x80xf32>
    %cst_83 = arith.constant 5.000000e-01 : f32
    %285 = vector.broadcast %cst_83 : f32 to vector<8x80xf32>
    %286 = arith.mulf %285, %284 : vector<8x80xf32>
    %cst_84 = arith.constant 5.000000e-01 : f32
    %287 = vector.broadcast %cst_84 : f32 to vector<8x80xf32>
    %288 = arith.addf %286, %287 : vector<8x80xf32>
    %289 = math.tanh %281 : vector<8x80xf32>
    %290 = vector.extract_strided_slice %288 {offsets = [0, 0], sizes = [8, 20], strides = [1, 1]} : vector<8x80xf32> to vector<8x20xf32>
    %291 = vector.extract_strided_slice %288 {offsets = [0, 20], sizes = [8, 20], strides = [1, 1]} : vector<8x80xf32> to vector<8x20xf32>
    %292 = vector.extract_strided_slice %289 {offsets = [0, 40], sizes = [8, 20], strides = [1, 1]} : vector<8x80xf32> to vector<8x20xf32>
    %293 = vector.extract_strided_slice %288 {offsets = [0, 60], sizes = [8, 20], strides = [1, 1]} : vector<8x80xf32> to vector<8x20xf32>
    %294 = arith.mulf %291, %252 : vector<8x20xf32>
    %295 = arith.mulf %290, %292 : vector<8x20xf32>
    %296 = arith.addf %294, %295 : vector<8x20xf32>
    %297 = math.tanh %296 : vector<8x20xf32>
    %298 = arith.mulf %293, %297 : vector<8x20xf32>
    %299 = tpu.concatenate %298, %274 in 1 : vector<8x20xf32>, vector<8x20xf32> -> vector<8x40xf32>
    %cst_85 = arith.constant dense<0.000000e+00> : vector<8x80xf32>
    %300 = tpu.matmul %299, %1, %cst_85 {dimension_numbers = #tpu.dot_dimension_numbers<[1], [0], [0], [1], [0, 0, 1, 1], [], []>} : vector<8x40xf32>, vector<40x80xf32>, vector<8x80xf32> -> vector<8x80xf32>
    %301 = arith.addf %300, %4 : vector<8x80xf32>
    %cst_86 = arith.constant 5.000000e-01 : f32
    %302 = vector.broadcast %cst_86 : f32 to vector<8x80xf32>
    %303 = arith.mulf %302, %301 : vector<8x80xf32>
    %304 = math.tanh %303 : vector<8x80xf32>
    %cst_87 = arith.constant 5.000000e-01 : f32
    %305 = vector.broadcast %cst_87 : f32 to vector<8x80xf32>
    %306 = arith.mulf %305, %304 : vector<8x80xf32>
    %cst_88 = arith.constant 5.000000e-01 : f32
    %307 = vector.broadcast %cst_88 : f32 to vector<8x80xf32>
    %308 = arith.addf %306, %307 : vector<8x80xf32>
    %309 = math.tanh %301 : vector<8x80xf32>
    %310 = vector.extract_strided_slice %308 {offsets = [0, 0], sizes = [8, 20], strides = [1, 1]} : vector<8x80xf32> to vector<8x20xf32>
    %311 = vector.extract_strided_slice %308 {offsets = [0, 20], sizes = [8, 20], strides = [1, 1]} : vector<8x80xf32> to vector<8x20xf32>
    %312 = vector.extract_strided_slice %309 {offsets = [0, 40], sizes = [8, 20], strides = [1, 1]} : vector<8x80xf32> to vector<8x20xf32>
    %313 = vector.extract_strided_slice %308 {offsets = [0, 60], sizes = [8, 20], strides = [1, 1]} : vector<8x80xf32> to vector<8x20xf32>
    %314 = arith.mulf %311, %272 : vector<8x20xf32>
    %315 = arith.mulf %310, %312 : vector<8x20xf32>
    %316 = arith.addf %314, %315 : vector<8x20xf32>
    %317 = math.tanh %316 : vector<8x20xf32>
    %318 = arith.mulf %313, %317 : vector<8x20xf32>
    %319 = arith.index_cast %277 : i32 to index
    %c0_89 = arith.constant 0 : index
    %320 = vector.load %arg10[%319, %c0_89] : memref<160x20xf32, #tpu.memory_space<vmem>>, vector<8x20xf32>
    tpu.vector_store %arg10[%319, %c0_89], %318 {strides = array<i32>} : memref<160x20xf32, #tpu.memory_space<vmem>>, vector<8x20xf32>,
    %c7_i32 = arith.constant 7 : i32
    %c8_i32_90 = arith.constant 8 : i32
    %321 = arith.muli %c7_i32, %c8_i32_90 : i32
    %322 = arith.index_cast %321 : i32 to index
    %c0_91 = arith.constant 0 : index
    %323 = vector.load %arg9[%322, %c0_91] : memref<160x80xf32, #tpu.memory_space<vmem>>, vector<8x80xf32>
    %cst_92 = arith.constant dense<0.000000e+00> : vector<8x80xf32>
    %324 = tpu.matmul %298, %0, %cst_92 {dimension_numbers = #tpu.dot_dimension_numbers<[1], [0], [0], [1], [0, 0, 1, 1], [], []>} : vector<8x20xf32>, vector<20x80xf32>, vector<8x80xf32> -> vector<8x80xf32>
    %325 = arith.addf %323, %324 : vector<8x80xf32>
    %cst_93 = arith.constant 5.000000e-01 : f32
    %326 = vector.broadcast %cst_93 : f32 to vector<8x80xf32>
    %327 = arith.mulf %326, %325 : vector<8x80xf32>
    %328 = math.tanh %327 : vector<8x80xf32>
    %cst_94 = arith.constant 5.000000e-01 : f32
    %329 = vector.broadcast %cst_94 : f32 to vector<8x80xf32>
    %330 = arith.mulf %329, %328 : vector<8x80xf32>
    %cst_95 = arith.constant 5.000000e-01 : f32
    %331 = vector.broadcast %cst_95 : f32 to vector<8x80xf32>
    %332 = arith.addf %330, %331 : vector<8x80xf32>
    %333 = math.tanh %325 : vector<8x80xf32>
    %334 = vector.extract_strided_slice %332 {offsets = [0, 0], sizes = [8, 20], strides = [1, 1]} : vector<8x80xf32> to vector<8x20xf32>
    %335 = vector.extract_strided_slice %332 {offsets = [0, 20], sizes = [8, 20], strides = [1, 1]} : vector<8x80xf32> to vector<8x20xf32>
    %336 = vector.extract_strided_slice %333 {offsets = [0, 40], sizes = [8, 20], strides = [1, 1]} : vector<8x80xf32> to vector<8x20xf32>
    %337 = vector.extract_strided_slice %332 {offsets = [0, 60], sizes = [8, 20], strides = [1, 1]} : vector<8x80xf32> to vector<8x20xf32>
    %338 = arith.mulf %335, %296 : vector<8x20xf32>
    %339 = arith.mulf %334, %336 : vector<8x20xf32>
    %340 = arith.addf %338, %339 : vector<8x20xf32>
    %341 = math.tanh %340 : vector<8x20xf32>
    %342 = arith.mulf %337, %341 : vector<8x20xf32>
    %343 = tpu.concatenate %342, %318 in 1 : vector<8x20xf32>, vector<8x20xf32> -> vector<8x40xf32>
    %cst_96 = arith.constant dense<0.000000e+00> : vector<8x80xf32>
    %344 = tpu.matmul %343, %1, %cst_96 {dimension_numbers = #tpu.dot_dimension_numbers<[1], [0], [0], [1], [0, 0, 1, 1], [], []>} : vector<8x40xf32>, vector<40x80xf32>, vector<8x80xf32> -> vector<8x80xf32>
    %345 = arith.addf %344, %4 : vector<8x80xf32>
    %cst_97 = arith.constant 5.000000e-01 : f32
    %346 = vector.broadcast %cst_97 : f32 to vector<8x80xf32>
    %347 = arith.mulf %346, %345 : vector<8x80xf32>
    %348 = math.tanh %347 : vector<8x80xf32>
    %cst_98 = arith.constant 5.000000e-01 : f32
    %349 = vector.broadcast %cst_98 : f32 to vector<8x80xf32>
    %350 = arith.mulf %349, %348 : vector<8x80xf32>
    %cst_99 = arith.constant 5.000000e-01 : f32
    %351 = vector.broadcast %cst_99 : f32 to vector<8x80xf32>
    %352 = arith.addf %350, %351 : vector<8x80xf32>
    %353 = math.tanh %345 : vector<8x80xf32>
    %354 = vector.extract_strided_slice %352 {offsets = [0, 0], sizes = [8, 20], strides = [1, 1]} : vector<8x80xf32> to vector<8x20xf32>
    %355 = vector.extract_strided_slice %352 {offsets = [0, 20], sizes = [8, 20], strides = [1, 1]} : vector<8x80xf32> to vector<8x20xf32>
    %356 = vector.extract_strided_slice %353 {offsets = [0, 40], sizes = [8, 20], strides = [1, 1]} : vector<8x80xf32> to vector<8x20xf32>
    %357 = vector.extract_strided_slice %352 {offsets = [0, 60], sizes = [8, 20], strides = [1, 1]} : vector<8x80xf32> to vector<8x20xf32>
    %358 = arith.mulf %355, %316 : vector<8x20xf32>
    %359 = arith.mulf %354, %356 : vector<8x20xf32>
    %360 = arith.addf %358, %359 : vector<8x20xf32>
    %361 = math.tanh %360 : vector<8x20xf32>
    %362 = arith.mulf %357, %361 : vector<8x20xf32>
    %363 = arith.index_cast %321 : i32 to index
    %c0_100 = arith.constant 0 : index
    %364 = vector.load %arg10[%363, %c0_100] : memref<160x20xf32, #tpu.memory_space<vmem>>, vector<8x20xf32>
    tpu.vector_store %arg10[%363, %c0_100], %362 {strides = array<i32>} : memref<160x20xf32, #tpu.memory_space<vmem>>, vector<8x20xf32>,
    %c8_i32_101 = arith.constant 8 : i32
    %c8_i32_102 = arith.constant 8 : i32
    %365 = arith.muli %c8_i32_101, %c8_i32_102 : i32
    %366 = arith.index_cast %365 : i32 to index
    %c0_103 = arith.constant 0 : index
    %367 = vector.load %arg9[%366, %c0_103] : memref<160x80xf32, #tpu.memory_space<vmem>>, vector<8x80xf32>
    %cst_104 = arith.constant dense<0.000000e+00> : vector<8x80xf32>
    %368 = tpu.matmul %342, %0, %cst_104 {dimension_numbers = #tpu.dot_dimension_numbers<[1], [0], [0], [1], [0, 0, 1, 1], [], []>} : vector<8x20xf32>, vector<20x80xf32>, vector<8x80xf32> -> vector<8x80xf32>
    %369 = arith.addf %367, %368 : vector<8x80xf32>
    %cst_105 = arith.constant 5.000000e-01 : f32
    %370 = vector.broadcast %cst_105 : f32 to vector<8x80xf32>
    %371 = arith.mulf %370, %369 : vector<8x80xf32>
    %372 = math.tanh %371 : vector<8x80xf32>
    %cst_106 = arith.constant 5.000000e-01 : f32
    %373 = vector.broadcast %cst_106 : f32 to vector<8x80xf32>
    %374 = arith.mulf %373, %372 : vector<8x80xf32>
    %cst_107 = arith.constant 5.000000e-01 : f32
    %375 = vector.broadcast %cst_107 : f32 to vector<8x80xf32>
    %376 = arith.addf %374, %375 : vector<8x80xf32>
    %377 = math.tanh %369 : vector<8x80xf32>
    %378 = vector.extract_strided_slice %376 {offsets = [0, 0], sizes = [8, 20], strides = [1, 1]} : vector<8x80xf32> to vector<8x20xf32>
    %379 = vector.extract_strided_slice %376 {offsets = [0, 20], sizes = [8, 20], strides = [1, 1]} : vector<8x80xf32> to vector<8x20xf32>
    %380 = vector.extract_strided_slice %377 {offsets = [0, 40], sizes = [8, 20], strides = [1, 1]} : vector<8x80xf32> to vector<8x20xf32>
    %381 = vector.extract_strided_slice %376 {offsets = [0, 60], sizes = [8, 20], strides = [1, 1]} : vector<8x80xf32> to vector<8x20xf32>
    %382 = arith.mulf %379, %340 : vector<8x20xf32>
    %383 = arith.mulf %378, %380 : vector<8x20xf32>
    %384 = arith.addf %382, %383 : vector<8x20xf32>
    %385 = math.tanh %384 : vector<8x20xf32>
    %386 = arith.mulf %381, %385 : vector<8x20xf32>
    %387 = tpu.concatenate %386, %362 in 1 : vector<8x20xf32>, vector<8x20xf32> -> vector<8x40xf32>
    %cst_108 = arith.constant dense<0.000000e+00> : vector<8x80xf32>
    %388 = tpu.matmul %387, %1, %cst_108 {dimension_numbers = #tpu.dot_dimension_numbers<[1], [0], [0], [1], [0, 0, 1, 1], [], []>} : vector<8x40xf32>, vector<40x80xf32>, vector<8x80xf32> -> vector<8x80xf32>
    %389 = arith.addf %388, %4 : vector<8x80xf32>
    %cst_109 = arith.constant 5.000000e-01 : f32
    %390 = vector.broadcast %cst_109 : f32 to vector<8x80xf32>
    %391 = arith.mulf %390, %389 : vector<8x80xf32>
    %392 = math.tanh %391 : vector<8x80xf32>
    %cst_110 = arith.constant 5.000000e-01 : f32
    %393 = vector.broadcast %cst_110 : f32 to vector<8x80xf32>
    %394 = arith.mulf %393, %392 : vector<8x80xf32>
    %cst_111 = arith.constant 5.000000e-01 : f32
    %395 = vector.broadcast %cst_111 : f32 to vector<8x80xf32>
    %396 = arith.addf %394, %395 : vector<8x80xf32>
    %397 = math.tanh %389 : vector<8x80xf32>
    %398 = vector.extract_strided_slice %396 {offsets = [0, 0], sizes = [8, 20], strides = [1, 1]} : vector<8x80xf32> to vector<8x20xf32>
    %399 = vector.extract_strided_slice %396 {offsets = [0, 20], sizes = [8, 20], strides = [1, 1]} : vector<8x80xf32> to vector<8x20xf32>
    %400 = vector.extract_strided_slice %397 {offsets = [0, 40], sizes = [8, 20], strides = [1, 1]} : vector<8x80xf32> to vector<8x20xf32>
    %401 = vector.extract_strided_slice %396 {offsets = [0, 60], sizes = [8, 20], strides = [1, 1]} : vector<8x80xf32> to vector<8x20xf32>
    %402 = arith.mulf %399, %360 : vector<8x20xf32>
    %403 = arith.mulf %398, %400 : vector<8x20xf32>
    %404 = arith.addf %402, %403 : vector<8x20xf32>
    %405 = math.tanh %404 : vector<8x20xf32>
    %406 = arith.mulf %401, %405 : vector<8x20xf32>
    %407 = arith.index_cast %365 : i32 to index
    %c0_112 = arith.constant 0 : index
    %408 = vector.load %arg10[%407, %c0_112] : memref<160x20xf32, #tpu.memory_space<vmem>>, vector<8x20xf32>
    tpu.vector_store %arg10[%407, %c0_112], %406 {strides = array<i32>} : memref<160x20xf32, #tpu.memory_space<vmem>>, vector<8x20xf32>,
    %c9_i32 = arith.constant 9 : i32
    %c8_i32_113 = arith.constant 8 : i32
    %409 = arith.muli %c9_i32, %c8_i32_113 : i32
    %410 = arith.index_cast %409 : i32 to index
    %c0_114 = arith.constant 0 : index
    %411 = vector.load %arg9[%410, %c0_114] : memref<160x80xf32, #tpu.memory_space<vmem>>, vector<8x80xf32>
    %cst_115 = arith.constant dense<0.000000e+00> : vector<8x80xf32>
    %412 = tpu.matmul %386, %0, %cst_115 {dimension_numbers = #tpu.dot_dimension_numbers<[1], [0], [0], [1], [0, 0, 1, 1], [], []>} : vector<8x20xf32>, vector<20x80xf32>, vector<8x80xf32> -> vector<8x80xf32>
    %413 = arith.addf %411, %412 : vector<8x80xf32>
    %cst_116 = arith.constant 5.000000e-01 : f32
    %414 = vector.broadcast %cst_116 : f32 to vector<8x80xf32>
    %415 = arith.mulf %414, %413 : vector<8x80xf32>
    %416 = math.tanh %415 : vector<8x80xf32>
    %cst_117 = arith.constant 5.000000e-01 : f32
    %417 = vector.broadcast %cst_117 : f32 to vector<8x80xf32>
    %418 = arith.mulf %417, %416 : vector<8x80xf32>
    %cst_118 = arith.constant 5.000000e-01 : f32
    %419 = vector.broadcast %cst_118 : f32 to vector<8x80xf32>
    %420 = arith.addf %418, %419 : vector<8x80xf32>
    %421 = math.tanh %413 : vector<8x80xf32>
    %422 = vector.extract_strided_slice %420 {offsets = [0, 0], sizes = [8, 20], strides = [1, 1]} : vector<8x80xf32> to vector<8x20xf32>
    %423 = vector.extract_strided_slice %420 {offsets = [0, 20], sizes = [8, 20], strides = [1, 1]} : vector<8x80xf32> to vector<8x20xf32>
    %424 = vector.extract_strided_slice %421 {offsets = [0, 40], sizes = [8, 20], strides = [1, 1]} : vector<8x80xf32> to vector<8x20xf32>
    %425 = vector.extract_strided_slice %420 {offsets = [0, 60], sizes = [8, 20], strides = [1, 1]} : vector<8x80xf32> to vector<8x20xf32>
    %426 = arith.mulf %423, %384 : vector<8x20xf32>
    %427 = arith.mulf %422, %424 : vector<8x20xf32>
    %428 = arith.addf %426, %427 : vector<8x20xf32>
    %429 = math.tanh %428 : vector<8x20xf32>
    %430 = arith.mulf %425, %429 : vector<8x20xf32>
    %431 = tpu.concatenate %430, %406 in 1 : vector<8x20xf32>, vector<8x20xf32> -> vector<8x40xf32>
    %cst_119 = arith.constant dense<0.000000e+00> : vector<8x80xf32>
    %432 = tpu.matmul %431, %1, %cst_119 {dimension_numbers = #tpu.dot_dimension_numbers<[1], [0], [0], [1], [0, 0, 1, 1], [], []>} : vector<8x40xf32>, vector<40x80xf32>, vector<8x80xf32> -> vector<8x80xf32>
    %433 = arith.addf %432, %4 : vector<8x80xf32>
    %cst_120 = arith.constant 5.000000e-01 : f32
    %434 = vector.broadcast %cst_120 : f32 to vector<8x80xf32>
    %435 = arith.mulf %434, %433 : vector<8x80xf32>
    %436 = math.tanh %435 : vector<8x80xf32>
    %cst_121 = arith.constant 5.000000e-01 : f32
    %437 = vector.broadcast %cst_121 : f32 to vector<8x80xf32>
    %438 = arith.mulf %437, %436 : vector<8x80xf32>
    %cst_122 = arith.constant 5.000000e-01 : f32
    %439 = vector.broadcast %cst_122 : f32 to vector<8x80xf32>
    %440 = arith.addf %438, %439 : vector<8x80xf32>
    %441 = math.tanh %433 : vector<8x80xf32>
    %442 = vector.extract_strided_slice %440 {offsets = [0, 0], sizes = [8, 20], strides = [1, 1]} : vector<8x80xf32> to vector<8x20xf32>
    %443 = vector.extract_strided_slice %440 {offsets = [0, 20], sizes = [8, 20], strides = [1, 1]} : vector<8x80xf32> to vector<8x20xf32>
    %444 = vector.extract_strided_slice %441 {offsets = [0, 40], sizes = [8, 20], strides = [1, 1]} : vector<8x80xf32> to vector<8x20xf32>
    %445 = vector.extract_strided_slice %440 {offsets = [0, 60], sizes = [8, 20], strides = [1, 1]} : vector<8x80xf32> to vector<8x20xf32>
    %446 = arith.mulf %443, %404 : vector<8x20xf32>
    %447 = arith.mulf %442, %444 : vector<8x20xf32>
    %448 = arith.addf %446, %447 : vector<8x20xf32>
    %449 = math.tanh %448 : vector<8x20xf32>
    %450 = arith.mulf %445, %449 : vector<8x20xf32>
    %451 = arith.index_cast %409 : i32 to index
    %c0_123 = arith.constant 0 : index
    %452 = vector.load %arg10[%451, %c0_123] : memref<160x20xf32, #tpu.memory_space<vmem>>, vector<8x20xf32>
    tpu.vector_store %arg10[%451, %c0_123], %450 {strides = array<i32>} : memref<160x20xf32, #tpu.memory_space<vmem>>, vector<8x20xf32>,
    %c10_i32 = arith.constant 10 : i32
    %c8_i32_124 = arith.constant 8 : i32
    %453 = arith.muli %c10_i32, %c8_i32_124 : i32
    %454 = arith.index_cast %453 : i32 to index
    %c0_125 = arith.constant 0 : index
    %455 = vector.load %arg9[%454, %c0_125] : memref<160x80xf32, #tpu.memory_space<vmem>>, vector<8x80xf32>
    %cst_126 = arith.constant dense<0.000000e+00> : vector<8x80xf32>
    %456 = tpu.matmul %430, %0, %cst_126 {dimension_numbers = #tpu.dot_dimension_numbers<[1], [0], [0], [1], [0, 0, 1, 1], [], []>} : vector<8x20xf32>, vector<20x80xf32>, vector<8x80xf32> -> vector<8x80xf32>
    %457 = arith.addf %455, %456 : vector<8x80xf32>
    %cst_127 = arith.constant 5.000000e-01 : f32
    %458 = vector.broadcast %cst_127 : f32 to vector<8x80xf32>
    %459 = arith.mulf %458, %457 : vector<8x80xf32>
    %460 = math.tanh %459 : vector<8x80xf32>
    %cst_128 = arith.constant 5.000000e-01 : f32
    %461 = vector.broadcast %cst_128 : f32 to vector<8x80xf32>
    %462 = arith.mulf %461, %460 : vector<8x80xf32>
    %cst_129 = arith.constant 5.000000e-01 : f32
    %463 = vector.broadcast %cst_129 : f32 to vector<8x80xf32>
    %464 = arith.addf %462, %463 : vector<8x80xf32>
    %465 = math.tanh %457 : vector<8x80xf32>
    %466 = vector.extract_strided_slice %464 {offsets = [0, 0], sizes = [8, 20], strides = [1, 1]} : vector<8x80xf32> to vector<8x20xf32>
    %467 = vector.extract_strided_slice %464 {offsets = [0, 20], sizes = [8, 20], strides = [1, 1]} : vector<8x80xf32> to vector<8x20xf32>
    %468 = vector.extract_strided_slice %465 {offsets = [0, 40], sizes = [8, 20], strides = [1, 1]} : vector<8x80xf32> to vector<8x20xf32>
    %469 = vector.extract_strided_slice %464 {offsets = [0, 60], sizes = [8, 20], strides = [1, 1]} : vector<8x80xf32> to vector<8x20xf32>
    %470 = arith.mulf %467, %428 : vector<8x20xf32>
    %471 = arith.mulf %466, %468 : vector<8x20xf32>
    %472 = arith.addf %470, %471 : vector<8x20xf32>
    %473 = math.tanh %472 : vector<8x20xf32>
    %474 = arith.mulf %469, %473 : vector<8x20xf32>
    %475 = tpu.concatenate %474, %450 in 1 : vector<8x20xf32>, vector<8x20xf32> -> vector<8x40xf32>
    %cst_130 = arith.constant dense<0.000000e+00> : vector<8x80xf32>
    %476 = tpu.matmul %475, %1, %cst_130 {dimension_numbers = #tpu.dot_dimension_numbers<[1], [0], [0], [1], [0, 0, 1, 1], [], []>} : vector<8x40xf32>, vector<40x80xf32>, vector<8x80xf32> -> vector<8x80xf32>
    %477 = arith.addf %476, %4 : vector<8x80xf32>
    %cst_131 = arith.constant 5.000000e-01 : f32
    %478 = vector.broadcast %cst_131 : f32 to vector<8x80xf32>
    %479 = arith.mulf %478, %477 : vector<8x80xf32>
    %480 = math.tanh %479 : vector<8x80xf32>
    %cst_132 = arith.constant 5.000000e-01 : f32
    %481 = vector.broadcast %cst_132 : f32 to vector<8x80xf32>
    %482 = arith.mulf %481, %480 : vector<8x80xf32>
    %cst_133 = arith.constant 5.000000e-01 : f32
    %483 = vector.broadcast %cst_133 : f32 to vector<8x80xf32>
    %484 = arith.addf %482, %483 : vector<8x80xf32>
    %485 = math.tanh %477 : vector<8x80xf32>
    %486 = vector.extract_strided_slice %484 {offsets = [0, 0], sizes = [8, 20], strides = [1, 1]} : vector<8x80xf32> to vector<8x20xf32>
    %487 = vector.extract_strided_slice %484 {offsets = [0, 20], sizes = [8, 20], strides = [1, 1]} : vector<8x80xf32> to vector<8x20xf32>
    %488 = vector.extract_strided_slice %485 {offsets = [0, 40], sizes = [8, 20], strides = [1, 1]} : vector<8x80xf32> to vector<8x20xf32>
    %489 = vector.extract_strided_slice %484 {offsets = [0, 60], sizes = [8, 20], strides = [1, 1]} : vector<8x80xf32> to vector<8x20xf32>
    %490 = arith.mulf %487, %448 : vector<8x20xf32>
    %491 = arith.mulf %486, %488 : vector<8x20xf32>
    %492 = arith.addf %490, %491 : vector<8x20xf32>
    %493 = math.tanh %492 : vector<8x20xf32>
    %494 = arith.mulf %489, %493 : vector<8x20xf32>
    %495 = arith.index_cast %453 : i32 to index
    %c0_134 = arith.constant 0 : index
    %496 = vector.load %arg10[%495, %c0_134] : memref<160x20xf32, #tpu.memory_space<vmem>>, vector<8x20xf32>
    tpu.vector_store %arg10[%495, %c0_134], %494 {strides = array<i32>} : memref<160x20xf32, #tpu.memory_space<vmem>>, vector<8x20xf32>,
    %c11_i32 = arith.constant 11 : i32
    %c8_i32_135 = arith.constant 8 : i32
    %497 = arith.muli %c11_i32, %c8_i32_135 : i32
    %498 = arith.index_cast %497 : i32 to index
    %c0_136 = arith.constant 0 : index
    %499 = vector.load %arg9[%498, %c0_136] : memref<160x80xf32, #tpu.memory_space<vmem>>, vector<8x80xf32>
    %cst_137 = arith.constant dense<0.000000e+00> : vector<8x80xf32>
    %500 = tpu.matmul %474, %0, %cst_137 {dimension_numbers = #tpu.dot_dimension_numbers<[1], [0], [0], [1], [0, 0, 1, 1], [], []>} : vector<8x20xf32>, vector<20x80xf32>, vector<8x80xf32> -> vector<8x80xf32>
    %501 = arith.addf %499, %500 : vector<8x80xf32>
    %cst_138 = arith.constant 5.000000e-01 : f32
    %502 = vector.broadcast %cst_138 : f32 to vector<8x80xf32>
    %503 = arith.mulf %502, %501 : vector<8x80xf32>
    %504 = math.tanh %503 : vector<8x80xf32>
    %cst_139 = arith.constant 5.000000e-01 : f32
    %505 = vector.broadcast %cst_139 : f32 to vector<8x80xf32>
    %506 = arith.mulf %505, %504 : vector<8x80xf32>
    %cst_140 = arith.constant 5.000000e-01 : f32
    %507 = vector.broadcast %cst_140 : f32 to vector<8x80xf32>
    %508 = arith.addf %506, %507 : vector<8x80xf32>
    %509 = math.tanh %501 : vector<8x80xf32>
    %510 = vector.extract_strided_slice %508 {offsets = [0, 0], sizes = [8, 20], strides = [1, 1]} : vector<8x80xf32> to vector<8x20xf32>
    %511 = vector.extract_strided_slice %508 {offsets = [0, 20], sizes = [8, 20], strides = [1, 1]} : vector<8x80xf32> to vector<8x20xf32>
    %512 = vector.extract_strided_slice %509 {offsets = [0, 40], sizes = [8, 20], strides = [1, 1]} : vector<8x80xf32> to vector<8x20xf32>
    %513 = vector.extract_strided_slice %508 {offsets = [0, 60], sizes = [8, 20], strides = [1, 1]} : vector<8x80xf32> to vector<8x20xf32>
    %514 = arith.mulf %511, %472 : vector<8x20xf32>
    %515 = arith.mulf %510, %512 : vector<8x20xf32>
    %516 = arith.addf %514, %515 : vector<8x20xf32>
    %517 = math.tanh %516 : vector<8x20xf32>
    %518 = arith.mulf %513, %517 : vector<8x20xf32>
    %519 = tpu.concatenate %518, %494 in 1 : vector<8x20xf32>, vector<8x20xf32> -> vector<8x40xf32>
    %cst_141 = arith.constant dense<0.000000e+00> : vector<8x80xf32>
    %520 = tpu.matmul %519, %1, %cst_141 {dimension_numbers = #tpu.dot_dimension_numbers<[1], [0], [0], [1], [0, 0, 1, 1], [], []>} : vector<8x40xf32>, vector<40x80xf32>, vector<8x80xf32> -> vector<8x80xf32>
    %521 = arith.addf %520, %4 : vector<8x80xf32>
    %cst_142 = arith.constant 5.000000e-01 : f32
    %522 = vector.broadcast %cst_142 : f32 to vector<8x80xf32>
    %523 = arith.mulf %522, %521 : vector<8x80xf32>
    %524 = math.tanh %523 : vector<8x80xf32>
    %cst_143 = arith.constant 5.000000e-01 : f32
    %525 = vector.broadcast %cst_143 : f32 to vector<8x80xf32>
    %526 = arith.mulf %525, %524 : vector<8x80xf32>
    %cst_144 = arith.constant 5.000000e-01 : f32
    %527 = vector.broadcast %cst_144 : f32 to vector<8x80xf32>
    %528 = arith.addf %526, %527 : vector<8x80xf32>
    %529 = math.tanh %521 : vector<8x80xf32>
    %530 = vector.extract_strided_slice %528 {offsets = [0, 0], sizes = [8, 20], strides = [1, 1]} : vector<8x80xf32> to vector<8x20xf32>
    %531 = vector.extract_strided_slice %528 {offsets = [0, 20], sizes = [8, 20], strides = [1, 1]} : vector<8x80xf32> to vector<8x20xf32>
    %532 = vector.extract_strided_slice %529 {offsets = [0, 40], sizes = [8, 20], strides = [1, 1]} : vector<8x80xf32> to vector<8x20xf32>
    %533 = vector.extract_strided_slice %528 {offsets = [0, 60], sizes = [8, 20], strides = [1, 1]} : vector<8x80xf32> to vector<8x20xf32>
    %534 = arith.mulf %531, %492 : vector<8x20xf32>
    %535 = arith.mulf %530, %532 : vector<8x20xf32>
    %536 = arith.addf %534, %535 : vector<8x20xf32>
    %537 = math.tanh %536 : vector<8x20xf32>
    %538 = arith.mulf %533, %537 : vector<8x20xf32>
    %539 = arith.index_cast %497 : i32 to index
    %c0_145 = arith.constant 0 : index
    %540 = vector.load %arg10[%539, %c0_145] : memref<160x20xf32, #tpu.memory_space<vmem>>, vector<8x20xf32>
    tpu.vector_store %arg10[%539, %c0_145], %538 {strides = array<i32>} : memref<160x20xf32, #tpu.memory_space<vmem>>, vector<8x20xf32>,
    %c12_i32 = arith.constant 12 : i32
    %c8_i32_146 = arith.constant 8 : i32
    %541 = arith.muli %c12_i32, %c8_i32_146 : i32
    %542 = arith.index_cast %541 : i32 to index
    %c0_147 = arith.constant 0 : index
    %543 = vector.load %arg9[%542, %c0_147] : memref<160x80xf32, #tpu.memory_space<vmem>>, vector<8x80xf32>
    %cst_148 = arith.constant dense<0.000000e+00> : vector<8x80xf32>
    %544 = tpu.matmul %518, %0, %cst_148 {dimension_numbers = #tpu.dot_dimension_numbers<[1], [0], [0], [1], [0, 0, 1, 1], [], []>} : vector<8x20xf32>, vector<20x80xf32>, vector<8x80xf32> -> vector<8x80xf32>
    %545 = arith.addf %543, %544 : vector<8x80xf32>
    %cst_149 = arith.constant 5.000000e-01 : f32
    %546 = vector.broadcast %cst_149 : f32 to vector<8x80xf32>
    %547 = arith.mulf %546, %545 : vector<8x80xf32>
    %548 = math.tanh %547 : vector<8x80xf32>
    %cst_150 = arith.constant 5.000000e-01 : f32
    %549 = vector.broadcast %cst_150 : f32 to vector<8x80xf32>
    %550 = arith.mulf %549, %548 : vector<8x80xf32>
    %cst_151 = arith.constant 5.000000e-01 : f32
    %551 = vector.broadcast %cst_151 : f32 to vector<8x80xf32>
    %552 = arith.addf %550, %551 : vector<8x80xf32>
    %553 = math.tanh %545 : vector<8x80xf32>
    %554 = vector.extract_strided_slice %552 {offsets = [0, 0], sizes = [8, 20], strides = [1, 1]} : vector<8x80xf32> to vector<8x20xf32>
    %555 = vector.extract_strided_slice %552 {offsets = [0, 20], sizes = [8, 20], strides = [1, 1]} : vector<8x80xf32> to vector<8x20xf32>
    %556 = vector.extract_strided_slice %553 {offsets = [0, 40], sizes = [8, 20], strides = [1, 1]} : vector<8x80xf32> to vector<8x20xf32>
    %557 = vector.extract_strided_slice %552 {offsets = [0, 60], sizes = [8, 20], strides = [1, 1]} : vector<8x80xf32> to vector<8x20xf32>
    %558 = arith.mulf %555, %516 : vector<8x20xf32>
    %559 = arith.mulf %554, %556 : vector<8x20xf32>
    %560 = arith.addf %558, %559 : vector<8x20xf32>
    %561 = math.tanh %560 : vector<8x20xf32>
    %562 = arith.mulf %557, %561 : vector<8x20xf32>
    %563 = tpu.concatenate %562, %538 in 1 : vector<8x20xf32>, vector<8x20xf32> -> vector<8x40xf32>
    %cst_152 = arith.constant dense<0.000000e+00> : vector<8x80xf32>
    %564 = tpu.matmul %563, %1, %cst_152 {dimension_numbers = #tpu.dot_dimension_numbers<[1], [0], [0], [1], [0, 0, 1, 1], [], []>} : vector<8x40xf32>, vector<40x80xf32>, vector<8x80xf32> -> vector<8x80xf32>
    %565 = arith.addf %564, %4 : vector<8x80xf32>
    %cst_153 = arith.constant 5.000000e-01 : f32
    %566 = vector.broadcast %cst_153 : f32 to vector<8x80xf32>
    %567 = arith.mulf %566, %565 : vector<8x80xf32>
    %568 = math.tanh %567 : vector<8x80xf32>
    %cst_154 = arith.constant 5.000000e-01 : f32
    %569 = vector.broadcast %cst_154 : f32 to vector<8x80xf32>
    %570 = arith.mulf %569, %568 : vector<8x80xf32>
    %cst_155 = arith.constant 5.000000e-01 : f32
    %571 = vector.broadcast %cst_155 : f32 to vector<8x80xf32>
    %572 = arith.addf %570, %571 : vector<8x80xf32>
    %573 = math.tanh %565 : vector<8x80xf32>
    %574 = vector.extract_strided_slice %572 {offsets = [0, 0], sizes = [8, 20], strides = [1, 1]} : vector<8x80xf32> to vector<8x20xf32>
    %575 = vector.extract_strided_slice %572 {offsets = [0, 20], sizes = [8, 20], strides = [1, 1]} : vector<8x80xf32> to vector<8x20xf32>
    %576 = vector.extract_strided_slice %573 {offsets = [0, 40], sizes = [8, 20], strides = [1, 1]} : vector<8x80xf32> to vector<8x20xf32>
    %577 = vector.extract_strided_slice %572 {offsets = [0, 60], sizes = [8, 20], strides = [1, 1]} : vector<8x80xf32> to vector<8x20xf32>
    %578 = arith.mulf %575, %536 : vector<8x20xf32>
    %579 = arith.mulf %574, %576 : vector<8x20xf32>
    %580 = arith.addf %578, %579 : vector<8x20xf32>
    %581 = math.tanh %580 : vector<8x20xf32>
    %582 = arith.mulf %577, %581 : vector<8x20xf32>
    %583 = arith.index_cast %541 : i32 to index
    %c0_156 = arith.constant 0 : index
    %584 = vector.load %arg10[%583, %c0_156] : memref<160x20xf32, #tpu.memory_space<vmem>>, vector<8x20xf32>
    tpu.vector_store %arg10[%583, %c0_156], %582 {strides = array<i32>} : memref<160x20xf32, #tpu.memory_space<vmem>>, vector<8x20xf32>,
    %c13_i32 = arith.constant 13 : i32
    %c8_i32_157 = arith.constant 8 : i32
    %585 = arith.muli %c13_i32, %c8_i32_157 : i32
    %586 = arith.index_cast %585 : i32 to index
    %c0_158 = arith.constant 0 : index
    %587 = vector.load %arg9[%586, %c0_158] : memref<160x80xf32, #tpu.memory_space<vmem>>, vector<8x80xf32>
    %cst_159 = arith.constant dense<0.000000e+00> : vector<8x80xf32>
    %588 = tpu.matmul %562, %0, %cst_159 {dimension_numbers = #tpu.dot_dimension_numbers<[1], [0], [0], [1], [0, 0, 1, 1], [], []>} : vector<8x20xf32>, vector<20x80xf32>, vector<8x80xf32> -> vector<8x80xf32>
    %589 = arith.addf %587, %588 : vector<8x80xf32>
    %cst_160 = arith.constant 5.000000e-01 : f32
    %590 = vector.broadcast %cst_160 : f32 to vector<8x80xf32>
    %591 = arith.mulf %590, %589 : vector<8x80xf32>
    %592 = math.tanh %591 : vector<8x80xf32>
    %cst_161 = arith.constant 5.000000e-01 : f32
    %593 = vector.broadcast %cst_161 : f32 to vector<8x80xf32>
    %594 = arith.mulf %593, %592 : vector<8x80xf32>
    %cst_162 = arith.constant 5.000000e-01 : f32
    %595 = vector.broadcast %cst_162 : f32 to vector<8x80xf32>
    %596 = arith.addf %594, %595 : vector<8x80xf32>
    %597 = math.tanh %589 : vector<8x80xf32>
    %598 = vector.extract_strided_slice %596 {offsets = [0, 0], sizes = [8, 20], strides = [1, 1]} : vector<8x80xf32> to vector<8x20xf32>
    %599 = vector.extract_strided_slice %596 {offsets = [0, 20], sizes = [8, 20], strides = [1, 1]} : vector<8x80xf32> to vector<8x20xf32>
    %600 = vector.extract_strided_slice %597 {offsets = [0, 40], sizes = [8, 20], strides = [1, 1]} : vector<8x80xf32> to vector<8x20xf32>
    %601 = vector.extract_strided_slice %596 {offsets = [0, 60], sizes = [8, 20], strides = [1, 1]} : vector<8x80xf32> to vector<8x20xf32>
    %602 = arith.mulf %599, %560 : vector<8x20xf32>
    %603 = arith.mulf %598, %600 : vector<8x20xf32>
    %604 = arith.addf %602, %603 : vector<8x20xf32>
    %605 = math.tanh %604 : vector<8x20xf32>
    %606 = arith.mulf %601, %605 : vector<8x20xf32>
    %607 = tpu.concatenate %606, %582 in 1 : vector<8x20xf32>, vector<8x20xf32> -> vector<8x40xf32>
    %cst_163 = arith.constant dense<0.000000e+00> : vector<8x80xf32>
    %608 = tpu.matmul %607, %1, %cst_163 {dimension_numbers = #tpu.dot_dimension_numbers<[1], [0], [0], [1], [0, 0, 1, 1], [], []>} : vector<8x40xf32>, vector<40x80xf32>, vector<8x80xf32> -> vector<8x80xf32>
    %609 = arith.addf %608, %4 : vector<8x80xf32>
    %cst_164 = arith.constant 5.000000e-01 : f32
    %610 = vector.broadcast %cst_164 : f32 to vector<8x80xf32>
    %611 = arith.mulf %610, %609 : vector<8x80xf32>
    %612 = math.tanh %611 : vector<8x80xf32>
    %cst_165 = arith.constant 5.000000e-01 : f32
    %613 = vector.broadcast %cst_165 : f32 to vector<8x80xf32>
    %614 = arith.mulf %613, %612 : vector<8x80xf32>
    %cst_166 = arith.constant 5.000000e-01 : f32
    %615 = vector.broadcast %cst_166 : f32 to vector<8x80xf32>
    %616 = arith.addf %614, %615 : vector<8x80xf32>
    %617 = math.tanh %609 : vector<8x80xf32>
    %618 = vector.extract_strided_slice %616 {offsets = [0, 0], sizes = [8, 20], strides = [1, 1]} : vector<8x80xf32> to vector<8x20xf32>
    %619 = vector.extract_strided_slice %616 {offsets = [0, 20], sizes = [8, 20], strides = [1, 1]} : vector<8x80xf32> to vector<8x20xf32>
    %620 = vector.extract_strided_slice %617 {offsets = [0, 40], sizes = [8, 20], strides = [1, 1]} : vector<8x80xf32> to vector<8x20xf32>
    %621 = vector.extract_strided_slice %616 {offsets = [0, 60], sizes = [8, 20], strides = [1, 1]} : vector<8x80xf32> to vector<8x20xf32>
    %622 = arith.mulf %619, %580 : vector<8x20xf32>
    %623 = arith.mulf %618, %620 : vector<8x20xf32>
    %624 = arith.addf %622, %623 : vector<8x20xf32>
    %625 = math.tanh %624 : vector<8x20xf32>
    %626 = arith.mulf %621, %625 : vector<8x20xf32>
    %627 = arith.index_cast %585 : i32 to index
    %c0_167 = arith.constant 0 : index
    %628 = vector.load %arg10[%627, %c0_167] : memref<160x20xf32, #tpu.memory_space<vmem>>, vector<8x20xf32>
    tpu.vector_store %arg10[%627, %c0_167], %626 {strides = array<i32>} : memref<160x20xf32, #tpu.memory_space<vmem>>, vector<8x20xf32>,
    %c14_i32 = arith.constant 14 : i32
    %c8_i32_168 = arith.constant 8 : i32
    %629 = arith.muli %c14_i32, %c8_i32_168 : i32
    %630 = arith.index_cast %629 : i32 to index
    %c0_169 = arith.constant 0 : index
    %631 = vector.load %arg9[%630, %c0_169] : memref<160x80xf32, #tpu.memory_space<vmem>>, vector<8x80xf32>
    %cst_170 = arith.constant dense<0.000000e+00> : vector<8x80xf32>
    %632 = tpu.matmul %606, %0, %cst_170 {dimension_numbers = #tpu.dot_dimension_numbers<[1], [0], [0], [1], [0, 0, 1, 1], [], []>} : vector<8x20xf32>, vector<20x80xf32>, vector<8x80xf32> -> vector<8x80xf32>
    %633 = arith.addf %631, %632 : vector<8x80xf32>
    %cst_171 = arith.constant 5.000000e-01 : f32
    %634 = vector.broadcast %cst_171 : f32 to vector<8x80xf32>
    %635 = arith.mulf %634, %633 : vector<8x80xf32>
    %636 = math.tanh %635 : vector<8x80xf32>
    %cst_172 = arith.constant 5.000000e-01 : f32
    %637 = vector.broadcast %cst_172 : f32 to vector<8x80xf32>
    %638 = arith.mulf %637, %636 : vector<8x80xf32>
    %cst_173 = arith.constant 5.000000e-01 : f32
    %639 = vector.broadcast %cst_173 : f32 to vector<8x80xf32>
    %640 = arith.addf %638, %639 : vector<8x80xf32>
    %641 = math.tanh %633 : vector<8x80xf32>
    %642 = vector.extract_strided_slice %640 {offsets = [0, 0], sizes = [8, 20], strides = [1, 1]} : vector<8x80xf32> to vector<8x20xf32>
    %643 = vector.extract_strided_slice %640 {offsets = [0, 20], sizes = [8, 20], strides = [1, 1]} : vector<8x80xf32> to vector<8x20xf32>
    %644 = vector.extract_strided_slice %641 {offsets = [0, 40], sizes = [8, 20], strides = [1, 1]} : vector<8x80xf32> to vector<8x20xf32>
    %645 = vector.extract_strided_slice %640 {offsets = [0, 60], sizes = [8, 20], strides = [1, 1]} : vector<8x80xf32> to vector<8x20xf32>
    %646 = arith.mulf %643, %604 : vector<8x20xf32>
    %647 = arith.mulf %642, %644 : vector<8x20xf32>
    %648 = arith.addf %646, %647 : vector<8x20xf32>
    %649 = math.tanh %648 : vector<8x20xf32>
    %650 = arith.mulf %645, %649 : vector<8x20xf32>
    %651 = tpu.concatenate %650, %626 in 1 : vector<8x20xf32>, vector<8x20xf32> -> vector<8x40xf32>
    %cst_174 = arith.constant dense<0.000000e+00> : vector<8x80xf32>
    %652 = tpu.matmul %651, %1, %cst_174 {dimension_numbers = #tpu.dot_dimension_numbers<[1], [0], [0], [1], [0, 0, 1, 1], [], []>} : vector<8x40xf32>, vector<40x80xf32>, vector<8x80xf32> -> vector<8x80xf32>
    %653 = arith.addf %652, %4 : vector<8x80xf32>
    %cst_175 = arith.constant 5.000000e-01 : f32
    %654 = vector.broadcast %cst_175 : f32 to vector<8x80xf32>
    %655 = arith.mulf %654, %653 : vector<8x80xf32>
    %656 = math.tanh %655 : vector<8x80xf32>
    %cst_176 = arith.constant 5.000000e-01 : f32
    %657 = vector.broadcast %cst_176 : f32 to vector<8x80xf32>
    %658 = arith.mulf %657, %656 : vector<8x80xf32>
    %cst_177 = arith.constant 5.000000e-01 : f32
    %659 = vector.broadcast %cst_177 : f32 to vector<8x80xf32>
    %660 = arith.addf %658, %659 : vector<8x80xf32>
    %661 = math.tanh %653 : vector<8x80xf32>
    %662 = vector.extract_strided_slice %660 {offsets = [0, 0], sizes = [8, 20], strides = [1, 1]} : vector<8x80xf32> to vector<8x20xf32>
    %663 = vector.extract_strided_slice %660 {offsets = [0, 20], sizes = [8, 20], strides = [1, 1]} : vector<8x80xf32> to vector<8x20xf32>
    %664 = vector.extract_strided_slice %661 {offsets = [0, 40], sizes = [8, 20], strides = [1, 1]} : vector<8x80xf32> to vector<8x20xf32>
    %665 = vector.extract_strided_slice %660 {offsets = [0, 60], sizes = [8, 20], strides = [1, 1]} : vector<8x80xf32> to vector<8x20xf32>
    %666 = arith.mulf %663, %624 : vector<8x20xf32>
    %667 = arith.mulf %662, %664 : vector<8x20xf32>
    %668 = arith.addf %666, %667 : vector<8x20xf32>
    %669 = math.tanh %668 : vector<8x20xf32>
    %670 = arith.mulf %665, %669 : vector<8x20xf32>
    %671 = arith.index_cast %629 : i32 to index
    %c0_178 = arith.constant 0 : index
    %672 = vector.load %arg10[%671, %c0_178] : memref<160x20xf32, #tpu.memory_space<vmem>>, vector<8x20xf32>
    tpu.vector_store %arg10[%671, %c0_178], %670 {strides = array<i32>} : memref<160x20xf32, #tpu.memory_space<vmem>>, vector<8x20xf32>,
    %c15_i32 = arith.constant 15 : i32
    %c8_i32_179 = arith.constant 8 : i32
    %673 = arith.muli %c15_i32, %c8_i32_179 : i32
    %674 = arith.index_cast %673 : i32 to index
    %c0_180 = arith.constant 0 : index
    %675 = vector.load %arg9[%674, %c0_180] : memref<160x80xf32, #tpu.memory_space<vmem>>, vector<8x80xf32>
    %cst_181 = arith.constant dense<0.000000e+00> : vector<8x80xf32>
    %676 = tpu.matmul %650, %0, %cst_181 {dimension_numbers = #tpu.dot_dimension_numbers<[1], [0], [0], [1], [0, 0, 1, 1], [], []>} : vector<8x20xf32>, vector<20x80xf32>, vector<8x80xf32> -> vector<8x80xf32>
    %677 = arith.addf %675, %676 : vector<8x80xf32>
    %cst_182 = arith.constant 5.000000e-01 : f32
    %678 = vector.broadcast %cst_182 : f32 to vector<8x80xf32>
    %679 = arith.mulf %678, %677 : vector<8x80xf32>
    %680 = math.tanh %679 : vector<8x80xf32>
    %cst_183 = arith.constant 5.000000e-01 : f32
    %681 = vector.broadcast %cst_183 : f32 to vector<8x80xf32>
    %682 = arith.mulf %681, %680 : vector<8x80xf32>
    %cst_184 = arith.constant 5.000000e-01 : f32
    %683 = vector.broadcast %cst_184 : f32 to vector<8x80xf32>
    %684 = arith.addf %682, %683 : vector<8x80xf32>
    %685 = math.tanh %677 : vector<8x80xf32>
    %686 = vector.extract_strided_slice %684 {offsets = [0, 0], sizes = [8, 20], strides = [1, 1]} : vector<8x80xf32> to vector<8x20xf32>
    %687 = vector.extract_strided_slice %684 {offsets = [0, 20], sizes = [8, 20], strides = [1, 1]} : vector<8x80xf32> to vector<8x20xf32>
    %688 = vector.extract_strided_slice %685 {offsets = [0, 40], sizes = [8, 20], strides = [1, 1]} : vector<8x80xf32> to vector<8x20xf32>
    %689 = vector.extract_strided_slice %684 {offsets = [0, 60], sizes = [8, 20], strides = [1, 1]} : vector<8x80xf32> to vector<8x20xf32>
    %690 = arith.mulf %687, %648 : vector<8x20xf32>
    %691 = arith.mulf %686, %688 : vector<8x20xf32>
    %692 = arith.addf %690, %691 : vector<8x20xf32>
    %693 = math.tanh %692 : vector<8x20xf32>
    %694 = arith.mulf %689, %693 : vector<8x20xf32>
    %695 = tpu.concatenate %694, %670 in 1 : vector<8x20xf32>, vector<8x20xf32> -> vector<8x40xf32>
    %cst_185 = arith.constant dense<0.000000e+00> : vector<8x80xf32>
    %696 = tpu.matmul %695, %1, %cst_185 {dimension_numbers = #tpu.dot_dimension_numbers<[1], [0], [0], [1], [0, 0, 1, 1], [], []>} : vector<8x40xf32>, vector<40x80xf32>, vector<8x80xf32> -> vector<8x80xf32>
    %697 = arith.addf %696, %4 : vector<8x80xf32>
    %cst_186 = arith.constant 5.000000e-01 : f32
    %698 = vector.broadcast %cst_186 : f32 to vector<8x80xf32>
    %699 = arith.mulf %698, %697 : vector<8x80xf32>
    %700 = math.tanh %699 : vector<8x80xf32>
    %cst_187 = arith.constant 5.000000e-01 : f32
    %701 = vector.broadcast %cst_187 : f32 to vector<8x80xf32>
    %702 = arith.mulf %701, %700 : vector<8x80xf32>
    %cst_188 = arith.constant 5.000000e-01 : f32
    %703 = vector.broadcast %cst_188 : f32 to vector<8x80xf32>
    %704 = arith.addf %702, %703 : vector<8x80xf32>
    %705 = math.tanh %697 : vector<8x80xf32>
    %706 = vector.extract_strided_slice %704 {offsets = [0, 0], sizes = [8, 20], strides = [1, 1]} : vector<8x80xf32> to vector<8x20xf32>
    %707 = vector.extract_strided_slice %704 {offsets = [0, 20], sizes = [8, 20], strides = [1, 1]} : vector<8x80xf32> to vector<8x20xf32>
    %708 = vector.extract_strided_slice %705 {offsets = [0, 40], sizes = [8, 20], strides = [1, 1]} : vector<8x80xf32> to vector<8x20xf32>
    %709 = vector.extract_strided_slice %704 {offsets = [0, 60], sizes = [8, 20], strides = [1, 1]} : vector<8x80xf32> to vector<8x20xf32>
    %710 = arith.mulf %707, %668 : vector<8x20xf32>
    %711 = arith.mulf %706, %708 : vector<8x20xf32>
    %712 = arith.addf %710, %711 : vector<8x20xf32>
    %713 = math.tanh %712 : vector<8x20xf32>
    %714 = arith.mulf %709, %713 : vector<8x20xf32>
    %715 = arith.index_cast %673 : i32 to index
    %c0_189 = arith.constant 0 : index
    %716 = vector.load %arg10[%715, %c0_189] : memref<160x20xf32, #tpu.memory_space<vmem>>, vector<8x20xf32>
    tpu.vector_store %arg10[%715, %c0_189], %714 {strides = array<i32>} : memref<160x20xf32, #tpu.memory_space<vmem>>, vector<8x20xf32>,
    %c16_i32 = arith.constant 16 : i32
    %c8_i32_190 = arith.constant 8 : i32
    %717 = arith.muli %c16_i32, %c8_i32_190 : i32
    %718 = arith.index_cast %717 : i32 to index
    %c0_191 = arith.constant 0 : index
    %719 = vector.load %arg9[%718, %c0_191] : memref<160x80xf32, #tpu.memory_space<vmem>>, vector<8x80xf32>
    %cst_192 = arith.constant dense<0.000000e+00> : vector<8x80xf32>
    %720 = tpu.matmul %694, %0, %cst_192 {dimension_numbers = #tpu.dot_dimension_numbers<[1], [0], [0], [1], [0, 0, 1, 1], [], []>} : vector<8x20xf32>, vector<20x80xf32>, vector<8x80xf32> -> vector<8x80xf32>
    %721 = arith.addf %719, %720 : vector<8x80xf32>
    %cst_193 = arith.constant 5.000000e-01 : f32
    %722 = vector.broadcast %cst_193 : f32 to vector<8x80xf32>
    %723 = arith.mulf %722, %721 : vector<8x80xf32>
    %724 = math.tanh %723 : vector<8x80xf32>
    %cst_194 = arith.constant 5.000000e-01 : f32
    %725 = vector.broadcast %cst_194 : f32 to vector<8x80xf32>
    %726 = arith.mulf %725, %724 : vector<8x80xf32>
    %cst_195 = arith.constant 5.000000e-01 : f32
    %727 = vector.broadcast %cst_195 : f32 to vector<8x80xf32>
    %728 = arith.addf %726, %727 : vector<8x80xf32>
    %729 = math.tanh %721 : vector<8x80xf32>
    %730 = vector.extract_strided_slice %728 {offsets = [0, 0], sizes = [8, 20], strides = [1, 1]} : vector<8x80xf32> to vector<8x20xf32>
    %731 = vector.extract_strided_slice %728 {offsets = [0, 20], sizes = [8, 20], strides = [1, 1]} : vector<8x80xf32> to vector<8x20xf32>
    %732 = vector.extract_strided_slice %729 {offsets = [0, 40], sizes = [8, 20], strides = [1, 1]} : vector<8x80xf32> to vector<8x20xf32>
    %733 = vector.extract_strided_slice %728 {offsets = [0, 60], sizes = [8, 20], strides = [1, 1]} : vector<8x80xf32> to vector<8x20xf32>
    %734 = arith.mulf %731, %692 : vector<8x20xf32>
    %735 = arith.mulf %730, %732 : vector<8x20xf32>
    %736 = arith.addf %734, %735 : vector<8x20xf32>
    %737 = math.tanh %736 : vector<8x20xf32>
    %738 = arith.mulf %733, %737 : vector<8x20xf32>
    %739 = tpu.concatenate %738, %714 in 1 : vector<8x20xf32>, vector<8x20xf32> -> vector<8x40xf32>
    %cst_196 = arith.constant dense<0.000000e+00> : vector<8x80xf32>
    %740 = tpu.matmul %739, %1, %cst_196 {dimension_numbers = #tpu.dot_dimension_numbers<[1], [0], [0], [1], [0, 0, 1, 1], [], []>} : vector<8x40xf32>, vector<40x80xf32>, vector<8x80xf32> -> vector<8x80xf32>
    %741 = arith.addf %740, %4 : vector<8x80xf32>
    %cst_197 = arith.constant 5.000000e-01 : f32
    %742 = vector.broadcast %cst_197 : f32 to vector<8x80xf32>
    %743 = arith.mulf %742, %741 : vector<8x80xf32>
    %744 = math.tanh %743 : vector<8x80xf32>
    %cst_198 = arith.constant 5.000000e-01 : f32
    %745 = vector.broadcast %cst_198 : f32 to vector<8x80xf32>
    %746 = arith.mulf %745, %744 : vector<8x80xf32>
    %cst_199 = arith.constant 5.000000e-01 : f32
    %747 = vector.broadcast %cst_199 : f32 to vector<8x80xf32>
    %748 = arith.addf %746, %747 : vector<8x80xf32>
    %749 = math.tanh %741 : vector<8x80xf32>
    %750 = vector.extract_strided_slice %748 {offsets = [0, 0], sizes = [8, 20], strides = [1, 1]} : vector<8x80xf32> to vector<8x20xf32>
    %751 = vector.extract_strided_slice %748 {offsets = [0, 20], sizes = [8, 20], strides = [1, 1]} : vector<8x80xf32> to vector<8x20xf32>
    %752 = vector.extract_strided_slice %749 {offsets = [0, 40], sizes = [8, 20], strides = [1, 1]} : vector<8x80xf32> to vector<8x20xf32>
    %753 = vector.extract_strided_slice %748 {offsets = [0, 60], sizes = [8, 20], strides = [1, 1]} : vector<8x80xf32> to vector<8x20xf32>
    %754 = arith.mulf %751, %712 : vector<8x20xf32>
    %755 = arith.mulf %750, %752 : vector<8x20xf32>
    %756 = arith.addf %754, %755 : vector<8x20xf32>
    %757 = math.tanh %756 : vector<8x20xf32>
    %758 = arith.mulf %753, %757 : vector<8x20xf32>
    %759 = arith.index_cast %717 : i32 to index
    %c0_200 = arith.constant 0 : index
    %760 = vector.load %arg10[%759, %c0_200] : memref<160x20xf32, #tpu.memory_space<vmem>>, vector<8x20xf32>
    tpu.vector_store %arg10[%759, %c0_200], %758 {strides = array<i32>} : memref<160x20xf32, #tpu.memory_space<vmem>>, vector<8x20xf32>,
    %c17_i32 = arith.constant 17 : i32
    %c8_i32_201 = arith.constant 8 : i32
    %761 = arith.muli %c17_i32, %c8_i32_201 : i32
    %762 = arith.index_cast %761 : i32 to index
    %c0_202 = arith.constant 0 : index
    %763 = vector.load %arg9[%762, %c0_202] : memref<160x80xf32, #tpu.memory_space<vmem>>, vector<8x80xf32>
    %cst_203 = arith.constant dense<0.000000e+00> : vector<8x80xf32>
    %764 = tpu.matmul %738, %0, %cst_203 {dimension_numbers = #tpu.dot_dimension_numbers<[1], [0], [0], [1], [0, 0, 1, 1], [], []>} : vector<8x20xf32>, vector<20x80xf32>, vector<8x80xf32> -> vector<8x80xf32>
    %765 = arith.addf %763, %764 : vector<8x80xf32>
    %cst_204 = arith.constant 5.000000e-01 : f32
    %766 = vector.broadcast %cst_204 : f32 to vector<8x80xf32>
    %767 = arith.mulf %766, %765 : vector<8x80xf32>
    %768 = math.tanh %767 : vector<8x80xf32>
    %cst_205 = arith.constant 5.000000e-01 : f32
    %769 = vector.broadcast %cst_205 : f32 to vector<8x80xf32>
    %770 = arith.mulf %769, %768 : vector<8x80xf32>
    %cst_206 = arith.constant 5.000000e-01 : f32
    %771 = vector.broadcast %cst_206 : f32 to vector<8x80xf32>
    %772 = arith.addf %770, %771 : vector<8x80xf32>
    %773 = math.tanh %765 : vector<8x80xf32>
    %774 = vector.extract_strided_slice %772 {offsets = [0, 0], sizes = [8, 20], strides = [1, 1]} : vector<8x80xf32> to vector<8x20xf32>
    %775 = vector.extract_strided_slice %772 {offsets = [0, 20], sizes = [8, 20], strides = [1, 1]} : vector<8x80xf32> to vector<8x20xf32>
    %776 = vector.extract_strided_slice %773 {offsets = [0, 40], sizes = [8, 20], strides = [1, 1]} : vector<8x80xf32> to vector<8x20xf32>
    %777 = vector.extract_strided_slice %772 {offsets = [0, 60], sizes = [8, 20], strides = [1, 1]} : vector<8x80xf32> to vector<8x20xf32>
    %778 = arith.mulf %775, %736 : vector<8x20xf32>
    %779 = arith.mulf %774, %776 : vector<8x20xf32>
    %780 = arith.addf %778, %779 : vector<8x20xf32>
    %781 = math.tanh %780 : vector<8x20xf32>
    %782 = arith.mulf %777, %781 : vector<8x20xf32>
    %783 = tpu.concatenate %782, %758 in 1 : vector<8x20xf32>, vector<8x20xf32> -> vector<8x40xf32>
    %cst_207 = arith.constant dense<0.000000e+00> : vector<8x80xf32>
    %784 = tpu.matmul %783, %1, %cst_207 {dimension_numbers = #tpu.dot_dimension_numbers<[1], [0], [0], [1], [0, 0, 1, 1], [], []>} : vector<8x40xf32>, vector<40x80xf32>, vector<8x80xf32> -> vector<8x80xf32>
    %785 = arith.addf %784, %4 : vector<8x80xf32>
    %cst_208 = arith.constant 5.000000e-01 : f32
    %786 = vector.broadcast %cst_208 : f32 to vector<8x80xf32>
    %787 = arith.mulf %786, %785 : vector<8x80xf32>
    %788 = math.tanh %787 : vector<8x80xf32>
    %cst_209 = arith.constant 5.000000e-01 : f32
    %789 = vector.broadcast %cst_209 : f32 to vector<8x80xf32>
    %790 = arith.mulf %789, %788 : vector<8x80xf32>
    %cst_210 = arith.constant 5.000000e-01 : f32
    %791 = vector.broadcast %cst_210 : f32 to vector<8x80xf32>
    %792 = arith.addf %790, %791 : vector<8x80xf32>
    %793 = math.tanh %785 : vector<8x80xf32>
    %794 = vector.extract_strided_slice %792 {offsets = [0, 0], sizes = [8, 20], strides = [1, 1]} : vector<8x80xf32> to vector<8x20xf32>
    %795 = vector.extract_strided_slice %792 {offsets = [0, 20], sizes = [8, 20], strides = [1, 1]} : vector<8x80xf32> to vector<8x20xf32>
    %796 = vector.extract_strided_slice %793 {offsets = [0, 40], sizes = [8, 20], strides = [1, 1]} : vector<8x80xf32> to vector<8x20xf32>
    %797 = vector.extract_strided_slice %792 {offsets = [0, 60], sizes = [8, 20], strides = [1, 1]} : vector<8x80xf32> to vector<8x20xf32>
    %798 = arith.mulf %795, %756 : vector<8x20xf32>
    %799 = arith.mulf %794, %796 : vector<8x20xf32>
    %800 = arith.addf %798, %799 : vector<8x20xf32>
    %801 = math.tanh %800 : vector<8x20xf32>
    %802 = arith.mulf %797, %801 : vector<8x20xf32>
    %803 = arith.index_cast %761 : i32 to index
    %c0_211 = arith.constant 0 : index
    %804 = vector.load %arg10[%803, %c0_211] : memref<160x20xf32, #tpu.memory_space<vmem>>, vector<8x20xf32>
    tpu.vector_store %arg10[%803, %c0_211], %802 {strides = array<i32>} : memref<160x20xf32, #tpu.memory_space<vmem>>, vector<8x20xf32>,
    %c18_i32 = arith.constant 18 : i32
    %c8_i32_212 = arith.constant 8 : i32
    %805 = arith.muli %c18_i32, %c8_i32_212 : i32
    %806 = arith.index_cast %805 : i32 to index
    %c0_213 = arith.constant 0 : index
    %807 = vector.load %arg9[%806, %c0_213] : memref<160x80xf32, #tpu.memory_space<vmem>>, vector<8x80xf32>
    %cst_214 = arith.constant dense<0.000000e+00> : vector<8x80xf32>
    %808 = tpu.matmul %782, %0, %cst_214 {dimension_numbers = #tpu.dot_dimension_numbers<[1], [0], [0], [1], [0, 0, 1, 1], [], []>} : vector<8x20xf32>, vector<20x80xf32>, vector<8x80xf32> -> vector<8x80xf32>
    %809 = arith.addf %807, %808 : vector<8x80xf32>
    %cst_215 = arith.constant 5.000000e-01 : f32
    %810 = vector.broadcast %cst_215 : f32 to vector<8x80xf32>
    %811 = arith.mulf %810, %809 : vector<8x80xf32>
    %812 = math.tanh %811 : vector<8x80xf32>
    %cst_216 = arith.constant 5.000000e-01 : f32
    %813 = vector.broadcast %cst_216 : f32 to vector<8x80xf32>
    %814 = arith.mulf %813, %812 : vector<8x80xf32>
    %cst_217 = arith.constant 5.000000e-01 : f32
    %815 = vector.broadcast %cst_217 : f32 to vector<8x80xf32>
    %816 = arith.addf %814, %815 : vector<8x80xf32>
    %817 = math.tanh %809 : vector<8x80xf32>
    %818 = vector.extract_strided_slice %816 {offsets = [0, 0], sizes = [8, 20], strides = [1, 1]} : vector<8x80xf32> to vector<8x20xf32>
    %819 = vector.extract_strided_slice %816 {offsets = [0, 20], sizes = [8, 20], strides = [1, 1]} : vector<8x80xf32> to vector<8x20xf32>
    %820 = vector.extract_strided_slice %817 {offsets = [0, 40], sizes = [8, 20], strides = [1, 1]} : vector<8x80xf32> to vector<8x20xf32>
    %821 = vector.extract_strided_slice %816 {offsets = [0, 60], sizes = [8, 20], strides = [1, 1]} : vector<8x80xf32> to vector<8x20xf32>
    %822 = arith.mulf %819, %780 : vector<8x20xf32>
    %823 = arith.mulf %818, %820 : vector<8x20xf32>
    %824 = arith.addf %822, %823 : vector<8x20xf32>
    %825 = math.tanh %824 : vector<8x20xf32>
    %826 = arith.mulf %821, %825 : vector<8x20xf32>
    %827 = tpu.concatenate %826, %802 in 1 : vector<8x20xf32>, vector<8x20xf32> -> vector<8x40xf32>
    %cst_218 = arith.constant dense<0.000000e+00> : vector<8x80xf32>
    %828 = tpu.matmul %827, %1, %cst_218 {dimension_numbers = #tpu.dot_dimension_numbers<[1], [0], [0], [1], [0, 0, 1, 1], [], []>} : vector<8x40xf32>, vector<40x80xf32>, vector<8x80xf32> -> vector<8x80xf32>
    %829 = arith.addf %828, %4 : vector<8x80xf32>
    %cst_219 = arith.constant 5.000000e-01 : f32
    %830 = vector.broadcast %cst_219 : f32 to vector<8x80xf32>
    %831 = arith.mulf %830, %829 : vector<8x80xf32>
    %832 = math.tanh %831 : vector<8x80xf32>
    %cst_220 = arith.constant 5.000000e-01 : f32
    %833 = vector.broadcast %cst_220 : f32 to vector<8x80xf32>
    %834 = arith.mulf %833, %832 : vector<8x80xf32>
    %cst_221 = arith.constant 5.000000e-01 : f32
    %835 = vector.broadcast %cst_221 : f32 to vector<8x80xf32>
    %836 = arith.addf %834, %835 : vector<8x80xf32>
    %837 = math.tanh %829 : vector<8x80xf32>
    %838 = vector.extract_strided_slice %836 {offsets = [0, 0], sizes = [8, 20], strides = [1, 1]} : vector<8x80xf32> to vector<8x20xf32>
    %839 = vector.extract_strided_slice %836 {offsets = [0, 20], sizes = [8, 20], strides = [1, 1]} : vector<8x80xf32> to vector<8x20xf32>
    %840 = vector.extract_strided_slice %837 {offsets = [0, 40], sizes = [8, 20], strides = [1, 1]} : vector<8x80xf32> to vector<8x20xf32>
    %841 = vector.extract_strided_slice %836 {offsets = [0, 60], sizes = [8, 20], strides = [1, 1]} : vector<8x80xf32> to vector<8x20xf32>
    %842 = arith.mulf %839, %800 : vector<8x20xf32>
    %843 = arith.mulf %838, %840 : vector<8x20xf32>
    %844 = arith.addf %842, %843 : vector<8x20xf32>
    %845 = math.tanh %844 : vector<8x20xf32>
    %846 = arith.mulf %841, %845 : vector<8x20xf32>
    %847 = arith.index_cast %805 : i32 to index
    %c0_222 = arith.constant 0 : index
    %848 = vector.load %arg10[%847, %c0_222] : memref<160x20xf32, #tpu.memory_space<vmem>>, vector<8x20xf32>
    tpu.vector_store %arg10[%847, %c0_222], %846 {strides = array<i32>} : memref<160x20xf32, #tpu.memory_space<vmem>>, vector<8x20xf32>,
    %c19_i32 = arith.constant 19 : i32
    %c8_i32_223 = arith.constant 8 : i32
    %849 = arith.muli %c19_i32, %c8_i32_223 : i32
    %850 = arith.index_cast %849 : i32 to index
    %c0_224 = arith.constant 0 : index
    %851 = vector.load %arg9[%850, %c0_224] : memref<160x80xf32, #tpu.memory_space<vmem>>, vector<8x80xf32>
    %cst_225 = arith.constant dense<0.000000e+00> : vector<8x80xf32>
    %852 = tpu.matmul %826, %0, %cst_225 {dimension_numbers = #tpu.dot_dimension_numbers<[1], [0], [0], [1], [0, 0, 1, 1], [], []>} : vector<8x20xf32>, vector<20x80xf32>, vector<8x80xf32> -> vector<8x80xf32>
    %853 = arith.addf %851, %852 : vector<8x80xf32>
    %cst_226 = arith.constant 5.000000e-01 : f32
    %854 = vector.broadcast %cst_226 : f32 to vector<8x80xf32>
    %855 = arith.mulf %854, %853 : vector<8x80xf32>
    %856 = math.tanh %855 : vector<8x80xf32>
    %cst_227 = arith.constant 5.000000e-01 : f32
    %857 = vector.broadcast %cst_227 : f32 to vector<8x80xf32>
    %858 = arith.mulf %857, %856 : vector<8x80xf32>
    %cst_228 = arith.constant 5.000000e-01 : f32
    %859 = vector.broadcast %cst_228 : f32 to vector<8x80xf32>
    %860 = arith.addf %858, %859 : vector<8x80xf32>
    %861 = math.tanh %853 : vector<8x80xf32>
    %862 = vector.extract_strided_slice %860 {offsets = [0, 0], sizes = [8, 20], strides = [1, 1]} : vector<8x80xf32> to vector<8x20xf32>
    %863 = vector.extract_strided_slice %860 {offsets = [0, 20], sizes = [8, 20], strides = [1, 1]} : vector<8x80xf32> to vector<8x20xf32>
    %864 = vector.extract_strided_slice %861 {offsets = [0, 40], sizes = [8, 20], strides = [1, 1]} : vector<8x80xf32> to vector<8x20xf32>
    %865 = vector.extract_strided_slice %860 {offsets = [0, 60], sizes = [8, 20], strides = [1, 1]} : vector<8x80xf32> to vector<8x20xf32>
    %866 = arith.mulf %863, %824 : vector<8x20xf32>
    %867 = arith.mulf %862, %864 : vector<8x20xf32>
    %868 = arith.addf %866, %867 : vector<8x20xf32>
    %869 = math.tanh %868 : vector<8x20xf32>
    %870 = arith.mulf %865, %869 : vector<8x20xf32>
    %871 = tpu.concatenate %870, %846 in 1 : vector<8x20xf32>, vector<8x20xf32> -> vector<8x40xf32>
    %cst_229 = arith.constant dense<0.000000e+00> : vector<8x80xf32>
    %872 = tpu.matmul %871, %1, %cst_229 {dimension_numbers = #tpu.dot_dimension_numbers<[1], [0], [0], [1], [0, 0, 1, 1], [], []>} : vector<8x40xf32>, vector<40x80xf32>, vector<8x80xf32> -> vector<8x80xf32>
    %873 = arith.addf %872, %4 : vector<8x80xf32>
    %cst_230 = arith.constant 5.000000e-01 : f32
    %874 = vector.broadcast %cst_230 : f32 to vector<8x80xf32>
    %875 = arith.mulf %874, %873 : vector<8x80xf32>
    %876 = math.tanh %875 : vector<8x80xf32>
    %cst_231 = arith.constant 5.000000e-01 : f32
    %877 = vector.broadcast %cst_231 : f32 to vector<8x80xf32>
    %878 = arith.mulf %877, %876 : vector<8x80xf32>
    %cst_232 = arith.constant 5.000000e-01 : f32
    %879 = vector.broadcast %cst_232 : f32 to vector<8x80xf32>
    %880 = arith.addf %878, %879 : vector<8x80xf32>
    %881 = math.tanh %873 : vector<8x80xf32>
    %882 = vector.extract_strided_slice %880 {offsets = [0, 0], sizes = [8, 20], strides = [1, 1]} : vector<8x80xf32> to vector<8x20xf32>
    %883 = vector.extract_strided_slice %880 {offsets = [0, 20], sizes = [8, 20], strides = [1, 1]} : vector<8x80xf32> to vector<8x20xf32>
    %884 = vector.extract_strided_slice %881 {offsets = [0, 40], sizes = [8, 20], strides = [1, 1]} : vector<8x80xf32> to vector<8x20xf32>
    %885 = vector.extract_strided_slice %880 {offsets = [0, 60], sizes = [8, 20], strides = [1, 1]} : vector<8x80xf32> to vector<8x20xf32>
    %886 = arith.mulf %883, %844 : vector<8x20xf32>
    %887 = arith.mulf %882, %884 : vector<8x20xf32>
    %888 = arith.addf %886, %887 : vector<8x20xf32>
    %889 = math.tanh %888 : vector<8x20xf32>
    %890 = arith.mulf %885, %889 : vector<8x20xf32>
    %891 = arith.index_cast %849 : i32 to index
    %c0_233 = arith.constant 0 : index
    %892 = vector.load %arg10[%891, %c0_233] : memref<160x20xf32, #tpu.memory_space<vmem>>, vector<8x20xf32>
    tpu.vector_store %arg10[%891, %c0_233], %890 {strides = array<i32>} : memref<160x20xf32, #tpu.memory_space<vmem>>, vector<8x20xf32>,
    %c20_i32 = arith.constant 20 : i32
    %c0_234 = arith.constant 0 : index
    %c0_235 = arith.constant 0 : index
    %893 = vector.load %arg10[%c0_234, %c0_235] : memref<160x20xf32, #tpu.memory_space<vmem>>, vector<160x20xf32>
    %c0_236 = arith.constant 0 : index
    %c0_237 = arith.constant 0 : index
    %894 = vector.load %arg6[%c0_236, %c0_237] : memref<160x20xf32, #tpu.memory_space<vmem>>, vector<160x20xf32>
    %895 = arith.mulf %893, %894 : vector<160x20xf32>
    %cst_238 = arith.constant dense<0.000000e+00> : vector<160xf32>
    %896 = vector.multi_reduction <add>, %895, %cst_238 [1] : vector<160x20xf32> to vector<160xf32>
    %897 = vector.shape_cast %896 : vector<160xf32> to vector<160x1xf32>
    %898 = tpu.iota {dimensions = array<i32: 1>} : vector<2x160xi32>
    %899 = tpu.iota {dimensions = array<i32: 0>} : vector<2x160xi32>
    %c80_i32 = arith.constant 80 : i32
    %900 = vector.broadcast %c80_i32 : i32 to vector<2x160xi32>
    %901 = arith.muli %899, %900 : vector<2x160xi32>
    %902 = arith.cmpi sge, %898, %901 : vector<2x160xi32>
    %c80_i32_239 = arith.constant 80 : i32
    %903 = vector.broadcast %c80_i32_239 : i32 to vector<2x160xi32>
    %904 = arith.addi %901, %903 : vector<2x160xi32>
    %905 = arith.cmpi slt, %898, %904 : vector<2x160xi32>
    %906 = arith.andi %902, %905 : vector<2x160xi1>
    %907 = arith.extui %906 : vector<2x160xi1> to vector<2x160xi32>
    %908 = arith.sitofp %907 : vector<2x160xi32> to vector<2x160xf32>
    %cst_240 = arith.constant dense<0.000000e+00> : vector<2x1xf32>
    %909 = tpu.matmul %908, %897, %cst_240 {dimension_numbers = #tpu.dot_dimension_numbers<[1], [0], [0], [1], [0, 0, 1, 1], [], []>} : vector<2x160xf32>, vector<160x1xf32>, vector<2x1xf32> -> vector<2x1xf32>
    %c0_241 = arith.constant 0 : index
    %c0_242 = arith.constant 0 : index
    %910 = vector.load %arg7[%c0_241, %c0_242] : memref<1x1xf32, #tpu.memory_space<vmem>>, vector<1x1xf32>
    %911 = vector.broadcast %910 : vector<1x1xf32> to vector<2x1xf32>
    %912 = arith.addf %909, %911 : vector<2x1xf32>
    %c0_243 = arith.constant 0 : index
    %c0_244 = arith.constant 0 : index
    %913 = vector.load %arg8[%c0_243, %c0_244] : memref<2x1xf32, #tpu.memory_space<vmem>>, vector<2x1xf32>
    tpu.vector_store %arg8[%c0_243, %c0_244], %912 {strides = array<i32>} : memref<2x1xf32, #tpu.memory_space<vmem>>, vector<2x1xf32>,
    return
  }
}

</mosaic_0001>

<llo_original>
// kernel: tpu_custom_call.1
$region0: #{tpu_custom_call.1}
  #allocation0 [shape = 'u32[]', space=smem, size = 0x4, offset = 0x4, fixed_abs, tag = 'smem constant byte address 0x4 - core index']
  #allocation1 [shape = 'u32[72,128]{1,0:T(1,128)}', space=vmem, size = 0x9000, scoped, tag = 'internal scratch']
  #allocation2 [shape = 'f32[160,80]{1,0:T(8,128)}', space=vmem, size = 0x14000, scoped, tag = 'scratch operand']
  #allocation3 [shape = 'f32[160,20]{1,0:T(8,128)}', space=vmem, size = 0x14000, scoped, tag = 'scratch operand']
  #allocation4 [shape = 'f32[1,1]{1,0:T(1,128)S(1)}', space=vmem, size = 0x200, scoped, tag = 'scoped memory for tpu_custom_call.1']
  %s0 = inlined_call_operand.vmem [shape: f32[160,5], index: 0, kind: input, shape index: {}]
  %s1 = inlined_call_operand.vmem [shape: f32[5,80], index: 1, kind: input, shape index: {}]
  %s2 = inlined_call_operand.vmem [shape: f32[20,80], index: 2, kind: input, shape index: {}]
  %s3 = inlined_call_operand.vmem [shape: f32[1,80], index: 3, kind: input, shape index: {}]
  %s4 = inlined_call_operand.vmem [shape: f32[40,80], index: 4, kind: input, shape index: {}]
  %s5 = inlined_call_operand.vmem [shape: f32[1,80], index: 5, kind: input, shape index: {}]
  %s6 = inlined_call_operand.vmem [shape: f32[160,20], index: 6, kind: input, shape index: {}]
  %s7 = inlined_call_operand.<no memory space> [shape: f32[1,1], index: 7, kind: input, shape index: {}]
  %s8 = inlined_call_operand.vmem [shape: f32[2,1], index: 8, kind: output, shape index: {}]
  %s9 = sld [smem:[#allocation0]]
  $region42: #{tpu_custom_call.1} parent=0
    _
  %s11 = ssub.s32 1, %s9
  %s12 = scalar_select 0, %s11, %s9
  %v13 = vstv %s7
  %14 = vst [vmem:[#allocation4] sm:$0x1] %v13
  // Predicated region
  $region2: #{tpu_custom_call.1} parent=0 // pred_check
    _
  $region3: #{tpu_custom_call.1} parent=0 // pred_check_branch
    %16 = sbr.rel (0) target = $region5
  $region4: #{tpu_custom_call.1} parent=0 // pred_region
    _
  $region5: #{tpu_custom_call.1} parent=0 // pred_fallthru
    _
  // Predicated region
  $region6: #{tpu_custom_call.1} parent=0 // pred_check
    _
  $region7: #{tpu_custom_call.1} parent=0 // pred_check_branch
    %18 = sbr.rel (0) target = $region9
  $region8: #{tpu_custom_call.1} parent=0 // pred_region
    _
  $region9: #{tpu_custom_call.1} parent=0 // pred_fallthru
    _
  // Predicated region
  $region10: #{tpu_custom_call.1} parent=0 // pred_check
    _
  $region11: #{tpu_custom_call.1} parent=0 // pred_check_branch
    %20 = sbr.rel (0) target = $region13
  $region12: #{tpu_custom_call.1} parent=0 // pred_region
    _
  $region13: #{tpu_custom_call.1} parent=0 // pred_fallthru
    _
  // Predicated region
  $region14: #{tpu_custom_call.1} parent=0 // pred_check
    _
  $region15: #{tpu_custom_call.1} parent=0 // pred_check_branch
    %22 = sbr.rel (0) target = $region17
  $region16: #{tpu_custom_call.1} parent=0 // pred_region
    _
  $region17: #{tpu_custom_call.1} parent=0 // pred_fallthru
    _
  // Predicated region
  $region18: #{tpu_custom_call.1} parent=0 // pred_check
    _
  $region19: #{tpu_custom_call.1} parent=0 // pred_check_branch
    %24 = sbr.rel (0) target = $region21
  $region20: #{tpu_custom_call.1} parent=0 // pred_region
    _
  $region21: #{tpu_custom_call.1} parent=0 // pred_fallthru
    _
  // Predicated region
  $region22: #{tpu_custom_call.1} parent=0 // pred_check
    _
  $region23: #{tpu_custom_call.1} parent=0 // pred_check_branch
    %26 = sbr.rel (0) target = $region25
  $region24: #{tpu_custom_call.1} parent=0 // pred_region
    _
  $region25: #{tpu_custom_call.1} parent=0 // pred_fallthru
    _
  // Predicated region
  $region26: #{tpu_custom_call.1} parent=0 // pred_check
    _
  $region27: #{tpu_custom_call.1} parent=0 // pred_check_branch
    %28 = sbr.rel (0) target = $region29
  $region28: #{tpu_custom_call.1} parent=0 // pred_region
    _
  $region29: #{tpu_custom_call.1} parent=0 // pred_fallthru
    _
  // Predicated region
  $region30: #{tpu_custom_call.1} parent=0 // pred_check
    _
  $region31: #{tpu_custom_call.1} parent=0 // pred_check_branch
    %30 = sbr.rel (0) target = $region33
  $region32: #{tpu_custom_call.1} parent=0 // pred_region
    _
  $region33: #{tpu_custom_call.1} parent=0 // pred_fallthru
    _
  %v31 = vld [vmem:[%s2] sm:$0xff]
  %v32 = vld [vmem:[%s2 + $0x8] sm:$0xff]
  %v33 = vld [vmem:[%s2 + $0x10] sm:$0xf]
  %v34 = vld [vmem:[%s4] sm:$0xff]
  %v35 = vld [vmem:[%s4 + $0x8] sm:$0xff]
  %v36 = vld [vmem:[%s4 + $0x10] sm:$0xff]
  %v37 = vld [vmem:[%s4 + $0x18] sm:$0xff]
  %v38 = vld [vmem:[%s4 + $0x20] sm:$0xff]
  %v39 = vld [vmem:[%s5] sm:$0x1]
  %v41 = vperm.slane %v39, 0
  %v43 = vld [vmem:[%s0] sm:$0xff]
  %v44 = vld [vmem:[%s0 + $0x8] sm:$0xff]
  %v45 = vld [vmem:[%s0 + $0x10] sm:$0xff]
  %v46 = vld [vmem:[%s0 + $0x18] sm:$0xff]
  %v47 = vld [vmem:[%s0 + $0x20] sm:$0xff]
  %v48 = vld [vmem:[%s0 + $0x28] sm:$0xff]
  %v49 = vld [vmem:[%s0 + $0x30] sm:$0xff]
  %v50 = vld [vmem:[%s0 + $0x38] sm:$0xff]
  %v51 = vld [vmem:[%s0 + $0x40] sm:$0xff]
  %v52 = vld [vmem:[%s0 + $0x48] sm:$0xff]
  %v53 = vld [vmem:[%s0 + $0x50] sm:$0xff]
  %v54 = vld [vmem:[%s0 + $0x58] sm:$0xff]
  %v55 = vld [vmem:[%s0 + $0x60] sm:$0xff]
  %v56 = vld [vmem:[%s0 + $0x68] sm:$0xff]
  %v57 = vld [vmem:[%s0 + $0x70] sm:$0xff]
  %v58 = vld [vmem:[%s0 + $0x78] sm:$0xff]
  %v59 = vld [vmem:[%s0 + $0x80] sm:$0xff]
  %v60 = vld [vmem:[%s0 + $0x88] sm:$0xff]
  %v61 = vld [vmem:[%s0 + $0x90] sm:$0xff]
  %v62 = vld [vmem:[%s0 + $0x98] sm:$0xff]
  %v63 = vld [vmem:[%s1] sm:$0x1f]
  %v64 = vld [vmem:[%s3] sm:$0x1]
  %v66 = vperm.slane %v64, 0
  %vm68 = vcmask 39936
  %v70 = vsel %vm68, %v43, 0
  %v73 = vsel %vm68, %v44, 0
  %v76 = vsel %vm68, %v45, 0
  %v79 = vsel %vm68, %v46, 0
  %v82 = vsel %vm68, %v47, 0
  %v85 = vsel %vm68, %v48, 0
  %v88 = vsel %vm68, %v49, 0
  %v91 = vsel %vm68, %v50, 0
  %v94 = vsel %vm68, %v51, 0
  %v97 = vsel %vm68, %v52, 0
  %v100 = vsel %vm68, %v53, 0
  %v103 = vsel %vm68, %v54, 0
  %v106 = vsel %vm68, %v55, 0
  %v109 = vsel %vm68, %v56, 0
  %v112 = vsel %vm68, %v57, 0
  %v115 = vsel %vm68, %v58, 0
  %v118 = vsel %vm68, %v59, 0
  %v121 = vsel %vm68, %v60, 0
  %v124 = vsel %vm68, %v61, 0
  %v127 = vsel %vm68, %v62, 0
  %vm129 = vcmask 1044480
  %v131 = vsel %vm129, %v63, 0
  %133 = vmatpush.msra.mxu0 0.0
  %134 = vmatpush.msra.mxu0 0.0
  %135 = vmatpush.msra.mxu0 0.0
  %136 = vmatpush.msra.mxu0 0.0
  %137 = vmatpush.msra.mxu0 0.0
  %138 = vmatpush.msra.mxu0 0.0
  %139 = vmatpush.msra.mxu0 0.0
  %140 = vmatpush.msra.mxu0 0.0
  %141 = vmatpush.msra.mxu0 0.0
  %142 = vmatpush.msra.mxu0 0.0
  %143 = vmatpush.msra.mxu0 0.0
  %144 = vmatpush.msra.mxu0 0.0
  %145 = vmatpush.msra.mxu0 0.0
  %146 = vmatpush.msra.mxu0 0.0
  %147 = vmatpush.msra.mxu0 0.0
  %148 = vmatpush.msra.mxu0 %v131
  %149 = vmatmul.f32.gmra.mxu0 %v70
  %v150 = vpop.f32.mrf.mxu0
  %v151 = vadd.f32 %v66, %v150
  %152 = vmatmul.f32.gmra.mxu0 %v73
  %v153 = vpop.f32.mrf.mxu0
  %v154 = vadd.f32 %v66, %v153
  %155 = vmatmul.f32.gmra.mxu0 %v76
  %v156 = vpop.f32.mrf.mxu0
  %v157 = vadd.f32 %v66, %v156
  %158 = vmatmul.f32.gmra.mxu0 %v79
  %v159 = vpop.f32.mrf.mxu0
  %v160 = vadd.f32 %v66, %v159
  %161 = vmatmul.f32.gmra.mxu0 %v82
  %v162 = vpop.f32.mrf.mxu0
  %v163 = vadd.f32 %v66, %v162
  %164 = vmatmul.f32.gmra.mxu0 %v85
  %v165 = vpop.f32.mrf.mxu0
  %v166 = vadd.f32 %v66, %v165
  %167 = vmatmul.f32.gmra.mxu0 %v88
  %v168 = vpop.f32.mrf.mxu0
  %v169 = vadd.f32 %v66, %v168
  %170 = vmatmul.f32.gmra.mxu0 %v91
  %v171 = vpop.f32.mrf.mxu0
  %v172 = vadd.f32 %v66, %v171
  %173 = vmatmul.f32.gmra.mxu0 %v94
  %v174 = vpop.f32.mrf.mxu0
  %v175 = vadd.f32 %v66, %v174
  %176 = vmatmul.f32.gmra.mxu0 %v97
  %v177 = vpop.f32.mrf.mxu0
  %v178 = vadd.f32 %v66, %v177
  %179 = vmatmul.f32.gmra.mxu0 %v100
  %v180 = vpop.f32.mrf.mxu0
  %v181 = vadd.f32 %v66, %v180
  %182 = vmatmul.f32.gmra.mxu0 %v103
  %v183 = vpop.f32.mrf.mxu0
  %v184 = vadd.f32 %v66, %v183
  %185 = vmatmul.f32.gmra.mxu0 %v106
  %v186 = vpop.f32.mrf.mxu0
  %v187 = vadd.f32 %v66, %v186
  %188 = vmatmul.f32.gmra.mxu0 %v109
  %v189 = vpop.f32.mrf.mxu0
  %v190 = vadd.f32 %v66, %v189
  %191 = vmatmul.f32.gmra.mxu0 %v112
  %v192 = vpop.f32.mrf.mxu0
  %v193 = vadd.f32 %v66, %v192
  %194 = vmatmul.f32.gmra.mxu0 %v115
  %v195 = vpop.f32.mrf.mxu0
  %v196 = vadd.f32 %v66, %v195
  %197 = vmatmul.f32.gmra.mxu0 %v118
  %v198 = vpop.f32.mrf.mxu0
  %v199 = vadd.f32 %v66, %v198
  %200 = vmatmul.f32.gmra.mxu0 %v121
  %v201 = vpop.f32.mrf.mxu0
  %v202 = vadd.f32 %v66, %v201
  %203 = vmatmul.f32.gmra.mxu0 %v124
  %v204 = vpop.f32.mrf.mxu0
  %v205 = vadd.f32 %v66, %v204
  %206 = vmatmul.f32.gmra.mxu0 %v127
  %v207 = vpop.f32.mrf.mxu0
  %v208 = vadd.f32 %v66, %v207
  %209 = vdwg.mxu0
  %vm210 = vcmask 654336
  %211 = vst.msk [vmem:[#allocation2] sm:$0xff] %vm210, %v151
  %212 = vst.msk [vmem:[#allocation2 + $0x8] sm:$0xff] %vm210, %v154
  %213 = vst.msk [vmem:[#allocation2 + $0x10] sm:$0xff] %vm210, %v157
  %214 = vst.msk [vmem:[#allocation2 + $0x18] sm:$0xff] %vm210, %v160
  %215 = vst.msk [vmem:[#allocation2 + $0x20] sm:$0xff] %vm210, %v163
  %216 = vst.msk [vmem:[#allocation2 + $0x28] sm:$0xff] %vm210, %v166
  %217 = vst.msk [vmem:[#allocation2 + $0x30] sm:$0xff] %vm210, %v169
  %218 = vst.msk [vmem:[#allocation2 + $0x38] sm:$0xff] %vm210, %v172
  %219 = vst.msk [vmem:[#allocation2 + $0x40] sm:$0xff] %vm210, %v175
  %220 = vst.msk [vmem:[#allocation2 + $0x48] sm:$0xff] %vm210, %v178
  %221 = vst.msk [vmem:[#allocation2 + $0x50] sm:$0xff] %vm210, %v181
  %222 = vst.msk [vmem:[#allocation2 + $0x58] sm:$0xff] %vm210, %v184
  %223 = vst.msk [vmem:[#allocation2 + $0x60] sm:$0xff] %vm210, %v187
  %224 = vst.msk [vmem:[#allocation2 + $0x68] sm:$0xff] %vm210, %v190
  %225 = vst.msk [vmem:[#allocation2 + $0x70] sm:$0xff] %vm210, %v193
  %226 = vst.msk [vmem:[#allocation2 + $0x78] sm:$0xff] %vm210, %v196
  %227 = vst.msk [vmem:[#allocation2 + $0x80] sm:$0xff] %vm210, %v199
  %228 = vst.msk [vmem:[#allocation2 + $0x88] sm:$0xff] %vm210, %v202
  %229 = vst.msk [vmem:[#allocation2 + $0x90] sm:$0xff] %vm210, %v205
  %230 = vst.msk [vmem:[#allocation2 + $0x98] sm:$0xff] %vm210, %v208
  %v231 = vld [vmem:[#allocation2] sm:$0xff]
  %vm232 = vcmask 162816
  %v234 = vsel %vm232, 0.0, 0
  %vm236 = vcmask 1043456
  %v238 = vsel %vm236, %v33, 0
  %240 = vmatpush.msra.mxu0 0.0
  %241 = vmatpush.msra.mxu0 0.0
  %242 = vmatpush.msra.mxu0 0.0
  %243 = vmatpush.msra.mxu0 0.0
  %244 = vmatpush.msra.mxu0 0.0
  %245 = vmatpush.msra.mxu0 0.0
  %246 = vmatpush.msra.mxu0 0.0
  %247 = vmatpush.msra.mxu0 0.0
  %248 = vmatpush.msra.mxu0 0.0
  %249 = vmatpush.msra.mxu0 0.0
  %250 = vmatpush.msra.mxu0 0.0
  %251 = vmatpush.msra.mxu0 0.0
  %252 = vmatpush.msra.mxu0 0.0
  %253 = vmatpush.msra.mxu0 %v238
  %254 = vmatpush.msra.mxu0 %v32
  %255 = vmatpush.msra.mxu0 %v31
  %256 = vmatmul.f32.gmra.mxu0 %v234
  %v257 = vpop.f32.mrf.mxu0
  %v258 = vadd.f32 0.0, %v257
  %259 = vdwg.mxu0
  %v260 = vadd.f32 %v231, %v258
  %v261 = vmul.f32 %v260, 0.5
  %v262 = vtanh.pop %v261
  %v263 = vmul.f32 %v262, 0.5
  %v264 = vadd.f32 %v263, 0.5
  %v265 = vtanh.pop %v260
  %v266 = vmul.f32 %v264, 0.0
  %268 = vrot.lane.b32.xlu0 %v265, 88
  %v269 = vpop.permute.xlu0 %268
  %v271 = vmul.f32 %v264, %v269
  %273 = vrot.lane.b32.xlu0 %v271, 20
  %v274 = vpop.permute.xlu0 %273
  %v276 = vadd.f32 %v266, %v274
  %v277 = vtanh.pop %v276
  %279 = vrot.lane.b32.xlu0 %v277, 40
  %v280 = vpop.permute.xlu0 %279
  %v282 = vmul.f32 %v264, %v280
  %284 = vrot.lane.b32.xlu0 %v282, 68
  %v285 = vpop.permute.xlu0 %284
  %v287 = vsel %vm232, %v285, 0.0
  %vm288 = vcmask 326656
  %v290 = vsel %vm288, %v287, 0
  %292 = vmatpush.msra.mxu0 0.0
  %293 = vmatpush.msra.mxu0 0.0
  %294 = vmatpush.msra.mxu0 0.0
  %295 = vmatpush.msra.mxu0 0.0
  %296 = vmatpush.msra.mxu0 0.0
  %297 = vmatpush.msra.mxu0 0.0
  %298 = vmatpush.msra.mxu0 0.0
  %299 = vmatpush.msra.mxu0 0.0
  %300 = vmatpush.msra.mxu0 0.0
  %301 = vmatpush.msra.mxu0 0.0
  %302 = vmatpush.msra.mxu0 0.0
  %303 = vmatpush.msra.mxu0 %v38
  %304 = vmatpush.msra.mxu0 %v37
  %305 = vmatpush.msra.mxu0 %v36
  %306 = vmatpush.msra.mxu0 %v35
  %307 = vmatpush.msra.mxu0 %v34
  %308 = vmatmul.f32.gmra.mxu0 %v290
  %v309 = vpop.f32.mrf.mxu0
  %v310 = vadd.f32 %v41, %v309
  %311 = vdwg.mxu0
  %v312 = vmul.f32 %v310, 0.5
  %v313 = vtanh.pop %v312
  %v314 = vmul.f32 %v313, 0.5
  %v315 = vadd.f32 %v314, 0.5
  %v316 = vtanh.pop %v310
  %v317 = vmul.f32 %v315, 0.0
  %319 = vrot.lane.b32.xlu0 %v316, 88
  %v320 = vpop.permute.xlu0 %319
  %v322 = vmul.f32 %v315, %v320
  %324 = vrot.lane.b32.xlu0 %v322, 20
  %v325 = vpop.permute.xlu0 %324
  %v327 = vadd.f32 %v317, %v325
  %v328 = vtanh.pop %v327
  %330 = vrot.lane.b32.xlu0 %v328, 40
  %v331 = vpop.permute.xlu0 %330
  %v333 = vmul.f32 %v315, %v331
  %335 = vrot.lane.b32.xlu0 %v333, 68
  %v336 = vpop.permute.xlu0 %335
  %338 = vst.msk [vmem:[#allocation3] sm:$0xff] %vm232, %v336
  %v339 = vld [vmem:[#allocation2 + $0x8] sm:$0xff]
  %v340 = vsel %vm232, %v285, 0
  %342 = vmatpush.msra.mxu0 0.0
  %343 = vmatpush.msra.mxu0 0.0
  %344 = vmatpush.msra.mxu0 0.0
  %345 = vmatpush.msra.mxu0 0.0
  %346 = vmatpush.msra.mxu0 0.0
  %347 = vmatpush.msra.mxu0 0.0
  %348 = vmatpush.msra.mxu0 0.0
  %349 = vmatpush.msra.mxu0 0.0
  %350 = vmatpush.msra.mxu0 0.0
  %351 = vmatpush.msra.mxu0 0.0
  %352 = vmatpush.msra.mxu0 0.0
  %353 = vmatpush.msra.mxu0 0.0
  %354 = vmatpush.msra.mxu0 0.0
  %355 = vmatpush.msra.mxu0 %v238
  %356 = vmatpush.msra.mxu0 %v32
  %357 = vmatpush.msra.mxu0 %v31
  %358 = vmatmul.f32.gmra.mxu0 %v340
  %v359 = vpop.f32.mrf.mxu0
  %v360 = vadd.f32 0.0, %v359
  %361 = vdwg.mxu0
  %v362 = vadd.f32 %v339, %v360
  %v363 = vmul.f32 %v362, 0.5
  %v364 = vtanh.pop %v363
  %v365 = vmul.f32 %v364, 0.5
  %v366 = vadd.f32 %v365, 0.5
  %v367 = vtanh.pop %v362
  %v368 = vmul.f32 %v366, %v276
  %370 = vrot.lane.b32.xlu0 %v367, 88
  %v371 = vpop.permute.xlu0 %370
  %v373 = vmul.f32 %v366, %v371
  %375 = vrot.lane.b32.xlu0 %v373, 20
  %v376 = vpop.permute.xlu0 %375
  %v378 = vadd.f32 %v368, %v376
  %v379 = vtanh.pop %v378
  %381 = vrot.lane.b32.xlu0 %v379, 40
  %v382 = vpop.permute.xlu0 %381
  %v384 = vmul.f32 %v366, %v382
  %386 = vrot.lane.b32.xlu0 %v384, 68
  %v387 = vpop.permute.xlu0 %386
  %389 = vrot.lane.b32.xlu0 %v333, 88
  %v390 = vpop.permute.xlu0 %389
  %v392 = vsel %vm232, %v387, %v390
  %v394 = vsel %vm288, %v392, 0
  %396 = vmatpush.msra.mxu0 0.0
  %397 = vmatpush.msra.mxu0 0.0
  %398 = vmatpush.msra.mxu0 0.0
  %399 = vmatpush.msra.mxu0 0.0
  %400 = vmatpush.msra.mxu0 0.0
  %401 = vmatpush.msra.mxu0 0.0
  %402 = vmatpush.msra.mxu0 0.0
  %403 = vmatpush.msra.mxu0 0.0
  %404 = vmatpush.msra.mxu0 0.0
  %405 = vmatpush.msra.mxu0 0.0
  %406 = vmatpush.msra.mxu0 0.0
  %407 = vmatpush.msra.mxu0 %v38
  %408 = vmatpush.msra.mxu0 %v37
  %409 = vmatpush.msra.mxu0 %v36
  %410 = vmatpush.msra.mxu0 %v35
  %411 = vmatpush.msra.mxu0 %v34
  %412 = vmatmul.f32.gmra.mxu0 %v394
  %v413 = vpop.f32.mrf.mxu0
  %v414 = vadd.f32 %v41, %v413
  %415 = vdwg.mxu0
  %v416 = vmul.f32 %v414, 0.5
  %v417 = vtanh.pop %v416
  %v418 = vmul.f32 %v417, 0.5
  %v419 = vadd.f32 %v418, 0.5
  %v420 = vtanh.pop %v414
  %v421 = vmul.f32 %v419, %v327
  %423 = vrot.lane.b32.xlu0 %v420, 88
  %v424 = vpop.permute.xlu0 %423
  %v426 = vmul.f32 %v419, %v424
  %428 = vrot.lane.b32.xlu0 %v426, 20
  %v429 = vpop.permute.xlu0 %428
  %v431 = vadd.f32 %v421, %v429
  %v432 = vtanh.pop %v431
  %434 = vrot.lane.b32.xlu0 %v432, 40
  %v435 = vpop.permute.xlu0 %434
  %v437 = vmul.f32 %v419, %v435
  %439 = vrot.lane.b32.xlu0 %v437, 68
  %v440 = vpop.permute.xlu0 %439
  %442 = vst.msk [vmem:[#allocation3 + $0x8] sm:$0xff] %vm232, %v440
  %v443 = vld [vmem:[#allocation2 + $0x10] sm:$0xff]
  %v444 = vsel %vm232, %v387, 0
  %446 = vmatpush.msra.mxu0 0.0
  %447 = vmatpush.msra.mxu0 0.0
  %448 = vmatpush.msra.mxu0 0.0
  %449 = vmatpush.msra.mxu0 0.0
  %450 = vmatpush.msra.mxu0 0.0
  %451 = vmatpush.msra.mxu0 0.0
  %452 = vmatpush.msra.mxu0 0.0
  %453 = vmatpush.msra.mxu0 0.0
  %454 = vmatpush.msra.mxu0 0.0
  %455 = vmatpush.msra.mxu0 0.0
  %456 = vmatpush.msra.mxu0 0.0
  %457 = vmatpush.msra.mxu0 0.0
  %458 = vmatpush.msra.mxu0 0.0
  %459 = vmatpush.msra.mxu0 %v238
  %460 = vmatpush.msra.mxu0 %v32
  %461 = vmatpush.msra.mxu0 %v31
  %462 = vmatmul.f32.gmra.mxu0 %v444
  %v463 = vpop.f32.mrf.mxu0
  %v464 = vadd.f32 0.0, %v463
  %465 = vdwg.mxu0
  %v466 = vadd.f32 %v443, %v464
  %v467 = vmul.f32 %v466, 0.5
  %v468 = vtanh.pop %v467
  %v469 = vmul.f32 %v468, 0.5
  %v470 = vadd.f32 %v469, 0.5
  %v471 = vtanh.pop %v466
  %v472 = vmul.f32 %v470, %v378
  %474 = vrot.lane.b32.xlu0 %v471, 88
  %v475 = vpop.permute.xlu0 %474
  %v477 = vmul.f32 %v470, %v475
  %479 = vrot.lane.b32.xlu0 %v477, 20
  %v480 = vpop.permute.xlu0 %479
  %v482 = vadd.f32 %v472, %v480
  %v483 = vtanh.pop %v482
  %485 = vrot.lane.b32.xlu0 %v483, 40
  %v486 = vpop.permute.xlu0 %485
  %v488 = vmul.f32 %v470, %v486
  %490 = vrot.lane.b32.xlu0 %v488, 68
  %v491 = vpop.permute.xlu0 %490
  %493 = vrot.lane.b32.xlu0 %v437, 88
  %v494 = vpop.permute.xlu0 %493
  %v496 = vsel %vm232, %v491, %v494
  %v498 = vsel %vm288, %v496, 0
  %500 = vmatpush.msra.mxu0 0.0
  %501 = vmatpush.msra.mxu0 0.0
  %502 = vmatpush.msra.mxu0 0.0
  %503 = vmatpush.msra.mxu0 0.0
  %504 = vmatpush.msra.mxu0 0.0
  %505 = vmatpush.msra.mxu0 0.0
  %506 = vmatpush.msra.mxu0 0.0
  %507 = vmatpush.msra.mxu0 0.0
  %508 = vmatpush.msra.mxu0 0.0
  %509 = vmatpush.msra.mxu0 0.0
  %510 = vmatpush.msra.mxu0 0.0
  %511 = vmatpush.msra.mxu0 %v38
  %512 = vmatpush.msra.mxu0 %v37
  %513 = vmatpush.msra.mxu0 %v36
  %514 = vmatpush.msra.mxu0 %v35
  %515 = vmatpush.msra.mxu0 %v34
  %516 = vmatmul.f32.gmra.mxu0 %v498
  %v517 = vpop.f32.mrf.mxu0
  %v518 = vadd.f32 %v41, %v517
  %519 = vdwg.mxu0
  %v520 = vmul.f32 %v518, 0.5
  %v521 = vtanh.pop %v520
  %v522 = vmul.f32 %v521, 0.5
  %v523 = vadd.f32 %v522, 0.5
  %v524 = vtanh.pop %v518
  %v525 = vmul.f32 %v523, %v431
  %527 = vrot.lane.b32.xlu0 %v524, 88
  %v528 = vpop.permute.xlu0 %527
  %v530 = vmul.f32 %v523, %v528
  %532 = vrot.lane.b32.xlu0 %v530, 20
  %v533 = vpop.permute.xlu0 %532
  %v535 = vadd.f32 %v525, %v533
  %v536 = vtanh.pop %v535
  %538 = vrot.lane.b32.xlu0 %v536, 40
  %v539 = vpop.permute.xlu0 %538
  %v541 = vmul.f32 %v523, %v539
  %543 = vrot.lane.b32.xlu0 %v541, 68
  %v544 = vpop.permute.xlu0 %543
  %546 = vst.msk [vmem:[#allocation3 + $0x10] sm:$0xff] %vm232, %v544
  %v547 = vld [vmem:[#allocation2 + $0x18] sm:$0xff]
  %v548 = vsel %vm232, %v491, 0
  %550 = vmatpush.msra.mxu0 0.0
  %551 = vmatpush.msra.mxu0 0.0
  %552 = vmatpush.msra.mxu0 0.0
  %553 = vmatpush.msra.mxu0 0.0
  %554 = vmatpush.msra.mxu0 0.0
  %555 = vmatpush.msra.mxu0 0.0
  %556 = vmatpush.msra.mxu0 0.0
  %557 = vmatpush.msra.mxu0 0.0
  %558 = vmatpush.msra.mxu0 0.0
  %559 = vmatpush.msra.mxu0 0.0
  %560 = vmatpush.msra.mxu0 0.0
  %561 = vmatpush.msra.mxu0 0.0
  %562 = vmatpush.msra.mxu0 0.0
  %563 = vmatpush.msra.mxu0 %v238
  %564 = vmatpush.msra.mxu0 %v32
  %565 = vmatpush.msra.mxu0 %v31
  %566 = vmatmul.f32.gmra.mxu0 %v548
  %v567 = vpop.f32.mrf.mxu0
  %v568 = vadd.f32 0.0, %v567
  %569 = vdwg.mxu0
  %v570 = vadd.f32 %v547, %v568
  %v571 = vmul.f32 %v570, 0.5
  %v572 = vtanh.pop %v571
  %v573 = vmul.f32 %v572, 0.5
  %v574 = vadd.f32 %v573, 0.5
  %v575 = vtanh.pop %v570
  %v576 = vmul.f32 %v574, %v482
  %578 = vrot.lane.b32.xlu0 %v575, 88
  %v579 = vpop.permute.xlu0 %578
  %v581 = vmul.f32 %v574, %v579
  %583 = vrot.lane.b32.xlu0 %v581, 20
  %v584 = vpop.permute.xlu0 %583
  %v586 = vadd.f32 %v576, %v584
  %v587 = vtanh.pop %v586
  %589 = vrot.lane.b32.xlu0 %v587, 40
  %v590 = vpop.permute.xlu0 %589
  %v592 = vmul.f32 %v574, %v590
  %594 = vrot.lane.b32.xlu0 %v592, 68
  %v595 = vpop.permute.xlu0 %594
  %597 = vrot.lane.b32.xlu0 %v541, 88
  %v598 = vpop.permute.xlu0 %597
  %v600 = vsel %vm232, %v595, %v598
  %v602 = vsel %vm288, %v600, 0
  %604 = vmatpush.msra.mxu0 0.0
  %605 = vmatpush.msra.mxu0 0.0
  %606 = vmatpush.msra.mxu0 0.0
  %607 = vmatpush.msra.mxu0 0.0
  %608 = vmatpush.msra.mxu0 0.0
  %609 = vmatpush.msra.mxu0 0.0
  %610 = vmatpush.msra.mxu0 0.0
  %611 = vmatpush.msra.mxu0 0.0
  %612 = vmatpush.msra.mxu0 0.0
  %613 = vmatpush.msra.mxu0 0.0
  %614 = vmatpush.msra.mxu0 0.0
  %615 = vmatpush.msra.mxu0 %v38
  %616 = vmatpush.msra.mxu0 %v37
  %617 = vmatpush.msra.mxu0 %v36
  %618 = vmatpush.msra.mxu0 %v35
  %619 = vmatpush.msra.mxu0 %v34
  %620 = vmatmul.f32.gmra.mxu0 %v602
  %v621 = vpop.f32.mrf.mxu0
  %v622 = vadd.f32 %v41, %v621
  %623 = vdwg.mxu0
  %v624 = vmul.f32 %v622, 0.5
  %v625 = vtanh.pop %v624
  %v626 = vmul.f32 %v625, 0.5
  %v627 = vadd.f32 %v626, 0.5
  %v628 = vtanh.pop %v622
  %v629 = vmul.f32 %v627, %v535
  %631 = vrot.lane.b32.xlu0 %v628, 88
  %v632 = vpop.permute.xlu0 %631
  %v634 = vmul.f32 %v627, %v632
  %636 = vrot.lane.b32.xlu0 %v634, 20
  %v637 = vpop.permute.xlu0 %636
  %v639 = vadd.f32 %v629, %v637
  %v640 = vtanh.pop %v639
  %642 = vrot.lane.b32.xlu0 %v640, 40
  %v643 = vpop.permute.xlu0 %642
  %v645 = vmul.f32 %v627, %v643
  %647 = vrot.lane.b32.xlu0 %v645, 68
  %v648 = vpop.permute.xlu0 %647
  %650 = vst.msk [vmem:[#allocation3 + $0x18] sm:$0xff] %vm232, %v648
  %v651 = vld [vmem:[#allocation2 + $0x20] sm:$0xff]
  %v652 = vsel %vm232, %v595, 0
  %654 = vmatpush.msra.mxu0 0.0
  %655 = vmatpush.msra.mxu0 0.0
  %656 = vmatpush.msra.mxu0 0.0
  %657 = vmatpush.msra.mxu0 0.0
  %658 = vmatpush.msra.mxu0 0.0
  %659 = vmatpush.msra.mxu0 0.0
  %660 = vmatpush.msra.mxu0 0.0
  %661 = vmatpush.msra.mxu0 0.0
  %662 = vmatpush.msra.mxu0 0.0
  %663 = vmatpush.msra.mxu0 0.0
  %664 = vmatpush.msra.mxu0 0.0
  %665 = vmatpush.msra.mxu0 0.0
  %666 = vmatpush.msra.mxu0 0.0
  %667 = vmatpush.msra.mxu0 %v238
  %668 = vmatpush.msra.mxu0 %v32
  %669 = vmatpush.msra.mxu0 %v31
  %670 = vmatmul.f32.gmra.mxu0 %v652
  %v671 = vpop.f32.mrf.mxu0
  %v672 = vadd.f32 0.0, %v671
  %673 = vdwg.mxu0
  %v674 = vadd.f32 %v651, %v672
  %v675 = vmul.f32 %v674, 0.5
  %v676 = vtanh.pop %v675
  %v677 = vmul.f32 %v676, 0.5
  %v678 = vadd.f32 %v677, 0.5
  %v679 = vtanh.pop %v674
  %v680 = vmul.f32 %v678, %v586
  %682 = vrot.lane.b32.xlu0 %v679, 88
  %v683 = vpop.permute.xlu0 %682
  %v685 = vmul.f32 %v678, %v683
  %687 = vrot.lane.b32.xlu0 %v685, 20
  %v688 = vpop.permute.xlu0 %687
  %v690 = vadd.f32 %v680, %v688
  %v691 = vtanh.pop %v690
  %693 = vrot.lane.b32.xlu0 %v691, 40
  %v694 = vpop.permute.xlu0 %693
  %v696 = vmul.f32 %v678, %v694
  %698 = vrot.lane.b32.xlu0 %v696, 68
  %v699 = vpop.permute.xlu0 %698
  %701 = vrot.lane.b32.xlu0 %v645, 88
  %v702 = vpop.permute.xlu0 %701
  %v704 = vsel %vm232, %v699, %v702
  %v706 = vsel %vm288, %v704, 0
  %708 = vmatpush.msra.mxu0 0.0
  %709 = vmatpush.msra.mxu0 0.0
  %710 = vmatpush.msra.mxu0 0.0
  %711 = vmatpush.msra.mxu0 0.0
  %712 = vmatpush.msra.mxu0 0.0
  %713 = vmatpush.msra.mxu0 0.0
  %714 = vmatpush.msra.mxu0 0.0
  %715 = vmatpush.msra.mxu0 0.0
  %716 = vmatpush.msra.mxu0 0.0
  %717 = vmatpush.msra.mxu0 0.0
  %718 = vmatpush.msra.mxu0 0.0
  %719 = vmatpush.msra.mxu0 %v38
  %720 = vmatpush.msra.mxu0 %v37
  %721 = vmatpush.msra.mxu0 %v36
  %722 = vmatpush.msra.mxu0 %v35
  %723 = vmatpush.msra.mxu0 %v34
  %724 = vmatmul.f32.gmra.mxu0 %v706
  %v725 = vpop.f32.mrf.mxu0
  %v726 = vadd.f32 %v41, %v725
  %727 = vdwg.mxu0
  %v728 = vmul.f32 %v726, 0.5
  %v729 = vtanh.pop %v728
  %v730 = vmul.f32 %v729, 0.5
  %v731 = vadd.f32 %v730, 0.5
  %v732 = vtanh.pop %v726
  %v733 = vmul.f32 %v731, %v639
  %735 = vrot.lane.b32.xlu0 %v732, 88
  %v736 = vpop.permute.xlu0 %735
  %v738 = vmul.f32 %v731, %v736
  %740 = vrot.lane.b32.xlu0 %v738, 20
  %v741 = vpop.permute.xlu0 %740
  %v743 = vadd.f32 %v733, %v741
  %v744 = vtanh.pop %v743
  %746 = vrot.lane.b32.xlu0 %v744, 40
  %v747 = vpop.permute.xlu0 %746
  %v749 = vmul.f32 %v731, %v747
  %751 = vrot.lane.b32.xlu0 %v749, 68
  %v752 = vpop.permute.xlu0 %751
  %754 = vst.msk [vmem:[#allocation3 + $0x20] sm:$0xff] %vm232, %v752
  %v755 = vld [vmem:[#allocation2 + $0x28] sm:$0xff]
  %v756 = vsel %vm232, %v699, 0
  %758 = vmatpush.msra.mxu0 0.0
  %759 = vmatpush.msra.mxu0 0.0
  %760 = vmatpush.msra.mxu0 0.0
  %761 = vmatpush.msra.mxu0 0.0
  %762 = vmatpush.msra.mxu0 0.0
  %763 = vmatpush.msra.mxu0 0.0
  %764 = vmatpush.msra.mxu0 0.0
  %765 = vmatpush.msra.mxu0 0.0
  %766 = vmatpush.msra.mxu0 0.0
  %767 = vmatpush.msra.mxu0 0.0
  %768 = vmatpush.msra.mxu0 0.0
  %769 = vmatpush.msra.mxu0 0.0
  %770 = vmatpush.msra.mxu0 0.0
  %771 = vmatpush.msra.mxu0 %v238
  %772 = vmatpush.msra.mxu0 %v32
  %773 = vmatpush.msra.mxu0 %v31
  %774 = vmatmul.f32.gmra.mxu0 %v756
  %v775 = vpop.f32.mrf.mxu0
  %v776 = vadd.f32 0.0, %v775
  %777 = vdwg.mxu0
  %v778 = vadd.f32 %v755, %v776
  %v779 = vmul.f32 %v778, 0.5
  %v780 = vtanh.pop %v779
  %v781 = vmul.f32 %v780, 0.5
  %v782 = vadd.f32 %v781, 0.5
  %v783 = vtanh.pop %v778
  %v784 = vmul.f32 %v782, %v690
  %786 = vrot.lane.b32.xlu0 %v783, 88
  %v787 = vpop.permute.xlu0 %786
  %v789 = vmul.f32 %v782, %v787
  %791 = vrot.lane.b32.xlu0 %v789, 20
  %v792 = vpop.permute.xlu0 %791
  %v794 = vadd.f32 %v784, %v792
  %v795 = vtanh.pop %v794
  %797 = vrot.lane.b32.xlu0 %v795, 40
  %v798 = vpop.permute.xlu0 %797
  %v800 = vmul.f32 %v782, %v798
  %802 = vrot.lane.b32.xlu0 %v800, 68
  %v803 = vpop.permute.xlu0 %802
  %805 = vrot.lane.b32.xlu0 %v749, 88
  %v806 = vpop.permute.xlu0 %805
  %v808 = vsel %vm232, %v803, %v806
  %v810 = vsel %vm288, %v808, 0
  %812 = vmatpush.msra.mxu0 0.0
  %813 = vmatpush.msra.mxu0 0.0
  %814 = vmatpush.msra.mxu0 0.0
  %815 = vmatpush.msra.mxu0 0.0
  %816 = vmatpush.msra.mxu0 0.0
  %817 = vmatpush.msra.mxu0 0.0
  %818 = vmatpush.msra.mxu0 0.0
  %819 = vmatpush.msra.mxu0 0.0
  %820 = vmatpush.msra.mxu0 0.0
  %821 = vmatpush.msra.mxu0 0.0
  %822 = vmatpush.msra.mxu0 0.0
  %823 = vmatpush.msra.mxu0 %v38
  %824 = vmatpush.msra.mxu0 %v37
  %825 = vmatpush.msra.mxu0 %v36
  %826 = vmatpush.msra.mxu0 %v35
  %827 = vmatpush.msra.mxu0 %v34
  %828 = vmatmul.f32.gmra.mxu0 %v810
  %v829 = vpop.f32.mrf.mxu0
  %v830 = vadd.f32 %v41, %v829
  %831 = vdwg.mxu0
  %v832 = vmul.f32 %v830, 0.5
  %v833 = vtanh.pop %v832
  %v834 = vmul.f32 %v833, 0.5
  %v835 = vadd.f32 %v834, 0.5
  %v836 = vtanh.pop %v830
  %v837 = vmul.f32 %v835, %v743
  %839 = vrot.lane.b32.xlu0 %v836, 88
  %v840 = vpop.permute.xlu0 %839
  %v842 = vmul.f32 %v835, %v840
  %844 = vrot.lane.b32.xlu0 %v842, 20
  %v845 = vpop.permute.xlu0 %844
  %v847 = vadd.f32 %v837, %v845
  %v848 = vtanh.pop %v847
  %850 = vrot.lane.b32.xlu0 %v848, 40
  %v851 = vpop.permute.xlu0 %850
  %v853 = vmul.f32 %v835, %v851
  %855 = vrot.lane.b32.xlu0 %v853, 68
  %v856 = vpop.permute.xlu0 %855
  %858 = vst.msk [vmem:[#allocation3 + $0x28] sm:$0xff] %vm232, %v856
  %v859 = vld [vmem:[#allocation2 + $0x30] sm:$0xff]
  %v860 = vsel %vm232, %v803, 0
  %862 = vmatpush.msra.mxu0 0.0
  %863 = vmatpush.msra.mxu0 0.0
  %864 = vmatpush.msra.mxu0 0.0
  %865 = vmatpush.msra.mxu0 0.0
  %866 = vmatpush.msra.mxu0 0.0
  %867 = vmatpush.msra.mxu0 0.0
  %868 = vmatpush.msra.mxu0 0.0
  %869 = vmatpush.msra.mxu0 0.0
  %870 = vmatpush.msra.mxu0 0.0
  %871 = vmatpush.msra.mxu0 0.0
  %872 = vmatpush.msra.mxu0 0.0
  %873 = vmatpush.msra.mxu0 0.0
  %874 = vmatpush.msra.mxu0 0.0
  %875 = vmatpush.msra.mxu0 %v238
  %876 = vmatpush.msra.mxu0 %v32
  %877 = vmatpush.msra.mxu0 %v31
  %878 = vmatmul.f32.gmra.mxu0 %v860
  %v879 = vpop.f32.mrf.mxu0
  %v880 = vadd.f32 0.0, %v879
  %881 = vdwg.mxu0
  %v882 = vadd.f32 %v859, %v880
  %v883 = vmul.f32 %v882, 0.5
  %v884 = vtanh.pop %v883
  %v885 = vmul.f32 %v884, 0.5
  %v886 = vadd.f32 %v885, 0.5
  %v887 = vtanh.pop %v882
  %v888 = vmul.f32 %v886, %v794
  %890 = vrot.lane.b32.xlu0 %v887, 88
  %v891 = vpop.permute.xlu0 %890
  %v893 = vmul.f32 %v886, %v891
  %895 = vrot.lane.b32.xlu0 %v893, 20
  %v896 = vpop.permute.xlu0 %895
  %v898 = vadd.f32 %v888, %v896
  %v899 = vtanh.pop %v898
  %901 = vrot.lane.b32.xlu0 %v899, 40
  %v902 = vpop.permute.xlu0 %901
  %v904 = vmul.f32 %v886, %v902
  %906 = vrot.lane.b32.xlu0 %v904, 68
  %v907 = vpop.permute.xlu0 %906
  %909 = vrot.lane.b32.xlu0 %v853, 88
  %v910 = vpop.permute.xlu0 %909
  %v912 = vsel %vm232, %v907, %v910
  %v914 = vsel %vm288, %v912, 0
  %916 = vmatpush.msra.mxu0 0.0
  %917 = vmatpush.msra.mxu0 0.0
  %918 = vmatpush.msra.mxu0 0.0
  %919 = vmatpush.msra.mxu0 0.0
  %920 = vmatpush.msra.mxu0 0.0
  %921 = vmatpush.msra.mxu0 0.0
  %922 = vmatpush.msra.mxu0 0.0
  %923 = vmatpush.msra.mxu0 0.0
  %924 = vmatpush.msra.mxu0 0.0
  %925 = vmatpush.msra.mxu0 0.0
  %926 = vmatpush.msra.mxu0 0.0
  %927 = vmatpush.msra.mxu0 %v38
  %928 = vmatpush.msra.mxu0 %v37
  %929 = vmatpush.msra.mxu0 %v36
  %930 = vmatpush.msra.mxu0 %v35
  %931 = vmatpush.msra.mxu0 %v34
  %932 = vmatmul.f32.gmra.mxu0 %v914
  %v933 = vpop.f32.mrf.mxu0
  %v934 = vadd.f32 %v41, %v933
  %935 = vdwg.mxu0
  %v936 = vmul.f32 %v934, 0.5
  %v937 = vtanh.pop %v936
  %v938 = vmul.f32 %v937, 0.5
  %v939 = vadd.f32 %v938, 0.5
  %v940 = vtanh.pop %v934
  %v941 = vmul.f32 %v939, %v847
  %943 = vrot.lane.b32.xlu0 %v940, 88
  %v944 = vpop.permute.xlu0 %943
  %v946 = vmul.f32 %v939, %v944
  %948 = vrot.lane.b32.xlu0 %v946, 20
  %v949 = vpop.permute.xlu0 %948
  %v951 = vadd.f32 %v941, %v949
  %v952 = vtanh.pop %v951
  %954 = vrot.lane.b32.xlu0 %v952, 40
  %v955 = vpop.permute.xlu0 %954
  %v957 = vmul.f32 %v939, %v955
  %959 = vrot.lane.b32.xlu0 %v957, 68
  %v960 = vpop.permute.xlu0 %959
  %962 = vst.msk [vmem:[#allocation3 + $0x30] sm:$0xff] %vm232, %v960
  %v963 = vld [vmem:[#allocation2 + $0x38] sm:$0xff]
  %v964 = vsel %vm232, %v907, 0
  %966 = vmatpush.msra.mxu0 0.0
  %967 = vmatpush.msra.mxu0 0.0
  %968 = vmatpush.msra.mxu0 0.0
  %969 = vmatpush.msra.mxu0 0.0
  %970 = vmatpush.msra.mxu0 0.0
  %971 = vmatpush.msra.mxu0 0.0
  %972 = vmatpush.msra.mxu0 0.0
  %973 = vmatpush.msra.mxu0 0.0
  %974 = vmatpush.msra.mxu0 0.0
  %975 = vmatpush.msra.mxu0 0.0
  %976 = vmatpush.msra.mxu0 0.0
  %977 = vmatpush.msra.mxu0 0.0
  %978 = vmatpush.msra.mxu0 0.0
  %979 = vmatpush.msra.mxu0 %v238
  %980 = vmatpush.msra.mxu0 %v32
  %981 = vmatpush.msra.mxu0 %v31
  %982 = vmatmul.f32.gmra.mxu0 %v964
  %v983 = vpop.f32.mrf.mxu0
  %v984 = vadd.f32 0.0, %v983
  %985 = vdwg.mxu0
  %v986 = vadd.f32 %v963, %v984
  %v987 = vmul.f32 %v986, 0.5
  %v988 = vtanh.pop %v987
  %v989 = vmul.f32 %v988, 0.5
  %v990 = vadd.f32 %v989, 0.5
  %v991 = vtanh.pop %v986
  %v992 = vmul.f32 %v990, %v898
  %994 = vrot.lane.b32.xlu0 %v991, 88
  %v995 = vpop.permute.xlu0 %994
  %v997 = vmul.f32 %v990, %v995
  %999 = vrot.lane.b32.xlu0 %v997, 20
  %v1000 = vpop.permute.xlu0 %999
  %v1002 = vadd.f32 %v992, %v1000
  %v1003 = vtanh.pop %v1002
  %1005 = vrot.lane.b32.xlu0 %v1003, 40
  %v1006 = vpop.permute.xlu0 %1005
  %v1008 = vmul.f32 %v990, %v1006
  %1010 = vrot.lane.b32.xlu0 %v1008, 68
  %v1011 = vpop.permute.xlu0 %1010
  %1013 = vrot.lane.b32.xlu0 %v957, 88
  %v1014 = vpop.permute.xlu0 %1013
  %v1016 = vsel %vm232, %v1011, %v1014
  %v1018 = vsel %vm288, %v1016, 0
  %1020 = vmatpush.msra.mxu0 0.0
  %1021 = vmatpush.msra.mxu0 0.0
  %1022 = vmatpush.msra.mxu0 0.0
  %1023 = vmatpush.msra.mxu0 0.0
  %1024 = vmatpush.msra.mxu0 0.0
  %1025 = vmatpush.msra.mxu0 0.0
  %1026 = vmatpush.msra.mxu0 0.0
  %1027 = vmatpush.msra.mxu0 0.0
  %1028 = vmatpush.msra.mxu0 0.0
  %1029 = vmatpush.msra.mxu0 0.0
  %1030 = vmatpush.msra.mxu0 0.0
  %1031 = vmatpush.msra.mxu0 %v38
  %1032 = vmatpush.msra.mxu0 %v37
  %1033 = vmatpush.msra.mxu0 %v36
  %1034 = vmatpush.msra.mxu0 %v35
  %1035 = vmatpush.msra.mxu0 %v34
  %1036 = vmatmul.f32.gmra.mxu0 %v1018
  %v1037 = vpop.f32.mrf.mxu0
  %v1038 = vadd.f32 %v41, %v1037
  %1039 = vdwg.mxu0
  %v1040 = vmul.f32 %v1038, 0.5
  %v1041 = vtanh.pop %v1040
  %v1042 = vmul.f32 %v1041, 0.5
  %v1043 = vadd.f32 %v1042, 0.5
  %v1044 = vtanh.pop %v1038
  %v1045 = vmul.f32 %v1043, %v951
  %1047 = vrot.lane.b32.xlu0 %v1044, 88
  %v1048 = vpop.permute.xlu0 %1047
  %v1050 = vmul.f32 %v1043, %v1048
  %1052 = vrot.lane.b32.xlu0 %v1050, 20
  %v1053 = vpop.permute.xlu0 %1052
  %v1055 = vadd.f32 %v1045, %v1053
  %v1056 = vtanh.pop %v1055
  %1058 = vrot.lane.b32.xlu0 %v1056, 40
  %v1059 = vpop.permute.xlu0 %1058
  %v1061 = vmul.f32 %v1043, %v1059
  %1063 = vrot.lane.b32.xlu0 %v1061, 68
  %v1064 = vpop.permute.xlu0 %1063
  %1066 = vst.msk [vmem:[#allocation3 + $0x38] sm:$0xff] %vm232, %v1064
  %v1067 = vld [vmem:[#allocation2 + $0x40] sm:$0xff]
  %v1068 = vsel %vm232, %v1011, 0
  %1070 = vmatpush.msra.mxu0 0.0
  %1071 = vmatpush.msra.mxu0 0.0
  %1072 = vmatpush.msra.mxu0 0.0
  %1073 = vmatpush.msra.mxu0 0.0
  %1074 = vmatpush.msra.mxu0 0.0
  %1075 = vmatpush.msra.mxu0 0.0
  %1076 = vmatpush.msra.mxu0 0.0
  %1077 = vmatpush.msra.mxu0 0.0
  %1078 = vmatpush.msra.mxu0 0.0
  %1079 = vmatpush.msra.mxu0 0.0
  %1080 = vmatpush.msra.mxu0 0.0
  %1081 = vmatpush.msra.mxu0 0.0
  %1082 = vmatpush.msra.mxu0 0.0
  %1083 = vmatpush.msra.mxu0 %v238
  %1084 = vmatpush.msra.mxu0 %v32
  %1085 = vmatpush.msra.mxu0 %v31
  %1086 = vmatmul.f32.gmra.mxu0 %v1068
  %v1087 = vpop.f32.mrf.mxu0
  %v1088 = vadd.f32 0.0, %v1087
  %1089 = vdwg.mxu0
  %v1090 = vadd.f32 %v1067, %v1088
  %v1091 = vmul.f32 %v1090, 0.5
  %v1092 = vtanh.pop %v1091
  %v1093 = vmul.f32 %v1092, 0.5
  %v1094 = vadd.f32 %v1093, 0.5
  %v1095 = vtanh.pop %v1090
  %v1096 = vmul.f32 %v1094, %v1002
  %1098 = vrot.lane.b32.xlu0 %v1095, 88
  %v1099 = vpop.permute.xlu0 %1098
  %v1101 = vmul.f32 %v1094, %v1099
  %1103 = vrot.lane.b32.xlu0 %v1101, 20
  %v1104 = vpop.permute.xlu0 %1103
  %v1106 = vadd.f32 %v1096, %v1104
  %v1107 = vtanh.pop %v1106
  %1109 = vrot.lane.b32.xlu0 %v1107, 40
  %v1110 = vpop.permute.xlu0 %1109
  %v1112 = vmul.f32 %v1094, %v1110
  %1114 = vrot.lane.b32.xlu0 %v1112, 68
  %v1115 = vpop.permute.xlu0 %1114
  %1117 = vrot.lane.b32.xlu0 %v1061, 88
  %v1118 = vpop.permute.xlu0 %1117
  %v1120 = vsel %vm232, %v1115, %v1118
  %v1122 = vsel %vm288, %v1120, 0
  %1124 = vmatpush.msra.mxu0 0.0
  %1125 = vmatpush.msra.mxu0 0.0
  %1126 = vmatpush.msra.mxu0 0.0
  %1127 = vmatpush.msra.mxu0 0.0
  %1128 = vmatpush.msra.mxu0 0.0
  %1129 = vmatpush.msra.mxu0 0.0
  %1130 = vmatpush.msra.mxu0 0.0
  %1131 = vmatpush.msra.mxu0 0.0
  %1132 = vmatpush.msra.mxu0 0.0
  %1133 = vmatpush.msra.mxu0 0.0
  %1134 = vmatpush.msra.mxu0 0.0
  %1135 = vmatpush.msra.mxu0 %v38
  %1136 = vmatpush.msra.mxu0 %v37
  %1137 = vmatpush.msra.mxu0 %v36
  %1138 = vmatpush.msra.mxu0 %v35
  %1139 = vmatpush.msra.mxu0 %v34
  %1140 = vmatmul.f32.gmra.mxu0 %v1122
  %v1141 = vpop.f32.mrf.mxu0
  %v1142 = vadd.f32 %v41, %v1141
  %1143 = vdwg.mxu0
  %v1144 = vmul.f32 %v1142, 0.5
  %v1145 = vtanh.pop %v1144
  %v1146 = vmul.f32 %v1145, 0.5
  %v1147 = vadd.f32 %v1146, 0.5
  %v1148 = vtanh.pop %v1142
  %v1149 = vmul.f32 %v1147, %v1055
  %1151 = vrot.lane.b32.xlu0 %v1148, 88
  %v1152 = vpop.permute.xlu0 %1151
  %v1154 = vmul.f32 %v1147, %v1152
  %1156 = vrot.lane.b32.xlu0 %v1154, 20
  %v1157 = vpop.permute.xlu0 %1156
  %v1159 = vadd.f32 %v1149, %v1157
  %v1160 = vtanh.pop %v1159
  %1162 = vrot.lane.b32.xlu0 %v1160, 40
  %v1163 = vpop.permute.xlu0 %1162
  %v1165 = vmul.f32 %v1147, %v1163
  %1167 = vrot.lane.b32.xlu0 %v1165, 68
  %v1168 = vpop.permute.xlu0 %1167
  %1170 = vst.msk [vmem:[#allocation3 + $0x40] sm:$0xff] %vm232, %v1168
  %v1171 = vld [vmem:[#allocation2 + $0x48] sm:$0xff]
  %v1172 = vsel %vm232, %v1115, 0
  %1174 = vmatpush.msra.mxu0 0.0
  %1175 = vmatpush.msra.mxu0 0.0
  %1176 = vmatpush.msra.mxu0 0.0
  %1177 = vmatpush.msra.mxu0 0.0
  %1178 = vmatpush.msra.mxu0 0.0
  %1179 = vmatpush.msra.mxu0 0.0
  %1180 = vmatpush.msra.mxu0 0.0
  %1181 = vmatpush.msra.mxu0 0.0
  %1182 = vmatpush.msra.mxu0 0.0
  %1183 = vmatpush.msra.mxu0 0.0
  %1184 = vmatpush.msra.mxu0 0.0
  %1185 = vmatpush.msra.mxu0 0.0
  %1186 = vmatpush.msra.mxu0 0.0
  %1187 = vmatpush.msra.mxu0 %v238
  %1188 = vmatpush.msra.mxu0 %v32
  %1189 = vmatpush.msra.mxu0 %v31
  %1190 = vmatmul.f32.gmra.mxu0 %v1172
  %v1191 = vpop.f32.mrf.mxu0
  %v1192 = vadd.f32 0.0, %v1191
  %1193 = vdwg.mxu0
  %v1194 = vadd.f32 %v1171, %v1192
  %v1195 = vmul.f32 %v1194, 0.5
  %v1196 = vtanh.pop %v1195
  %v1197 = vmul.f32 %v1196, 0.5
  %v1198 = vadd.f32 %v1197, 0.5
  %v1199 = vtanh.pop %v1194
  %v1200 = vmul.f32 %v1198, %v1106
  %1202 = vrot.lane.b32.xlu0 %v1199, 88
  %v1203 = vpop.permute.xlu0 %1202
  %v1205 = vmul.f32 %v1198, %v1203
  %1207 = vrot.lane.b32.xlu0 %v1205, 20
  %v1208 = vpop.permute.xlu0 %1207
  %v1210 = vadd.f32 %v1200, %v1208
  %v1211 = vtanh.pop %v1210
  %1213 = vrot.lane.b32.xlu0 %v1211, 40
  %v1214 = vpop.permute.xlu0 %1213
  %v1216 = vmul.f32 %v1198, %v1214
  %1218 = vrot.lane.b32.xlu0 %v1216, 68
  %v1219 = vpop.permute.xlu0 %1218
  %1221 = vrot.lane.b32.xlu0 %v1165, 88
  %v1222 = vpop.permute.xlu0 %1221
  %v1224 = vsel %vm232, %v1219, %v1222
  %v1226 = vsel %vm288, %v1224, 0
  %1228 = vmatpush.msra.mxu0 0.0
  %1229 = vmatpush.msra.mxu0 0.0
  %1230 = vmatpush.msra.mxu0 0.0
  %1231 = vmatpush.msra.mxu0 0.0
  %1232 = vmatpush.msra.mxu0 0.0
  %1233 = vmatpush.msra.mxu0 0.0
  %1234 = vmatpush.msra.mxu0 0.0
  %1235 = vmatpush.msra.mxu0 0.0
  %1236 = vmatpush.msra.mxu0 0.0
  %1237 = vmatpush.msra.mxu0 0.0
  %1238 = vmatpush.msra.mxu0 0.0
  %1239 = vmatpush.msra.mxu0 %v38
  %1240 = vmatpush.msra.mxu0 %v37
  %1241 = vmatpush.msra.mxu0 %v36
  %1242 = vmatpush.msra.mxu0 %v35
  %1243 = vmatpush.msra.mxu0 %v34
  %1244 = vmatmul.f32.gmra.mxu0 %v1226
  %v1245 = vpop.f32.mrf.mxu0
  %v1246 = vadd.f32 %v41, %v1245
  %1247 = vdwg.mxu0
  %v1248 = vmul.f32 %v1246, 0.5
  %v1249 = vtanh.pop %v1248
  %v1250 = vmul.f32 %v1249, 0.5
  %v1251 = vadd.f32 %v1250, 0.5
  %v1252 = vtanh.pop %v1246
  %v1253 = vmul.f32 %v1251, %v1159
  %1255 = vrot.lane.b32.xlu0 %v1252, 88
  %v1256 = vpop.permute.xlu0 %1255
  %v1258 = vmul.f32 %v1251, %v1256
  %1260 = vrot.lane.b32.xlu0 %v1258, 20
  %v1261 = vpop.permute.xlu0 %1260
  %v1263 = vadd.f32 %v1253, %v1261
  %v1264 = vtanh.pop %v1263
  %1266 = vrot.lane.b32.xlu0 %v1264, 40
  %v1267 = vpop.permute.xlu0 %1266
  %v1269 = vmul.f32 %v1251, %v1267
  %1271 = vrot.lane.b32.xlu0 %v1269, 68
  %v1272 = vpop.permute.xlu0 %1271
  %1274 = vst.msk [vmem:[#allocation3 + $0x48] sm:$0xff] %vm232, %v1272
  %v1275 = vld [vmem:[#allocation2 + $0x50] sm:$0xff]
  %v1276 = vsel %vm232, %v1219, 0
  %1278 = vmatpush.msra.mxu0 0.0
  %1279 = vmatpush.msra.mxu0 0.0
  %1280 = vmatpush.msra.mxu0 0.0
  %1281 = vmatpush.msra.mxu0 0.0
  %1282 = vmatpush.msra.mxu0 0.0
  %1283 = vmatpush.msra.mxu0 0.0
  %1284 = vmatpush.msra.mxu0 0.0
  %1285 = vmatpush.msra.mxu0 0.0
  %1286 = vmatpush.msra.mxu0 0.0
  %1287 = vmatpush.msra.mxu0 0.0
  %1288 = vmatpush.msra.mxu0 0.0
  %1289 = vmatpush.msra.mxu0 0.0
  %1290 = vmatpush.msra.mxu0 0.0
  %1291 = vmatpush.msra.mxu0 %v238
  %1292 = vmatpush.msra.mxu0 %v32
  %1293 = vmatpush.msra.mxu0 %v31
  %1294 = vmatmul.f32.gmra.mxu0 %v1276
  %v1295 = vpop.f32.mrf.mxu0
  %v1296 = vadd.f32 0.0, %v1295
  %1297 = vdwg.mxu0
  %v1298 = vadd.f32 %v1275, %v1296
  %v1299 = vmul.f32 %v1298, 0.5
  %v1300 = vtanh.pop %v1299
  %v1301 = vmul.f32 %v1300, 0.5
  %v1302 = vadd.f32 %v1301, 0.5
  %v1303 = vtanh.pop %v1298
  %v1304 = vmul.f32 %v1302, %v1210
  %1306 = vrot.lane.b32.xlu0 %v1303, 88
  %v1307 = vpop.permute.xlu0 %1306
  %v1309 = vmul.f32 %v1302, %v1307
  %1311 = vrot.lane.b32.xlu0 %v1309, 20
  %v1312 = vpop.permute.xlu0 %1311
  %v1314 = vadd.f32 %v1304, %v1312
  %v1315 = vtanh.pop %v1314
  %1317 = vrot.lane.b32.xlu0 %v1315, 40
  %v1318 = vpop.permute.xlu0 %1317
  %v1320 = vmul.f32 %v1302, %v1318
  %1322 = vrot.lane.b32.xlu0 %v1320, 68
  %v1323 = vpop.permute.xlu0 %1322
  %1325 = vrot.lane.b32.xlu0 %v1269, 88
  %v1326 = vpop.permute.xlu0 %1325
  %v1328 = vsel %vm232, %v1323, %v1326
  %v1330 = vsel %vm288, %v1328, 0
  %1332 = vmatpush.msra.mxu0 0.0
  %1333 = vmatpush.msra.mxu0 0.0
  %1334 = vmatpush.msra.mxu0 0.0
  %1335 = vmatpush.msra.mxu0 0.0
  %1336 = vmatpush.msra.mxu0 0.0
  %1337 = vmatpush.msra.mxu0 0.0
  %1338 = vmatpush.msra.mxu0 0.0
  %1339 = vmatpush.msra.mxu0 0.0
  %1340 = vmatpush.msra.mxu0 0.0
  %1341 = vmatpush.msra.mxu0 0.0
  %1342 = vmatpush.msra.mxu0 0.0
  %1343 = vmatpush.msra.mxu0 %v38
  %1344 = vmatpush.msra.mxu0 %v37
  %1345 = vmatpush.msra.mxu0 %v36
  %1346 = vmatpush.msra.mxu0 %v35
  %1347 = vmatpush.msra.mxu0 %v34
  %1348 = vmatmul.f32.gmra.mxu0 %v1330
  %v1349 = vpop.f32.mrf.mxu0
  %v1350 = vadd.f32 %v41, %v1349
  %1351 = vdwg.mxu0
  %v1352 = vmul.f32 %v1350, 0.5
  %v1353 = vtanh.pop %v1352
  %v1354 = vmul.f32 %v1353, 0.5
  %v1355 = vadd.f32 %v1354, 0.5
  %v1356 = vtanh.pop %v1350
  %v1357 = vmul.f32 %v1355, %v1263
  %1359 = vrot.lane.b32.xlu0 %v1356, 88
  %v1360 = vpop.permute.xlu0 %1359
  %v1362 = vmul.f32 %v1355, %v1360
  %1364 = vrot.lane.b32.xlu0 %v1362, 20
  %v1365 = vpop.permute.xlu0 %1364
  %v1367 = vadd.f32 %v1357, %v1365
  %v1368 = vtanh.pop %v1367
  %1370 = vrot.lane.b32.xlu0 %v1368, 40
  %v1371 = vpop.permute.xlu0 %1370
  %v1373 = vmul.f32 %v1355, %v1371
  %1375 = vrot.lane.b32.xlu0 %v1373, 68
  %v1376 = vpop.permute.xlu0 %1375
  %1378 = vst.msk [vmem:[#allocation3 + $0x50] sm:$0xff] %vm232, %v1376
  %v1379 = vld [vmem:[#allocation2 + $0x58] sm:$0xff]
  %v1380 = vsel %vm232, %v1323, 0
  %1382 = vmatpush.msra.mxu0 0.0
  %1383 = vmatpush.msra.mxu0 0.0
  %1384 = vmatpush.msra.mxu0 0.0
  %1385 = vmatpush.msra.mxu0 0.0
  %1386 = vmatpush.msra.mxu0 0.0
  %1387 = vmatpush.msra.mxu0 0.0
  %1388 = vmatpush.msra.mxu0 0.0
  %1389 = vmatpush.msra.mxu0 0.0
  %1390 = vmatpush.msra.mxu0 0.0
  %1391 = vmatpush.msra.mxu0 0.0
  %1392 = vmatpush.msra.mxu0 0.0
  %1393 = vmatpush.msra.mxu0 0.0
  %1394 = vmatpush.msra.mxu0 0.0
  %1395 = vmatpush.msra.mxu0 %v238
  %1396 = vmatpush.msra.mxu0 %v32
  %1397 = vmatpush.msra.mxu0 %v31
  %1398 = vmatmul.f32.gmra.mxu0 %v1380
  %v1399 = vpop.f32.mrf.mxu0
  %v1400 = vadd.f32 0.0, %v1399
  %1401 = vdwg.mxu0
  %v1402 = vadd.f32 %v1379, %v1400
  %v1403 = vmul.f32 %v1402, 0.5
  %v1404 = vtanh.pop %v1403
  %v1405 = vmul.f32 %v1404, 0.5
  %v1406 = vadd.f32 %v1405, 0.5
  %v1407 = vtanh.pop %v1402
  %v1408 = vmul.f32 %v1406, %v1314
  %1410 = vrot.lane.b32.xlu0 %v1407, 88
  %v1411 = vpop.permute.xlu0 %1410
  %v1413 = vmul.f32 %v1406, %v1411
  %1415 = vrot.lane.b32.xlu0 %v1413, 20
  %v1416 = vpop.permute.xlu0 %1415
  %v1418 = vadd.f32 %v1408, %v1416
  %v1419 = vtanh.pop %v1418
  %1421 = vrot.lane.b32.xlu0 %v1419, 40
  %v1422 = vpop.permute.xlu0 %1421
  %v1424 = vmul.f32 %v1406, %v1422
  %1426 = vrot.lane.b32.xlu0 %v1424, 68
  %v1427 = vpop.permute.xlu0 %1426
  %1429 = vrot.lane.b32.xlu0 %v1373, 88
  %v1430 = vpop.permute.xlu0 %1429
  %v1432 = vsel %vm232, %v1427, %v1430
  %v1434 = vsel %vm288, %v1432, 0
  %1436 = vmatpush.msra.mxu0 0.0
  %1437 = vmatpush.msra.mxu0 0.0
  %1438 = vmatpush.msra.mxu0 0.0
  %1439 = vmatpush.msra.mxu0 0.0
  %1440 = vmatpush.msra.mxu0 0.0
  %1441 = vmatpush.msra.mxu0 0.0
  %1442 = vmatpush.msra.mxu0 0.0
  %1443 = vmatpush.msra.mxu0 0.0
  %1444 = vmatpush.msra.mxu0 0.0
  %1445 = vmatpush.msra.mxu0 0.0
  %1446 = vmatpush.msra.mxu0 0.0
  %1447 = vmatpush.msra.mxu0 %v38
  %1448 = vmatpush.msra.mxu0 %v37
  %1449 = vmatpush.msra.mxu0 %v36
  %1450 = vmatpush.msra.mxu0 %v35
  %1451 = vmatpush.msra.mxu0 %v34
  %1452 = vmatmul.f32.gmra.mxu0 %v1434
  %v1453 = vpop.f32.mrf.mxu0
  %v1454 = vadd.f32 %v41, %v1453
  %1455 = vdwg.mxu0
  %v1456 = vmul.f32 %v1454, 0.5
  %v1457 = vtanh.pop %v1456
  %v1458 = vmul.f32 %v1457, 0.5
  %v1459 = vadd.f32 %v1458, 0.5
  %v1460 = vtanh.pop %v1454
  %v1461 = vmul.f32 %v1459, %v1367
  %1463 = vrot.lane.b32.xlu0 %v1460, 88
  %v1464 = vpop.permute.xlu0 %1463
  %v1466 = vmul.f32 %v1459, %v1464
  %1468 = vrot.lane.b32.xlu0 %v1466, 20
  %v1469 = vpop.permute.xlu0 %1468
  %v1471 = vadd.f32 %v1461, %v1469
  %v1472 = vtanh.pop %v1471
  %1474 = vrot.lane.b32.xlu0 %v1472, 40
  %v1475 = vpop.permute.xlu0 %1474
  %v1477 = vmul.f32 %v1459, %v1475
  %1479 = vrot.lane.b32.xlu0 %v1477, 68
  %v1480 = vpop.permute.xlu0 %1479
  %1482 = vst.msk [vmem:[#allocation3 + $0x58] sm:$0xff] %vm232, %v1480
  %v1483 = vld [vmem:[#allocation2 + $0x60] sm:$0xff]
  %v1484 = vsel %vm232, %v1427, 0
  %1486 = vmatpush.msra.mxu0 0.0
  %1487 = vmatpush.msra.mxu0 0.0
  %1488 = vmatpush.msra.mxu0 0.0
  %1489 = vmatpush.msra.mxu0 0.0
  %1490 = vmatpush.msra.mxu0 0.0
  %1491 = vmatpush.msra.mxu0 0.0
  %1492 = vmatpush.msra.mxu0 0.0
  %1493 = vmatpush.msra.mxu0 0.0
  %1494 = vmatpush.msra.mxu0 0.0
  %1495 = vmatpush.msra.mxu0 0.0
  %1496 = vmatpush.msra.mxu0 0.0
  %1497 = vmatpush.msra.mxu0 0.0
  %1498 = vmatpush.msra.mxu0 0.0
  %1499 = vmatpush.msra.mxu0 %v238
  %1500 = vmatpush.msra.mxu0 %v32
  %1501 = vmatpush.msra.mxu0 %v31
  %1502 = vmatmul.f32.gmra.mxu0 %v1484
  %v1503 = vpop.f32.mrf.mxu0
  %v1504 = vadd.f32 0.0, %v1503
  %1505 = vdwg.mxu0
  %v1506 = vadd.f32 %v1483, %v1504
  %v1507 = vmul.f32 %v1506, 0.5
  %v1508 = vtanh.pop %v1507
  %v1509 = vmul.f32 %v1508, 0.5
  %v1510 = vadd.f32 %v1509, 0.5
  %v1511 = vtanh.pop %v1506
  %v1512 = vmul.f32 %v1510, %v1418
  %1514 = vrot.lane.b32.xlu0 %v1511, 88
  %v1515 = vpop.permute.xlu0 %1514
  %v1517 = vmul.f32 %v1510, %v1515
  %1519 = vrot.lane.b32.xlu0 %v1517, 20
  %v1520 = vpop.permute.xlu0 %1519
  %v1522 = vadd.f32 %v1512, %v1520
  %v1523 = vtanh.pop %v1522
  %1525 = vrot.lane.b32.xlu0 %v1523, 40
  %v1526 = vpop.permute.xlu0 %1525
  %v1528 = vmul.f32 %v1510, %v1526
  %1530 = vrot.lane.b32.xlu0 %v1528, 68
  %v1531 = vpop.permute.xlu0 %1530
  %1533 = vrot.lane.b32.xlu0 %v1477, 88
  %v1534 = vpop.permute.xlu0 %1533
  %v1536 = vsel %vm232, %v1531, %v1534
  %v1538 = vsel %vm288, %v1536, 0
  %1540 = vmatpush.msra.mxu0 0.0
  %1541 = vmatpush.msra.mxu0 0.0
  %1542 = vmatpush.msra.mxu0 0.0
  %1543 = vmatpush.msra.mxu0 0.0
  %1544 = vmatpush.msra.mxu0 0.0
  %1545 = vmatpush.msra.mxu0 0.0
  %1546 = vmatpush.msra.mxu0 0.0
  %1547 = vmatpush.msra.mxu0 0.0
  %1548 = vmatpush.msra.mxu0 0.0
  %1549 = vmatpush.msra.mxu0 0.0
  %1550 = vmatpush.msra.mxu0 0.0
  %1551 = vmatpush.msra.mxu0 %v38
  %1552 = vmatpush.msra.mxu0 %v37
  %1553 = vmatpush.msra.mxu0 %v36
  %1554 = vmatpush.msra.mxu0 %v35
  %1555 = vmatpush.msra.mxu0 %v34
  %1556 = vmatmul.f32.gmra.mxu0 %v1538
  %v1557 = vpop.f32.mrf.mxu0
  %v1558 = vadd.f32 %v41, %v1557
  %1559 = vdwg.mxu0
  %v1560 = vmul.f32 %v1558, 0.5
  %v1561 = vtanh.pop %v1560
  %v1562 = vmul.f32 %v1561, 0.5
  %v1563 = vadd.f32 %v1562, 0.5
  %v1564 = vtanh.pop %v1558
  %v1565 = vmul.f32 %v1563, %v1471
  %1567 = vrot.lane.b32.xlu0 %v1564, 88
  %v1568 = vpop.permute.xlu0 %1567
  %v1570 = vmul.f32 %v1563, %v1568
  %1572 = vrot.lane.b32.xlu0 %v1570, 20
  %v1573 = vpop.permute.xlu0 %1572
  %v1575 = vadd.f32 %v1565, %v1573
  %v1576 = vtanh.pop %v1575
  %1578 = vrot.lane.b32.xlu0 %v1576, 40
  %v1579 = vpop.permute.xlu0 %1578
  %v1581 = vmul.f32 %v1563, %v1579
  %1583 = vrot.lane.b32.xlu0 %v1581, 68
  %v1584 = vpop.permute.xlu0 %1583
  %1586 = vst.msk [vmem:[#allocation3 + $0x60] sm:$0xff] %vm232, %v1584
  %v1587 = vld [vmem:[#allocation2 + $0x68] sm:$0xff]
  %v1588 = vsel %vm232, %v1531, 0
  %1590 = vmatpush.msra.mxu0 0.0
  %1591 = vmatpush.msra.mxu0 0.0
  %1592 = vmatpush.msra.mxu0 0.0
  %1593 = vmatpush.msra.mxu0 0.0
  %1594 = vmatpush.msra.mxu0 0.0
  %1595 = vmatpush.msra.mxu0 0.0
  %1596 = vmatpush.msra.mxu0 0.0
  %1597 = vmatpush.msra.mxu0 0.0
  %1598 = vmatpush.msra.mxu0 0.0
  %1599 = vmatpush.msra.mxu0 0.0
  %1600 = vmatpush.msra.mxu0 0.0
  %1601 = vmatpush.msra.mxu0 0.0
  %1602 = vmatpush.msra.mxu0 0.0
  %1603 = vmatpush.msra.mxu0 %v238
  %1604 = vmatpush.msra.mxu0 %v32
  %1605 = vmatpush.msra.mxu0 %v31
  %1606 = vmatmul.f32.gmra.mxu0 %v1588
  %v1607 = vpop.f32.mrf.mxu0
  %v1608 = vadd.f32 0.0, %v1607
  %1609 = vdwg.mxu0
  %v1610 = vadd.f32 %v1587, %v1608
  %v1611 = vmul.f32 %v1610, 0.5
  %v1612 = vtanh.pop %v1611
  %v1613 = vmul.f32 %v1612, 0.5
  %v1614 = vadd.f32 %v1613, 0.5
  %v1615 = vtanh.pop %v1610
  %v1616 = vmul.f32 %v1614, %v1522
  %1618 = vrot.lane.b32.xlu0 %v1615, 88
  %v1619 = vpop.permute.xlu0 %1618
  %v1621 = vmul.f32 %v1614, %v1619
  %1623 = vrot.lane.b32.xlu0 %v1621, 20
  %v1624 = vpop.permute.xlu0 %1623
  %v1626 = vadd.f32 %v1616, %v1624
  %v1627 = vtanh.pop %v1626
  %1629 = vrot.lane.b32.xlu0 %v1627, 40
  %v1630 = vpop.permute.xlu0 %1629
  %v1632 = vmul.f32 %v1614, %v1630
  %1634 = vrot.lane.b32.xlu0 %v1632, 68
  %v1635 = vpop.permute.xlu0 %1634
  %1637 = vrot.lane.b32.xlu0 %v1581, 88
  %v1638 = vpop.permute.xlu0 %1637
  %v1640 = vsel %vm232, %v1635, %v1638
  %v1642 = vsel %vm288, %v1640, 0
  %1644 = vmatpush.msra.mxu0 0.0
  %1645 = vmatpush.msra.mxu0 0.0
  %1646 = vmatpush.msra.mxu0 0.0
  %1647 = vmatpush.msra.mxu0 0.0
  %1648 = vmatpush.msra.mxu0 0.0
  %1649 = vmatpush.msra.mxu0 0.0
  %1650 = vmatpush.msra.mxu0 0.0
  %1651 = vmatpush.msra.mxu0 0.0
  %1652 = vmatpush.msra.mxu0 0.0
  %1653 = vmatpush.msra.mxu0 0.0
  %1654 = vmatpush.msra.mxu0 0.0
  %1655 = vmatpush.msra.mxu0 %v38
  %1656 = vmatpush.msra.mxu0 %v37
  %1657 = vmatpush.msra.mxu0 %v36
  %1658 = vmatpush.msra.mxu0 %v35
  %1659 = vmatpush.msra.mxu0 %v34
  %1660 = vmatmul.f32.gmra.mxu0 %v1642
  %v1661 = vpop.f32.mrf.mxu0
  %v1662 = vadd.f32 %v41, %v1661
  %1663 = vdwg.mxu0
  %v1664 = vmul.f32 %v1662, 0.5
  %v1665 = vtanh.pop %v1664
  %v1666 = vmul.f32 %v1665, 0.5
  %v1667 = vadd.f32 %v1666, 0.5
  %v1668 = vtanh.pop %v1662
  %v1669 = vmul.f32 %v1667, %v1575
  %1671 = vrot.lane.b32.xlu0 %v1668, 88
  %v1672 = vpop.permute.xlu0 %1671
  %v1674 = vmul.f32 %v1667, %v1672
  %1676 = vrot.lane.b32.xlu0 %v1674, 20
  %v1677 = vpop.permute.xlu0 %1676
  %v1679 = vadd.f32 %v1669, %v1677
  %v1680 = vtanh.pop %v1679
  %1682 = vrot.lane.b32.xlu0 %v1680, 40
  %v1683 = vpop.permute.xlu0 %1682
  %v1685 = vmul.f32 %v1667, %v1683
  %1687 = vrot.lane.b32.xlu0 %v1685, 68
  %v1688 = vpop.permute.xlu0 %1687
  %1690 = vst.msk [vmem:[#allocation3 + $0x68] sm:$0xff] %vm232, %v1688
  %v1691 = vld [vmem:[#allocation2 + $0x70] sm:$0xff]
  %v1692 = vsel %vm232, %v1635, 0
  %1694 = vmatpush.msra.mxu0 0.0
  %1695 = vmatpush.msra.mxu0 0.0
  %1696 = vmatpush.msra.mxu0 0.0
  %1697 = vmatpush.msra.mxu0 0.0
  %1698 = vmatpush.msra.mxu0 0.0
  %1699 = vmatpush.msra.mxu0 0.0
  %1700 = vmatpush.msra.mxu0 0.0
  %1701 = vmatpush.msra.mxu0 0.0
  %1702 = vmatpush.msra.mxu0 0.0
  %1703 = vmatpush.msra.mxu0 0.0
  %1704 = vmatpush.msra.mxu0 0.0
  %1705 = vmatpush.msra.mxu0 0.0
  %1706 = vmatpush.msra.mxu0 0.0
  %1707 = vmatpush.msra.mxu0 %v238
  %1708 = vmatpush.msra.mxu0 %v32
  %1709 = vmatpush.msra.mxu0 %v31
  %1710 = vmatmul.f32.gmra.mxu0 %v1692
  %v1711 = vpop.f32.mrf.mxu0
  %v1712 = vadd.f32 0.0, %v1711
  %1713 = vdwg.mxu0
  %v1714 = vadd.f32 %v1691, %v1712
  %v1715 = vmul.f32 %v1714, 0.5
  %v1716 = vtanh.pop %v1715
  %v1717 = vmul.f32 %v1716, 0.5
  %v1718 = vadd.f32 %v1717, 0.5
  %v1719 = vtanh.pop %v1714
  %v1720 = vmul.f32 %v1718, %v1626
  %1722 = vrot.lane.b32.xlu0 %v1719, 88
  %v1723 = vpop.permute.xlu0 %1722
  %v1725 = vmul.f32 %v1718, %v1723
  %1727 = vrot.lane.b32.xlu0 %v1725, 20
  %v1728 = vpop.permute.xlu0 %1727
  %v1730 = vadd.f32 %v1720, %v1728
  %v1731 = vtanh.pop %v1730
  %1733 = vrot.lane.b32.xlu0 %v1731, 40
  %v1734 = vpop.permute.xlu0 %1733
  %v1736 = vmul.f32 %v1718, %v1734
  %1738 = vrot.lane.b32.xlu0 %v1736, 68
  %v1739 = vpop.permute.xlu0 %1738
  %1741 = vrot.lane.b32.xlu0 %v1685, 88
  %v1742 = vpop.permute.xlu0 %1741
  %v1744 = vsel %vm232, %v1739, %v1742
  %v1746 = vsel %vm288, %v1744, 0
  %1748 = vmatpush.msra.mxu0 0.0
  %1749 = vmatpush.msra.mxu0 0.0
  %1750 = vmatpush.msra.mxu0 0.0
  %1751 = vmatpush.msra.mxu0 0.0
  %1752 = vmatpush.msra.mxu0 0.0
  %1753 = vmatpush.msra.mxu0 0.0
  %1754 = vmatpush.msra.mxu0 0.0
  %1755 = vmatpush.msra.mxu0 0.0
  %1756 = vmatpush.msra.mxu0 0.0
  %1757 = vmatpush.msra.mxu0 0.0
  %1758 = vmatpush.msra.mxu0 0.0
  %1759 = vmatpush.msra.mxu0 %v38
  %1760 = vmatpush.msra.mxu0 %v37
  %1761 = vmatpush.msra.mxu0 %v36
  %1762 = vmatpush.msra.mxu0 %v35
  %1763 = vmatpush.msra.mxu0 %v34
  %1764 = vmatmul.f32.gmra.mxu0 %v1746
  %v1765 = vpop.f32.mrf.mxu0
  %v1766 = vadd.f32 %v41, %v1765
  %1767 = vdwg.mxu0
  %v1768 = vmul.f32 %v1766, 0.5
  %v1769 = vtanh.pop %v1768
  %v1770 = vmul.f32 %v1769, 0.5
  %v1771 = vadd.f32 %v1770, 0.5
  %v1772 = vtanh.pop %v1766
  %v1773 = vmul.f32 %v1771, %v1679
  %1775 = vrot.lane.b32.xlu0 %v1772, 88
  %v1776 = vpop.permute.xlu0 %1775
  %v1778 = vmul.f32 %v1771, %v1776
  %1780 = vrot.lane.b32.xlu0 %v1778, 20
  %v1781 = vpop.permute.xlu0 %1780
  %v1783 = vadd.f32 %v1773, %v1781
  %v1784 = vtanh.pop %v1783
  %1786 = vrot.lane.b32.xlu0 %v1784, 40
  %v1787 = vpop.permute.xlu0 %1786
  %v1789 = vmul.f32 %v1771, %v1787
  %1791 = vrot.lane.b32.xlu0 %v1789, 68
  %v1792 = vpop.permute.xlu0 %1791
  %1794 = vst.msk [vmem:[#allocation3 + $0x70] sm:$0xff] %vm232, %v1792
  %v1795 = vld [vmem:[#allocation2 + $0x78] sm:$0xff]
  %v1796 = vsel %vm232, %v1739, 0
  %1798 = vmatpush.msra.mxu0 0.0
  %1799 = vmatpush.msra.mxu0 0.0
  %1800 = vmatpush.msra.mxu0 0.0
  %1801 = vmatpush.msra.mxu0 0.0
  %1802 = vmatpush.msra.mxu0 0.0
  %1803 = vmatpush.msra.mxu0 0.0
  %1804 = vmatpush.msra.mxu0 0.0
  %1805 = vmatpush.msra.mxu0 0.0
  %1806 = vmatpush.msra.mxu0 0.0
  %1807 = vmatpush.msra.mxu0 0.0
  %1808 = vmatpush.msra.mxu0 0.0
  %1809 = vmatpush.msra.mxu0 0.0
  %1810 = vmatpush.msra.mxu0 0.0
  %1811 = vmatpush.msra.mxu0 %v238
  %1812 = vmatpush.msra.mxu0 %v32
  %1813 = vmatpush.msra.mxu0 %v31
  %1814 = vmatmul.f32.gmra.mxu0 %v1796
  %v1815 = vpop.f32.mrf.mxu0
  %v1816 = vadd.f32 0.0, %v1815
  %1817 = vdwg.mxu0
  %v1818 = vadd.f32 %v1795, %v1816
  %v1819 = vmul.f32 %v1818, 0.5
  %v1820 = vtanh.pop %v1819
  %v1821 = vmul.f32 %v1820, 0.5
  %v1822 = vadd.f32 %v1821, 0.5
  %v1823 = vtanh.pop %v1818
  %v1824 = vmul.f32 %v1822, %v1730
  %1826 = vrot.lane.b32.xlu0 %v1823, 88
  %v1827 = vpop.permute.xlu0 %1826
  %v1829 = vmul.f32 %v1822, %v1827
  %1831 = vrot.lane.b32.xlu0 %v1829, 20
  %v1832 = vpop.permute.xlu0 %1831
  %v1834 = vadd.f32 %v1824, %v1832
  %v1835 = vtanh.pop %v1834
  %1837 = vrot.lane.b32.xlu0 %v1835, 40
  %v1838 = vpop.permute.xlu0 %1837
  %v1840 = vmul.f32 %v1822, %v1838
  %1842 = vrot.lane.b32.xlu0 %v1840, 68
  %v1843 = vpop.permute.xlu0 %1842
  %1845 = vrot.lane.b32.xlu0 %v1789, 88
  %v1846 = vpop.permute.xlu0 %1845
  %v1848 = vsel %vm232, %v1843, %v1846
  %v1850 = vsel %vm288, %v1848, 0
  %1852 = vmatpush.msra.mxu0 0.0
  %1853 = vmatpush.msra.mxu0 0.0
  %1854 = vmatpush.msra.mxu0 0.0
  %1855 = vmatpush.msra.mxu0 0.0
  %1856 = vmatpush.msra.mxu0 0.0
  %1857 = vmatpush.msra.mxu0 0.0
  %1858 = vmatpush.msra.mxu0 0.0
  %1859 = vmatpush.msra.mxu0 0.0
  %1860 = vmatpush.msra.mxu0 0.0
  %1861 = vmatpush.msra.mxu0 0.0
  %1862 = vmatpush.msra.mxu0 0.0
  %1863 = vmatpush.msra.mxu0 %v38
  %1864 = vmatpush.msra.mxu0 %v37
  %1865 = vmatpush.msra.mxu0 %v36
  %1866 = vmatpush.msra.mxu0 %v35
  %1867 = vmatpush.msra.mxu0 %v34
  %1868 = vmatmul.f32.gmra.mxu0 %v1850
  %v1869 = vpop.f32.mrf.mxu0
  %v1870 = vadd.f32 %v41, %v1869
  %1871 = vdwg.mxu0
  %v1872 = vmul.f32 %v1870, 0.5
  %v1873 = vtanh.pop %v1872
  %v1874 = vmul.f32 %v1873, 0.5
  %v1875 = vadd.f32 %v1874, 0.5
  %v1876 = vtanh.pop %v1870
  %v1877 = vmul.f32 %v1875, %v1783
  %1879 = vrot.lane.b32.xlu0 %v1876, 88
  %v1880 = vpop.permute.xlu0 %1879
  %v1882 = vmul.f32 %v1875, %v1880
  %1884 = vrot.lane.b32.xlu0 %v1882, 20
  %v1885 = vpop.permute.xlu0 %1884
  %v1887 = vadd.f32 %v1877, %v1885
  %v1888 = vtanh.pop %v1887
  %1890 = vrot.lane.b32.xlu0 %v1888, 40
  %v1891 = vpop.permute.xlu0 %1890
  %v1893 = vmul.f32 %v1875, %v1891
  %1895 = vrot.lane.b32.xlu0 %v1893, 68
  %v1896 = vpop.permute.xlu0 %1895
  %1898 = vst.msk [vmem:[#allocation3 + $0x78] sm:$0xff] %vm232, %v1896
  %v1899 = vld [vmem:[#allocation2 + $0x80] sm:$0xff]
  %v1900 = vsel %vm232, %v1843, 0
  %1902 = vmatpush.msra.mxu0 0.0
  %1903 = vmatpush.msra.mxu0 0.0
  %1904 = vmatpush.msra.mxu0 0.0
  %1905 = vmatpush.msra.mxu0 0.0
  %1906 = vmatpush.msra.mxu0 0.0
  %1907 = vmatpush.msra.mxu0 0.0
  %1908 = vmatpush.msra.mxu0 0.0
  %1909 = vmatpush.msra.mxu0 0.0
  %1910 = vmatpush.msra.mxu0 0.0
  %1911 = vmatpush.msra.mxu0 0.0
  %1912 = vmatpush.msra.mxu0 0.0
  %1913 = vmatpush.msra.mxu0 0.0
  %1914 = vmatpush.msra.mxu0 0.0
  %1915 = vmatpush.msra.mxu0 %v238
  %1916 = vmatpush.msra.mxu0 %v32
  %1917 = vmatpush.msra.mxu0 %v31
  %1918 = vmatmul.f32.gmra.mxu0 %v1900
  %v1919 = vpop.f32.mrf.mxu0
  %v1920 = vadd.f32 0.0, %v1919
  %1921 = vdwg.mxu0
  %v1922 = vadd.f32 %v1899, %v1920
  %v1923 = vmul.f32 %v1922, 0.5
  %v1924 = vtanh.pop %v1923
  %v1925 = vmul.f32 %v1924, 0.5
  %v1926 = vadd.f32 %v1925, 0.5
  %v1927 = vtanh.pop %v1922
  %v1928 = vmul.f32 %v1926, %v1834
  %1930 = vrot.lane.b32.xlu0 %v1927, 88
  %v1931 = vpop.permute.xlu0 %1930
  %v1933 = vmul.f32 %v1926, %v1931
  %1935 = vrot.lane.b32.xlu0 %v1933, 20
  %v1936 = vpop.permute.xlu0 %1935
  %v1938 = vadd.f32 %v1928, %v1936
  %v1939 = vtanh.pop %v1938
  %1941 = vrot.lane.b32.xlu0 %v1939, 40
  %v1942 = vpop.permute.xlu0 %1941
  %v1944 = vmul.f32 %v1926, %v1942
  %1946 = vrot.lane.b32.xlu0 %v1944, 68
  %v1947 = vpop.permute.xlu0 %1946
  %1949 = vrot.lane.b32.xlu0 %v1893, 88
  %v1950 = vpop.permute.xlu0 %1949
  %v1952 = vsel %vm232, %v1947, %v1950
  %v1954 = vsel %vm288, %v1952, 0
  %1956 = vmatpush.msra.mxu0 0.0
  %1957 = vmatpush.msra.mxu0 0.0
  %1958 = vmatpush.msra.mxu0 0.0
  %1959 = vmatpush.msra.mxu0 0.0
  %1960 = vmatpush.msra.mxu0 0.0
  %1961 = vmatpush.msra.mxu0 0.0
  %1962 = vmatpush.msra.mxu0 0.0
  %1963 = vmatpush.msra.mxu0 0.0
  %1964 = vmatpush.msra.mxu0 0.0
  %1965 = vmatpush.msra.mxu0 0.0
  %1966 = vmatpush.msra.mxu0 0.0
  %1967 = vmatpush.msra.mxu0 %v38
  %1968 = vmatpush.msra.mxu0 %v37
  %1969 = vmatpush.msra.mxu0 %v36
  %1970 = vmatpush.msra.mxu0 %v35
  %1971 = vmatpush.msra.mxu0 %v34
  %1972 = vmatmul.f32.gmra.mxu0 %v1954
  %v1973 = vpop.f32.mrf.mxu0
  %v1974 = vadd.f32 %v41, %v1973
  %1975 = vdwg.mxu0
  %v1976 = vmul.f32 %v1974, 0.5
  %v1977 = vtanh.pop %v1976
  %v1978 = vmul.f32 %v1977, 0.5
  %v1979 = vadd.f32 %v1978, 0.5
  %v1980 = vtanh.pop %v1974
  %v1981 = vmul.f32 %v1979, %v1887
  %1983 = vrot.lane.b32.xlu0 %v1980, 88
  %v1984 = vpop.permute.xlu0 %1983
  %v1986 = vmul.f32 %v1979, %v1984
  %1988 = vrot.lane.b32.xlu0 %v1986, 20
  %v1989 = vpop.permute.xlu0 %1988
  %v1991 = vadd.f32 %v1981, %v1989
  %v1992 = vtanh.pop %v1991
  %1994 = vrot.lane.b32.xlu0 %v1992, 40
  %v1995 = vpop.permute.xlu0 %1994
  %v1997 = vmul.f32 %v1979, %v1995
  %1999 = vrot.lane.b32.xlu0 %v1997, 68
  %v2000 = vpop.permute.xlu0 %1999
  %2002 = vst.msk [vmem:[#allocation3 + $0x80] sm:$0xff] %vm232, %v2000
  %v2003 = vld [vmem:[#allocation2 + $0x88] sm:$0xff]
  %v2004 = vsel %vm232, %v1947, 0
  %2006 = vmatpush.msra.mxu0 0.0
  %2007 = vmatpush.msra.mxu0 0.0
  %2008 = vmatpush.msra.mxu0 0.0
  %2009 = vmatpush.msra.mxu0 0.0
  %2010 = vmatpush.msra.mxu0 0.0
  %2011 = vmatpush.msra.mxu0 0.0
  %2012 = vmatpush.msra.mxu0 0.0
  %2013 = vmatpush.msra.mxu0 0.0
  %2014 = vmatpush.msra.mxu0 0.0
  %2015 = vmatpush.msra.mxu0 0.0
  %2016 = vmatpush.msra.mxu0 0.0
  %2017 = vmatpush.msra.mxu0 0.0
  %2018 = vmatpush.msra.mxu0 0.0
  %2019 = vmatpush.msra.mxu0 %v238
  %2020 = vmatpush.msra.mxu0 %v32
  %2021 = vmatpush.msra.mxu0 %v31
  %2022 = vmatmul.f32.gmra.mxu0 %v2004
  %v2023 = vpop.f32.mrf.mxu0
  %v2024 = vadd.f32 0.0, %v2023
  %2025 = vdwg.mxu0
  %v2026 = vadd.f32 %v2003, %v2024
  %v2027 = vmul.f32 %v2026, 0.5
  %v2028 = vtanh.pop %v2027
  %v2029 = vmul.f32 %v2028, 0.5
  %v2030 = vadd.f32 %v2029, 0.5
  %v2031 = vtanh.pop %v2026
  %v2032 = vmul.f32 %v2030, %v1938
  %2034 = vrot.lane.b32.xlu0 %v2031, 88
  %v2035 = vpop.permute.xlu0 %2034
  %v2037 = vmul.f32 %v2030, %v2035
  %2039 = vrot.lane.b32.xlu0 %v2037, 20
  %v2040 = vpop.permute.xlu0 %2039
  %v2042 = vadd.f32 %v2032, %v2040
  %v2043 = vtanh.pop %v2042
  %2045 = vrot.lane.b32.xlu0 %v2043, 40
  %v2046 = vpop.permute.xlu0 %2045
  %v2048 = vmul.f32 %v2030, %v2046
  %2050 = vrot.lane.b32.xlu0 %v2048, 68
  %v2051 = vpop.permute.xlu0 %2050
  %2053 = vrot.lane.b32.xlu0 %v1997, 88
  %v2054 = vpop.permute.xlu0 %2053
  %v2056 = vsel %vm232, %v2051, %v2054
  %v2058 = vsel %vm288, %v2056, 0
  %2060 = vmatpush.msra.mxu0 0.0
  %2061 = vmatpush.msra.mxu0 0.0
  %2062 = vmatpush.msra.mxu0 0.0
  %2063 = vmatpush.msra.mxu0 0.0
  %2064 = vmatpush.msra.mxu0 0.0
  %2065 = vmatpush.msra.mxu0 0.0
  %2066 = vmatpush.msra.mxu0 0.0
  %2067 = vmatpush.msra.mxu0 0.0
  %2068 = vmatpush.msra.mxu0 0.0
  %2069 = vmatpush.msra.mxu0 0.0
  %2070 = vmatpush.msra.mxu0 0.0
  %2071 = vmatpush.msra.mxu0 %v38
  %2072 = vmatpush.msra.mxu0 %v37
  %2073 = vmatpush.msra.mxu0 %v36
  %2074 = vmatpush.msra.mxu0 %v35
  %2075 = vmatpush.msra.mxu0 %v34
  %2076 = vmatmul.f32.gmra.mxu0 %v2058
  %v2077 = vpop.f32.mrf.mxu0
  %v2078 = vadd.f32 %v41, %v2077
  %2079 = vdwg.mxu0
  %v2080 = vmul.f32 %v2078, 0.5
  %v2081 = vtanh.pop %v2080
  %v2082 = vmul.f32 %v2081, 0.5
  %v2083 = vadd.f32 %v2082, 0.5
  %v2084 = vtanh.pop %v2078
  %v2085 = vmul.f32 %v2083, %v1991
  %2087 = vrot.lane.b32.xlu0 %v2084, 88
  %v2088 = vpop.permute.xlu0 %2087
  %v2090 = vmul.f32 %v2083, %v2088
  %2092 = vrot.lane.b32.xlu0 %v2090, 20
  %v2093 = vpop.permute.xlu0 %2092
  %v2095 = vadd.f32 %v2085, %v2093
  %v2096 = vtanh.pop %v2095
  %2098 = vrot.lane.b32.xlu0 %v2096, 40
  %v2099 = vpop.permute.xlu0 %2098
  %v2101 = vmul.f32 %v2083, %v2099
  %2103 = vrot.lane.b32.xlu0 %v2101, 68
  %v2104 = vpop.permute.xlu0 %2103
  %2106 = vst.msk [vmem:[#allocation3 + $0x88] sm:$0xff] %vm232, %v2104
  %v2107 = vld [vmem:[#allocation2 + $0x90] sm:$0xff]
  %v2108 = vsel %vm232, %v2051, 0
  %2110 = vmatpush.msra.mxu0 0.0
  %2111 = vmatpush.msra.mxu0 0.0
  %2112 = vmatpush.msra.mxu0 0.0
  %2113 = vmatpush.msra.mxu0 0.0
  %2114 = vmatpush.msra.mxu0 0.0
  %2115 = vmatpush.msra.mxu0 0.0
  %2116 = vmatpush.msra.mxu0 0.0
  %2117 = vmatpush.msra.mxu0 0.0
  %2118 = vmatpush.msra.mxu0 0.0
  %2119 = vmatpush.msra.mxu0 0.0
  %2120 = vmatpush.msra.mxu0 0.0
  %2121 = vmatpush.msra.mxu0 0.0
  %2122 = vmatpush.msra.mxu0 0.0
  %2123 = vmatpush.msra.mxu0 %v238
  %2124 = vmatpush.msra.mxu0 %v32
  %2125 = vmatpush.msra.mxu0 %v31
  %2126 = vmatmul.f32.gmra.mxu0 %v2108
  %v2127 = vpop.f32.mrf.mxu0
  %v2128 = vadd.f32 0.0, %v2127
  %2129 = vdwg.mxu0
  %v2130 = vadd.f32 %v2107, %v2128
  %v2131 = vmul.f32 %v2130, 0.5
  %v2132 = vtanh.pop %v2131
  %v2133 = vmul.f32 %v2132, 0.5
  %v2134 = vadd.f32 %v2133, 0.5
  %v2135 = vtanh.pop %v2130
  %v2136 = vmul.f32 %v2134, %v2042
  %2138 = vrot.lane.b32.xlu0 %v2135, 88
  %v2139 = vpop.permute.xlu0 %2138
  %v2141 = vmul.f32 %v2134, %v2139
  %2143 = vrot.lane.b32.xlu0 %v2141, 20
  %v2144 = vpop.permute.xlu0 %2143
  %v2146 = vadd.f32 %v2136, %v2144
  %v2147 = vtanh.pop %v2146
  %2149 = vrot.lane.b32.xlu0 %v2147, 40
  %v2150 = vpop.permute.xlu0 %2149
  %v2152 = vmul.f32 %v2134, %v2150
  %2154 = vrot.lane.b32.xlu0 %v2152, 68
  %v2155 = vpop.permute.xlu0 %2154
  %2157 = vrot.lane.b32.xlu0 %v2101, 88
  %v2158 = vpop.permute.xlu0 %2157
  %v2160 = vsel %vm232, %v2155, %v2158
  %v2162 = vsel %vm288, %v2160, 0
  %2164 = vmatpush.msra.mxu0 0.0
  %2165 = vmatpush.msra.mxu0 0.0
  %2166 = vmatpush.msra.mxu0 0.0
  %2167 = vmatpush.msra.mxu0 0.0
  %2168 = vmatpush.msra.mxu0 0.0
  %2169 = vmatpush.msra.mxu0 0.0
  %2170 = vmatpush.msra.mxu0 0.0
  %2171 = vmatpush.msra.mxu0 0.0
  %2172 = vmatpush.msra.mxu0 0.0
  %2173 = vmatpush.msra.mxu0 0.0
  %2174 = vmatpush.msra.mxu0 0.0
  %2175 = vmatpush.msra.mxu0 %v38
  %2176 = vmatpush.msra.mxu0 %v37
  %2177 = vmatpush.msra.mxu0 %v36
  %2178 = vmatpush.msra.mxu0 %v35
  %2179 = vmatpush.msra.mxu0 %v34
  %2180 = vmatmul.f32.gmra.mxu0 %v2162
  %v2181 = vpop.f32.mrf.mxu0
  %v2182 = vadd.f32 %v41, %v2181
  %2183 = vdwg.mxu0
  %v2184 = vmul.f32 %v2182, 0.5
  %v2185 = vtanh.pop %v2184
  %v2186 = vmul.f32 %v2185, 0.5
  %v2187 = vadd.f32 %v2186, 0.5
  %v2188 = vtanh.pop %v2182
  %v2189 = vmul.f32 %v2187, %v2095
  %2191 = vrot.lane.b32.xlu0 %v2188, 88
  %v2192 = vpop.permute.xlu0 %2191
  %v2194 = vmul.f32 %v2187, %v2192
  %2196 = vrot.lane.b32.xlu0 %v2194, 20
  %v2197 = vpop.permute.xlu0 %2196
  %v2199 = vadd.f32 %v2189, %v2197
  %v2200 = vtanh.pop %v2199
  %2202 = vrot.lane.b32.xlu0 %v2200, 40
  %v2203 = vpop.permute.xlu0 %2202
  %v2205 = vmul.f32 %v2187, %v2203
  %2207 = vrot.lane.b32.xlu0 %v2205, 68
  %v2208 = vpop.permute.xlu0 %2207
  %2210 = vst.msk [vmem:[#allocation3 + $0x90] sm:$0xff] %vm232, %v2208
  %v2211 = vld [vmem:[#allocation2 + $0x98] sm:$0xff]
  %v2212 = vsel %vm232, %v2155, 0
  %2214 = vmatpush.msra.mxu0 0.0
  %2215 = vmatpush.msra.mxu0 0.0
  %2216 = vmatpush.msra.mxu0 0.0
  %2217 = vmatpush.msra.mxu0 0.0
  %2218 = vmatpush.msra.mxu0 0.0
  %2219 = vmatpush.msra.mxu0 0.0
  %2220 = vmatpush.msra.mxu0 0.0
  %2221 = vmatpush.msra.mxu0 0.0
  %2222 = vmatpush.msra.mxu0 0.0
  %2223 = vmatpush.msra.mxu0 0.0
  %2224 = vmatpush.msra.mxu0 0.0
  %2225 = vmatpush.msra.mxu0 0.0
  %2226 = vmatpush.msra.mxu0 0.0
  %2227 = vmatpush.msra.mxu0 %v238
  %2228 = vmatpush.msra.mxu0 %v32
  %2229 = vmatpush.msra.mxu0 %v31
  %2230 = vmatmul.f32.gmra.mxu0 %v2212
  %v2231 = vpop.f32.mrf.mxu0
  %v2232 = vadd.f32 0.0, %v2231
  %2233 = vdwg.mxu0
  %v2234 = vadd.f32 %v2211, %v2232
  %v2235 = vmul.f32 %v2234, 0.5
  %v2236 = vtanh.pop %v2235
  %v2237 = vmul.f32 %v2236, 0.5
  %v2238 = vadd.f32 %v2237, 0.5
  %v2239 = vtanh.pop %v2234
  %v2240 = vmul.f32 %v2238, %v2146
  %2242 = vrot.lane.b32.xlu0 %v2239, 88
  %v2243 = vpop.permute.xlu0 %2242
  %v2245 = vmul.f32 %v2238, %v2243
  %2247 = vrot.lane.b32.xlu0 %v2245, 20
  %v2248 = vpop.permute.xlu0 %2247
  %v2250 = vadd.f32 %v2240, %v2248
  %v2251 = vtanh.pop %v2250
  %2253 = vrot.lane.b32.xlu0 %v2251, 40
  %v2254 = vpop.permute.xlu0 %2253
  %v2256 = vmul.f32 %v2238, %v2254
  %2258 = vrot.lane.b32.xlu0 %v2256, 68
  %v2259 = vpop.permute.xlu0 %2258
  %2261 = vrot.lane.b32.xlu0 %v2205, 88
  %v2262 = vpop.permute.xlu0 %2261
  %v2264 = vsel %vm232, %v2259, %v2262
  %v2266 = vsel %vm288, %v2264, 0
  %2268 = vmatpush.msra.mxu0 0.0
  %2269 = vmatpush.msra.mxu0 0.0
  %2270 = vmatpush.msra.mxu0 0.0
  %2271 = vmatpush.msra.mxu0 0.0
  %2272 = vmatpush.msra.mxu0 0.0
  %2273 = vmatpush.msra.mxu0 0.0
  %2274 = vmatpush.msra.mxu0 0.0
  %2275 = vmatpush.msra.mxu0 0.0
  %2276 = vmatpush.msra.mxu0 0.0
  %2277 = vmatpush.msra.mxu0 0.0
  %2278 = vmatpush.msra.mxu0 0.0
  %2279 = vmatpush.msra.mxu0 %v38
  %2280 = vmatpush.msra.mxu0 %v37
  %2281 = vmatpush.msra.mxu0 %v36
  %2282 = vmatpush.msra.mxu0 %v35
  %2283 = vmatpush.msra.mxu0 %v34
  %2284 = vmatmul.f32.gmra.mxu0 %v2266
  %v2285 = vpop.f32.mrf.mxu0
  %v2286 = vadd.f32 %v41, %v2285
  %2287 = vdwg.mxu0
  %v2288 = vmul.f32 %v2286, 0.5
  %v2289 = vtanh.pop %v2288
  %v2290 = vmul.f32 %v2289, 0.5
  %v2291 = vadd.f32 %v2290, 0.5
  %v2292 = vtanh.pop %v2286
  %v2293 = vmul.f32 %v2291, %v2199
  %2295 = vrot.lane.b32.xlu0 %v2292, 88
  %v2296 = vpop.permute.xlu0 %2295
  %v2298 = vmul.f32 %v2291, %v2296
  %2300 = vrot.lane.b32.xlu0 %v2298, 20
  %v2301 = vpop.permute.xlu0 %2300
  %v2303 = vadd.f32 %v2293, %v2301
  %v2304 = vtanh.pop %v2303
  %2306 = vrot.lane.b32.xlu0 %v2304, 40
  %v2307 = vpop.permute.xlu0 %2306
  %v2309 = vmul.f32 %v2291, %v2307
  %2311 = vrot.lane.b32.xlu0 %v2309, 68
  %v2312 = vpop.permute.xlu0 %2311
  %2314 = vst.msk [vmem:[#allocation3 + $0x98] sm:$0xff] %vm232, %v2312
  %v2315 = vld [vmem:[#allocation3] sm:$0xff]
  %v2316 = vld [vmem:[#allocation3 + $0x8] sm:$0xff]
  %v2317 = vld [vmem:[#allocation3 + $0x10] sm:$0xff]
  %v2318 = vld [vmem:[#allocation3 + $0x18] sm:$0xff]
  %v2319 = vld [vmem:[#allocation3 + $0x20] sm:$0xff]
  %v2320 = vld [vmem:[#allocation3 + $0x28] sm:$0xff]
  %v2321 = vld [vmem:[#allocation3 + $0x30] sm:$0xff]
  %v2322 = vld [vmem:[#allocation3 + $0x38] sm:$0xff]
  %v2323 = vld [vmem:[#allocation3 + $0x40] sm:$0xff]
  %v2324 = vld [vmem:[#allocation3 + $0x48] sm:$0xff]
  %v2325 = vld [vmem:[#allocation3 + $0x50] sm:$0xff]
  %v2326 = vld [vmem:[#allocation3 + $0x58] sm:$0xff]
  %v2327 = vld [vmem:[#allocation3 + $0x60] sm:$0xff]
  %v2328 = vld [vmem:[#allocation3 + $0x68] sm:$0xff]
  %v2329 = vld [vmem:[#allocation3 + $0x70] sm:$0xff]
  %v2330 = vld [vmem:[#allocation3 + $0x78] sm:$0xff]
  %v2331 = vld [vmem:[#allocation3 + $0x80] sm:$0xff]
  %v2332 = vld [vmem:[#allocation3 + $0x88] sm:$0xff]
  %v2333 = vld [vmem:[#allocation3 + $0x90] sm:$0xff]
  %v2334 = vld [vmem:[#allocation3 + $0x98] sm:$0xff]
  %v2335 = vld [vmem:[%s6] sm:$0xff]
  %v2336 = vld [vmem:[%s6 + $0x8] sm:$0xff]
  %v2337 = vld [vmem:[%s6 + $0x10] sm:$0xff]
  %v2338 = vld [vmem:[%s6 + $0x18] sm:$0xff]
  %v2339 = vld [vmem:[%s6 + $0x20] sm:$0xff]
  %v2340 = vld [vmem:[%s6 + $0x28] sm:$0xff]
  %v2341 = vld [vmem:[%s6 + $0x30] sm:$0xff]
  %v2342 = vld [vmem:[%s6 + $0x38] sm:$0xff]
  %v2343 = vld [vmem:[%s6 + $0x40] sm:$0xff]
  %v2344 = vld [vmem:[%s6 + $0x48] sm:$0xff]
  %v2345 = vld [vmem:[%s6 + $0x50] sm:$0xff]
  %v2346 = vld [vmem:[%s6 + $0x58] sm:$0xff]
  %v2347 = vld [vmem:[%s6 + $0x60] sm:$0xff]
  %v2348 = vld [vmem:[%s6 + $0x68] sm:$0xff]
  %v2349 = vld [vmem:[%s6 + $0x70] sm:$0xff]
  %v2350 = vld [vmem:[%s6 + $0x78] sm:$0xff]
  %v2351 = vld [vmem:[%s6 + $0x80] sm:$0xff]
  %v2352 = vld [vmem:[%s6 + $0x88] sm:$0xff]
  %v2353 = vld [vmem:[%s6 + $0x90] sm:$0xff]
  %v2354 = vld [vmem:[%s6 + $0x98] sm:$0xff]
  %v2355 = vmul.f32 %v2315, %v2335
  %v2356 = vmul.f32 %v2316, %v2336
  %v2357 = vmul.f32 %v2317, %v2337
  %v2358 = vmul.f32 %v2318, %v2338
  %v2359 = vmul.f32 %v2319, %v2339
  %v2360 = vmul.f32 %v2320, %v2340
  %v2361 = vmul.f32 %v2321, %v2341
  %v2362 = vmul.f32 %v2322, %v2342
  %v2363 = vmul.f32 %v2323, %v2343
  %v2364 = vmul.f32 %v2324, %v2344
  %v2365 = vmul.f32 %v2325, %v2345
  %v2366 = vmul.f32 %v2326, %v2346
  %v2367 = vmul.f32 %v2327, %v2347
  %v2368 = vmul.f32 %v2328, %v2348
  %v2369 = vmul.f32 %v2329, %v2349
  %v2370 = vmul.f32 %v2330, %v2350
  %v2371 = vmul.f32 %v2331, %v2351
  %v2372 = vmul.f32 %v2332, %v2352
  %v2373 = vmul.f32 %v2333, %v2353
  %v2374 = vmul.f32 %v2334, %v2354
  %v2375 = vsel %vm232, %v2355, 0.0
  %2376 = vadd.xlane.f32.xlu0 %v2375
  %v2377 = vpop.xlane.xlu0 %2376
  %v2378 = vsel %vm232, %v2356, 0.0
  %2379 = vadd.xlane.f32.xlu0 %v2378
  %v2380 = vpop.xlane.xlu0 %2379
  %v2381 = vsel %vm232, %v2357, 0.0
  %2382 = vadd.xlane.f32.xlu0 %v2381
  %v2383 = vpop.xlane.xlu0 %2382
  %v2384 = vsel %vm232, %v2358, 0.0
  %2385 = vadd.xlane.f32.xlu0 %v2384
  %v2386 = vpop.xlane.xlu0 %2385
  %v2387 = vsel %vm232, %v2359, 0.0
  %2388 = vadd.xlane.f32.xlu0 %v2387
  %v2389 = vpop.xlane.xlu0 %2388
  %v2390 = vsel %vm232, %v2360, 0.0
  %2391 = vadd.xlane.f32.xlu0 %v2390
  %v2392 = vpop.xlane.xlu0 %2391
  %v2393 = vsel %vm232, %v2361, 0.0
  %2394 = vadd.xlane.f32.xlu0 %v2393
  %v2395 = vpop.xlane.xlu0 %2394
  %v2396 = vsel %vm232, %v2362, 0.0
  %2397 = vadd.xlane.f32.xlu0 %v2396
  %v2398 = vpop.xlane.xlu0 %2397
  %v2399 = vsel %vm232, %v2363, 0.0
  %2400 = vadd.xlane.f32.xlu0 %v2399
  %v2401 = vpop.xlane.xlu0 %2400
  %v2402 = vsel %vm232, %v2364, 0.0
  %2403 = vadd.xlane.f32.xlu0 %v2402
  %v2404 = vpop.xlane.xlu0 %2403
  %v2405 = vsel %vm232, %v2365, 0.0
  %2406 = vadd.xlane.f32.xlu0 %v2405
  %v2407 = vpop.xlane.xlu0 %2406
  %v2408 = vsel %vm232, %v2366, 0.0
  %2409 = vadd.xlane.f32.xlu0 %v2408
  %v2410 = vpop.xlane.xlu0 %2409
  %v2411 = vsel %vm232, %v2367, 0.0
  %2412 = vadd.xlane.f32.xlu0 %v2411
  %v2413 = vpop.xlane.xlu0 %2412
  %v2414 = vsel %vm232, %v2368, 0.0
  %2415 = vadd.xlane.f32.xlu0 %v2414
  %v2416 = vpop.xlane.xlu0 %2415
  %v2417 = vsel %vm232, %v2369, 0.0
  %2418 = vadd.xlane.f32.xlu0 %v2417
  %v2419 = vpop.xlane.xlu0 %2418
  %v2420 = vsel %vm232, %v2370, 0.0
  %2421 = vadd.xlane.f32.xlu0 %v2420
  %v2422 = vpop.xlane.xlu0 %2421
  %v2423 = vsel %vm232, %v2371, 0.0
  %2424 = vadd.xlane.f32.xlu0 %v2423
  %v2425 = vpop.xlane.xlu0 %2424
  %v2426 = vsel %vm232, %v2372, 0.0
  %2427 = vadd.xlane.f32.xlu0 %v2426
  %v2428 = vpop.xlane.xlu0 %2427
  %v2429 = vsel %vm232, %v2373, 0.0
  %2430 = vadd.xlane.f32.xlu0 %v2429
  %v2431 = vpop.xlane.xlu0 %2430
  %v2432 = vsel %vm232, %v2374, 0.0
  %2433 = vadd.xlane.f32.xlu0 %v2432
  %v2434 = vpop.xlane.xlu0 %2433
  %v2435 = vlaneseq
  %v2436 = vand.u32 %v2435, 127
  %v2437 = vadd.s32 %v2436, 128
  %v2438 = vlaneseq
  %v2439 = vshrl.u32 %v2438, 7
  %v2440 = vmul.u32 %v2439, 80
  %vm2441 = vcmp.ge.s32.totalorder %v2436, %v2440
  %vm2442 = vcmp.ge.s32.totalorder %v2437, %v2440
  %v2443 = vadd.s32 %v2440, 80
  %vm2444 = vcmp.lt.s32.totalorder %v2436, %v2443
  %vm2445 = vcmp.lt.s32.totalorder %v2437, %v2443
  %vm2446 = vmand %vm2441, %vm2444
  %vm2447 = vmand %vm2442, %vm2445
  %v2448 = vsel %vm2446, 1, 0
  %v2449 = vsel %vm2447, 1, 0
  %v2450 = vcvt.s32.f32 %v2448
  %v2451 = vcvt.s32.f32 %v2449
  %v2452 = vld [vmem:[#allocation4] sm:$0x1]
  %v2454 = vperm.slane %v2452, 0
  %vm2456 = vcmask 261120
  %v2458 = vsel %vm2456, %v2451, 0
  %2460 = vmatpush.msra.mxu0 %v2422
  %2461 = vmatpush.msra.mxu0 %v2419
  %2462 = vmatpush.msra.mxu0 %v2416
  %2463 = vmatpush.msra.mxu0 %v2413
  %2464 = vmatpush.msra.mxu0 %v2410
  %2465 = vmatpush.msra.mxu0 %v2407
  %2466 = vmatpush.msra.mxu0 %v2404
  %2467 = vmatpush.msra.mxu0 %v2401
  %2468 = vmatpush.msra.mxu0 %v2398
  %2469 = vmatpush.msra.mxu0 %v2395
  %2470 = vmatpush.msra.mxu0 %v2392
  %2471 = vmatpush.msra.mxu0 %v2389
  %2472 = vmatpush.msra.mxu0 %v2386
  %2473 = vmatpush.msra.mxu0 %v2383
  %2474 = vmatpush.msra.mxu0 %v2380
  %2475 = vmatpush.msra.mxu0 %v2377
  %2476 = vmatmul.f32.gmra.mxu0 %v2450
  %v2477 = vpop.f32.mrf.mxu0
  %v2478 = vadd.f32 %v2454, %v2477
  %2479 = vdwg.mxu0
  %2480 = vmatpush.msra.mxu0 0.0
  %2481 = vmatpush.msra.mxu0 0.0
  %2482 = vmatpush.msra.mxu0 0.0
  %2483 = vmatpush.msra.mxu0 0.0
  %2484 = vmatpush.msra.mxu0 0.0
  %2485 = vmatpush.msra.mxu0 0.0
  %2486 = vmatpush.msra.mxu0 0.0
  %2487 = vmatpush.msra.mxu0 0.0
  %2488 = vmatpush.msra.mxu0 0.0
  %2489 = vmatpush.msra.mxu0 0.0
  %2490 = vmatpush.msra.mxu0 0.0
  %2491 = vmatpush.msra.mxu0 0.0
  %2492 = vmatpush.msra.mxu0 %v2434
  %2493 = vmatpush.msra.mxu0 %v2431
  %2494 = vmatpush.msra.mxu0 %v2428
  %2495 = vmatpush.msra.mxu0 %v2425
  %2496 = vmatmul.f32.gmra.mxu0 %v2458
  %v2497 = vpop.f32.mrf.mxu0
  %v2498 = vadd.f32 %v2478, %v2497
  %2499 = vdwg.mxu0
  %vm2500 = vcmask 1024
  %2501 = vst.msk [vmem:[%s8] sm:$0x3] %vm2500, %v2498
  // Predicated region
  $region34: #{tpu_custom_call.1} parent=0 // pred_check
    _
  $region35: #{tpu_custom_call.1} parent=0 // pred_check_branch
    %2503 = sbr.rel (0) target = $region37
  $region36: #{tpu_custom_call.1} parent=0 // pred_region
    _
  $region37: #{tpu_custom_call.1} parent=0 // pred_fallthru
    _
  // Predicated region
  $region38: #{tpu_custom_call.1} parent=0 // pred_check
    _
  $region39: #{tpu_custom_call.1} parent=0 // pred_check_branch
    %2505 = sbr.rel (0) target = $region41
  $region40: #{tpu_custom_call.1} parent=0 // pred_region
    _
  $region41: #{tpu_custom_call.1} parent=0 // pred_fallthru
    _

</llo_original>
